<compile_context>
chip_gen: v7x
topology: tpu7x:2x2x1
jax: 0.10.0
libtpu: 0.0.40
codegen_flags: <defaults>
</compile_context>

<pallas_src>
import numpy as np

import jax
import jax.numpy as jnp
from jax.experimental import pallas as pl
from jax.experimental.pallas import tpu as pltpu

MATMUL_DTYPE = jnp.bfloat16   # conv matmul operand dtype (accumulate in f32 on MXU)
LRELU_SLOPE = 0.2
BN_EPS = 1e-5


# ----------------------------------------------------------------------------
# Fused Pallas kernel (built per layer structure)
# ----------------------------------------------------------------------------
def _make_fused_kernel(layer_meta, batch):
    """Build the fused forward kernel.

    Ref order: x_flat, then per layer:
      kind 'plain'/'final': (Wbig, bias_big)
      kind 'bn'           : (Wbig, P_chan_sum, P_chan_sum_T, gamma, beta)
    and finally the single output ref.
    """
    def kernel(*refs):
        o_ref = refs[-1]
        h = refs[0][...].astype(jnp.float32)          # (N, Hin*Win*Cin)
        idx = 1
        for meta in layer_meta:
            kind = meta['kind']
            if kind in ('plain', 'final'):
                w_ref, b_ref = refs[idx], refs[idx + 1]
                idx += 2
                z = jnp.dot(h.astype(w_ref.dtype), w_ref[...],
                            preferred_element_type=jnp.float32) + b_ref[...]
                if kind == 'plain':                    # conv + bias + LeakyReLU
                    h = jnp.where(z >= 0, z, meta['slope'] * z)
                else:                                  # final conv + bias, no act
                    h = z
            else:                                      # bias-free conv + BN + LeakyReLU
                w_ref, p_ref, pt_ref, g_ref, bt_ref = refs[idx:idx + 5]
                idx += 5
                z = jnp.dot(h.astype(w_ref.dtype), w_ref[...],
                            preferred_element_type=jnp.float32)   # (N, S*C) f32
                cnt = float(batch * meta['spatial'])
                # Per-channel batch statistics via tiny channel-sum matmuls.
                s1 = jnp.dot(jnp.sum(z, axis=0, keepdims=True), p_ref[...],
                             preferred_element_type=jnp.float32)  # (1, C)
                s2 = jnp.dot(jnp.sum(z * z, axis=0, keepdims=True), p_ref[...],
                             preferred_element_type=jnp.float32)  # (1, C)
                mean = s1 / cnt
                var = s2 / cnt - mean * mean            # biased, train-mode BN
                scale = g_ref[...] * jax.lax.rsqrt(var + meta['eps'])
                shift = bt_ref[...] - mean * scale
                # Expand (1,C) -> (1,S*C) lane pattern with the transposed sum matrix.
                scale_big = jnp.dot(scale, pt_ref[...],
                                    preferred_element_type=jnp.float32)
                shift_big = jnp.dot(shift, pt_ref[...],
                                    preferred_element_type=jnp.float32)
                z = z * scale_big + shift_big
                h = jnp.where(z >= 0, z, meta['slope'] * z)
        o_ref[...] = h.astype(o_ref.dtype)

    return kernel


def _vmem_limit_bytes(arrays, out_bytes):
    need = sum(int(a.size) * a.dtype.itemsize for a in arrays) + out_bytes
    # Inputs/outputs are double-buffered by Pallas; add headroom for intermediates.
    return int(min(max(2 * need + (4 << 20), 8 << 20), 32 << 20))


# ----------------------------------------------------------------------------
# Host-side (numpy) weight packing: fold im2col + padding into dense matrices
# ----------------------------------------------------------------------------
def _toeplitz_conv_matrix(w_oihw, hin, win, stride, pad):
    """Dense matrix Wbig s.t. flatten_nhwc(conv(x)) = flatten_nhwc(x) @ Wbig."""
    w_np = np.asarray(w_oihw, np.float32)
    cout, cin, k, _ = w_np.shape
    oh = (hin + 2 * pad - k) // stride + 1
    ow = (win + 2 * pad - k) // stride + 1
    w_t = np.transpose(w_np, (2, 3, 1, 0))             # (kh, kw, cin, cout)
    big = np.zeros((hin * win * cin, oh * ow * cout), np.float32)
    for i in range(oh):
        for j in range(ow):
            c0 = (i * ow + j) * cout
            for kh in range(k):
                hi = stride * i + kh - pad
                if hi < 0 or hi >= hin:
                    continue
                for kw in range(k):
                    wi = stride * j + kw - pad
                    if wi < 0 or wi >= win:
                        continue
                    r0 = (hi * win + wi) * cin
                    big[r0:r0 + cin, c0:c0 + cout] += w_t[kh, kw]
    return big, oh, ow


def pack_discriminator(params, input_hw, matmul_dtype=MATMUL_DTYPE):
    """One-time pre-pack: expand conv weights, tile biases, build BN sum matrices."""
    cur_h, cur_w = input_hw
    arrays, metas = [], []
    for li, p in enumerate(params):
        s = p['spec']
        big, oh, ow = _toeplitz_conv_matrix(p['w'], cur_h, cur_w, s['s'], s['p'])
        cout = s['cout']
        if s['bn']:
            S = oh * ow
            P = np.zeros((S * cout, cout), np.float32)
            P[np.arange(S * cout), np.arange(S * cout) % cout] = 1.0
            arrays += [
                jnp.asarray(big, matmul_dtype),
                jnp.asarray(P),
                jnp.asarray(np.ascontiguousarray(P.T)),
                jnp.asarray(np.asarray(p['gamma'], np.float32)[None, :]),
                jnp.asarray(np.asarray(p['beta'], np.float32)[None, :]),
            ]
            metas.append(dict(kind='bn', spatial=S, eps=BN_EPS, slope=LRELU_SLOPE))
        else:
            bias_big = np.tile(np.asarray(p['b'], np.float32), oh * ow)[None, :]
            kind = 'plain' if s['act'] else 'final'
            wdtype = matmul_dtype if s['act'] else jnp.float32   # final matvec is tiny
            arrays += [jnp.asarray(big, wdtype), jnp.asarray(bias_big)]
            metas.append(dict(kind=kind, spatial=oh * ow, slope=LRELU_SLOPE))
        cur_h, cur_w = oh, ow
    return dict(arrays=arrays, layer_meta=metas,
                out_hw=(cur_h, cur_w), out_channels=params[-1]['spec']['cout'])


# ----------------------------------------------------------------------------
# Forward wrapper (single pallas_call)
# ----------------------------------------------------------------------------
def conv_discriminator_forward(x_nchw, packed):
    n, cin, hh, ww = x_nchw.shape
    x_flat = jnp.transpose(x_nchw, (0, 2, 3, 1)).reshape(n, hh * ww * cin)
    x_flat = x_flat.astype(jnp.float32)

    arrays = [x_flat] + list(packed['arrays'])
    oh, ow = packed['out_hw']
    cf = packed['out_channels']
    out_dim = oh * ow * cf

    kernel = _make_fused_kernel(packed['layer_meta'], n)
    in_specs = [pl.BlockSpec(a.shape, lambda i: (0, 0)) for a in arrays]  # all 2-D
    vmem = _vmem_limit_bytes(arrays, n * out_dim * 4)

    y = pl.pallas_call(
        kernel,
        out_shape=jax.ShapeDtypeStruct((n, out_dim), jnp.float32),
        grid=(1,),
        in_specs=in_specs,
        out_specs=pl.BlockSpec((n, out_dim), lambda i: (0, 0)),
        compiler_params=pltpu.CompilerParams(
            dimension_semantics=("arbitrary",),
            vmem_limit_bytes=vmem),
    )(*arrays)

    y = y.reshape(n, oh, ow, cf)
    return jnp.transpose(y, (0, 3, 1, 2))               # NHWC -> NCHW


# ----------------------------------------------------------------------------
# Module: parameter construction (matches ConvDiscriminator structure)
# ----------------------------------------------------------------------------
def build_discriminator_params(key, input_channels=1, dim=16, n_downsamplings=2):
    specs = []
    d = dim
    specs.append(dict(cin=input_channels, cout=d, k=4, s=2, p=1,
                      bias=True, bn=False, act=True))
    for i in range(n_downsamplings - 1):
        d_last, d = d, min(dim * 2 ** (i + 1), dim * 8)
        specs.append(dict(cin=d_last, cout=d, k=4, s=2, p=1,
                          bias=False, bn=True, act=True))
    specs.append(dict(cin=d, cout=1, k=4, s=1, p=0,
                      bias=True, bn=False, act=False))

    params = []
    for spec in specs:
        key, kw, kb, kg, kbt = jax.random.split(key, 5)
        w = 0.05 * jax.random.normal(
            kw, (spec['cout'], spec['cin'], spec['k'], spec['k']), jnp.float32)  # OIHW
        b = (0.05 * jax.random.normal(kb, (spec['cout'],), jnp.float32)
             if spec['bias'] else jnp.zeros((spec['cout'],), jnp.float32))
        gamma = (1.0 + 0.1 * jax.random.normal(kg, (spec['cout'],), jnp.float32)
                 if spec['bn'] else jnp.ones((spec['cout'],), jnp.float32))
        beta = (0.1 * jax.random.normal(kbt, (spec['cout'],), jnp.float32)
                if spec['bn'] else jnp.zeros((spec['cout'],), jnp.float32))
        params.append(dict(spec=spec, w=w, b=b, gamma=gamma, beta=beta))
    return params


# ----------------------------------------------------------------------------
# Pure-JAX reference (XLA convs) for correctness checking
# ----------------------------------------------------------------------------
def reference_forward(x_nchw, params):
    y = x_nchw
    for p in params:
        s = p['spec']
        y = jax.lax.conv_general_dilated(
            y, p['w'], (s['s'], s['s']), [(s['p'], s['p'])] * 2,
            dimension_numbers=('NCHW', 'OIHW', 'NCHW'))
        if s['bias']:
            y = y + p['b'][None, :, None, None]
        if s['bn']:
            mean = jnp.mean(y, axis=(0, 2, 3), keepdims=True)
            var = jnp.mean((y - mean) ** 2, axis=(0, 2, 3), keepdims=True)
            y = (y - mean) * jax.lax.rsqrt(var + BN_EPS)
            y = y * p['gamma'][None, :, None, None] + p['beta'][None, :, None, None]
        if s['act']:
            y = jnp.where(y >= 0, y, LRELU_SLOPE * y)
    return y


if __name__ == "__main__":
    key = jax.random.PRNGKey(0)
    key_x, key_p = jax.random.split(key)

    # Small, module-consistent config: 1-channel 16x16 input, batch=2.
    params = build_discriminator_params(key_p, input_channels=1, dim=16,
                                        n_downsamplings=2)
    packed = pack_discriminator(params, (16, 16))
    x = jax.random.normal(key_x, (2, 1, 16, 16), jnp.float32)    # NCHW

    y = conv_discriminator_forward(x, packed)
    y = jax.block_until_ready(y)

    assert y.shape == (2, 1, 1, 1), y.shape

    y_ref = jax.block_until_ready(reference_forward(x, params))
    # bf16 matmul operands (f32 accumulate) -> loosened tolerance vs f32 reference.
    assert jnp.allclose(y, y_ref, atol=5e-2, rtol=5e-2), (
        "max abs err", float(jnp.max(jnp.abs(y - y_ref))))

    print("KERNEL_OK")
</pallas_src>

<mosaic_0001>
module attributes {stable_mosaic.version = 11 : i64} {
  func.func @kernel(%arg0: i32, %arg1: memref<2x256xf32, #tpu.memory_space<vmem>>, %arg2: memref<256x1024xbf16, #tpu.memory_space<vmem>>, %arg3: memref<1x1024xf32, #tpu.memory_space<vmem>>, %arg4: memref<1024x512xbf16, #tpu.memory_space<vmem>>, %arg5: memref<512x32xf32, #tpu.memory_space<vmem>>, %arg6: memref<32x512xf32, #tpu.memory_space<vmem>>, %arg7: memref<1x32xf32, #tpu.memory_space<vmem>>, %arg8: memref<1x32xf32, #tpu.memory_space<vmem>>, %arg9: memref<512x1xf32, #tpu.memory_space<vmem>>, %arg10: memref<1x1xf32, #tpu.memory_space<vmem>>, %arg11: memref<2x1xf32, #tpu.memory_space<vmem>>) attributes {dimension_semantics = [#tpu.dimension_semantics<arbitrary>], iteration_bounds = array<i64: 1>, scalar_prefetch = 0 : i64, scratch_operands = 0 : i64, tpu.core_type = #tpu.core_type<tc>, window_params = [{pipeline_mode = #tpu.pipeline_mode<synchronous>, transform_indices = @transform_0, window_bounds = array<i64: 2, 256>}, {pipeline_mode = #tpu.pipeline_mode<synchronous>, transform_indices = @transform_1, window_bounds = array<i64: 256, 1024>}, {pipeline_mode = #tpu.pipeline_mode<synchronous>, transform_indices = @transform_2, window_bounds = array<i64: 1, 1024>}, {pipeline_mode = #tpu.pipeline_mode<synchronous>, transform_indices = @transform_3, window_bounds = array<i64: 1024, 512>}, {pipeline_mode = #tpu.pipeline_mode<synchronous>, transform_indices = @transform_4, window_bounds = array<i64: 512, 32>}, {pipeline_mode = #tpu.pipeline_mode<synchronous>, transform_indices = @transform_5, window_bounds = array<i64: 32, 512>}, {pipeline_mode = #tpu.pipeline_mode<synchronous>, transform_indices = @transform_6, window_bounds = array<i64: 1, 32>}, {pipeline_mode = #tpu.pipeline_mode<synchronous>, transform_indices = @transform_7, window_bounds = array<i64: 1, 32>}, {pipeline_mode = #tpu.pipeline_mode<synchronous>, transform_indices = @transform_8, window_bounds = array<i64: 512, 1>}, {pipeline_mode = #tpu.pipeline_mode<synchronous>, transform_indices = @transform_9, window_bounds = array<i64: 1, 1>}, {pipeline_mode = #tpu.pipeline_mode<synchronous>, transform_indices = @transform_10, window_bounds = array<i64: 2, 1>}]} {
    %c0 = arith.constant 0 : index
    %c0_0 = arith.constant 0 : index
    %0 = vector.load %arg1[%c0, %c0_0] : memref<2x256xf32, #tpu.memory_space<vmem>>, vector<2x256xf32>
    %1 = arith.truncf %0 : vector<2x256xf32> to vector<2x256xbf16>
    %c0_1 = arith.constant 0 : index
    %c0_2 = arith.constant 0 : index
    %2 = vector.load %arg2[%c0_1, %c0_2] : memref<256x1024xbf16, #tpu.memory_space<vmem>>, vector<256x1024xbf16>
    %cst = arith.constant dense<0.000000e+00> : vector<2x1024xf32>
    %3 = tpu.matmul %1, %2, %cst {dimension_numbers = #tpu.dot_dimension_numbers<[1], [0], [0], [1], [0, 0, 1, 1], [], []>} : vector<2x256xbf16>, vector<256x1024xbf16>, vector<2x1024xf32> -> vector<2x1024xf32>
    %c0_3 = arith.constant 0 : index
    %c0_4 = arith.constant 0 : index
    %4 = vector.load %arg3[%c0_3, %c0_4] : memref<1x1024xf32, #tpu.memory_space<vmem>>, vector<1x1024xf32>
    %5 = vector.broadcast %4 : vector<1x1024xf32> to vector<2x1024xf32>
    %6 = arith.addf %3, %5 : vector<2x1024xf32>
    %cst_5 = arith.constant 0.000000e+00 : f32
    %7 = vector.broadcast %cst_5 : f32 to vector<2x1024xf32>
    %8 = arith.cmpf oge, %6, %7 : vector<2x1024xf32>
    %cst_6 = arith.constant 2.000000e-01 : f32
    %9 = vector.broadcast %cst_6 : f32 to vector<2x1024xf32>
    %10 = arith.mulf %9, %6 : vector<2x1024xf32>
    %11 = arith.select %8, %6, %10 : vector<2x1024xi1>, vector<2x1024xf32>
    %12 = arith.truncf %11 : vector<2x1024xf32> to vector<2x1024xbf16>
    %c0_7 = arith.constant 0 : index
    %c0_8 = arith.constant 0 : index
    %13 = vector.load %arg4[%c0_7, %c0_8] : memref<1024x512xbf16, #tpu.memory_space<vmem>>, vector<1024x512xbf16>
    %cst_9 = arith.constant dense<0.000000e+00> : vector<2x512xf32>
    %14 = tpu.matmul %12, %13, %cst_9 {dimension_numbers = #tpu.dot_dimension_numbers<[1], [0], [0], [1], [0, 0, 1, 1], [], []>} : vector<2x1024xbf16>, vector<1024x512xbf16>, vector<2x512xf32> -> vector<2x512xf32>
    %cst_10 = arith.constant dense<0.000000e+00> : vector<512xf32>
    %15 = vector.multi_reduction <add>, %14, %cst_10 [0] : vector<2x512xf32> to vector<512xf32>
    %16 = vector.shape_cast %15 : vector<512xf32> to vector<1x512xf32>
    %c0_11 = arith.constant 0 : index
    %c0_12 = arith.constant 0 : index
    %17 = vector.load %arg5[%c0_11, %c0_12] : memref<512x32xf32, #tpu.memory_space<vmem>>, vector<512x32xf32>
    %cst_13 = arith.constant dense<0.000000e+00> : vector<1x32xf32>
    %18 = tpu.matmul %16, %17, %cst_13 {dimension_numbers = #tpu.dot_dimension_numbers<[1], [0], [0], [1], [0, 0, 1, 1], [], []>} : vector<1x512xf32>, vector<512x32xf32>, vector<1x32xf32> -> vector<1x32xf32>
    %19 = arith.mulf %14, %14 : vector<2x512xf32>
    %cst_14 = arith.constant dense<0.000000e+00> : vector<512xf32>
    %20 = vector.multi_reduction <add>, %19, %cst_14 [0] : vector<2x512xf32> to vector<512xf32>
    %21 = vector.shape_cast %20 : vector<512xf32> to vector<1x512xf32>
    %c0_15 = arith.constant 0 : index
    %c0_16 = arith.constant 0 : index
    %22 = vector.load %arg5[%c0_15, %c0_16] : memref<512x32xf32, #tpu.memory_space<vmem>>, vector<512x32xf32>
    %cst_17 = arith.constant dense<0.000000e+00> : vector<1x32xf32>
    %23 = tpu.matmul %21, %22, %cst_17 {dimension_numbers = #tpu.dot_dimension_numbers<[1], [0], [0], [1], [0, 0, 1, 1], [], []>} : vector<1x512xf32>, vector<512x32xf32>, vector<1x32xf32> -> vector<1x32xf32>
    %cst_18 = arith.constant 3.200000e+01 : f32
    %24 = vector.broadcast %cst_18 : f32 to vector<1x32xf32>
    %25 = arith.divf %18, %24 : vector<1x32xf32>
    %cst_19 = arith.constant 3.200000e+01 : f32
    %26 = vector.broadcast %cst_19 : f32 to vector<1x32xf32>
    %27 = arith.divf %23, %26 : vector<1x32xf32>
    %28 = arith.mulf %25, %25 : vector<1x32xf32>
    %29 = arith.subf %27, %28 : vector<1x32xf32>
    %c0_20 = arith.constant 0 : index
    %c0_21 = arith.constant 0 : index
    %30 = vector.load %arg7[%c0_20, %c0_21] : memref<1x32xf32, #tpu.memory_space<vmem>>, vector<1x32xf32>
    %cst_22 = arith.constant 9.99999974E-6 : f32
    %31 = vector.broadcast %cst_22 : f32 to vector<1x32xf32>
    %32 = arith.addf %29, %31 : vector<1x32xf32>
    %33 = math.rsqrt %32 : vector<1x32xf32>
    %34 = arith.mulf %30, %33 : vector<1x32xf32>
    %c0_23 = arith.constant 0 : index
    %c0_24 = arith.constant 0 : index
    %35 = vector.load %arg8[%c0_23, %c0_24] : memref<1x32xf32, #tpu.memory_space<vmem>>, vector<1x32xf32>
    %36 = arith.mulf %25, %34 : vector<1x32xf32>
    %37 = arith.subf %35, %36 : vector<1x32xf32>
    %c0_25 = arith.constant 0 : index
    %c0_26 = arith.constant 0 : index
    %38 = vector.load %arg6[%c0_25, %c0_26] : memref<32x512xf32, #tpu.memory_space<vmem>>, vector<32x512xf32>
    %cst_27 = arith.constant dense<0.000000e+00> : vector<1x512xf32>
    %39 = tpu.matmul %34, %38, %cst_27 {dimension_numbers = #tpu.dot_dimension_numbers<[1], [0], [0], [1], [0, 0, 1, 1], [], []>} : vector<1x32xf32>, vector<32x512xf32>, vector<1x512xf32> -> vector<1x512xf32>
    %c0_28 = arith.constant 0 : index
    %c0_29 = arith.constant 0 : index
    %40 = vector.load %arg6[%c0_28, %c0_29] : memref<32x512xf32, #tpu.memory_space<vmem>>, vector<32x512xf32>
    %cst_30 = arith.constant dense<0.000000e+00> : vector<1x512xf32>
    %41 = tpu.matmul %37, %40, %cst_30 {dimension_numbers = #tpu.dot_dimension_numbers<[1], [0], [0], [1], [0, 0, 1, 1], [], []>} : vector<1x32xf32>, vector<32x512xf32>, vector<1x512xf32> -> vector<1x512xf32>
    %42 = vector.broadcast %39 : vector<1x512xf32> to vector<2x512xf32>
    %43 = arith.mulf %14, %42 : vector<2x512xf32>
    %44 = vector.broadcast %41 : vector<1x512xf32> to vector<2x512xf32>
    %45 = arith.addf %43, %44 : vector<2x512xf32>
    %cst_31 = arith.constant 0.000000e+00 : f32
    %46 = vector.broadcast %cst_31 : f32 to vector<2x512xf32>
    %47 = arith.cmpf oge, %45, %46 : vector<2x512xf32>
    %cst_32 = arith.constant 2.000000e-01 : f32
    %48 = vector.broadcast %cst_32 : f32 to vector<2x512xf32>
    %49 = arith.mulf %48, %45 : vector<2x512xf32>
    %50 = arith.select %47, %45, %49 : vector<2x512xi1>, vector<2x512xf32>
    %c0_33 = arith.constant 0 : index
    %c0_34 = arith.constant 0 : index
    %51 = vector.load %arg9[%c0_33, %c0_34] : memref<512x1xf32, #tpu.memory_space<vmem>>, vector<512x1xf32>
    %cst_35 = arith.constant dense<0.000000e+00> : vector<2x1xf32>
    %52 = tpu.matmul %50, %51, %cst_35 {dimension_numbers = #tpu.dot_dimension_numbers<[1], [0], [0], [1], [0, 0, 1, 1], [], []>} : vector<2x512xf32>, vector<512x1xf32>, vector<2x1xf32> -> vector<2x1xf32>
    %c0_36 = arith.constant 0 : index
    %c0_37 = arith.constant 0 : index
    %53 = vector.load %arg10[%c0_36, %c0_37] : memref<1x1xf32, #tpu.memory_space<vmem>>, vector<1x1xf32>
    %54 = vector.broadcast %53 : vector<1x1xf32> to vector<2x1xf32>
    %55 = arith.addf %52, %54 : vector<2x1xf32>
    %c0_38 = arith.constant 0 : index
    %c0_39 = arith.constant 0 : index
    %56 = vector.load %arg11[%c0_38, %c0_39] : memref<2x1xf32, #tpu.memory_space<vmem>>, vector<2x1xf32>
    tpu.vector_store %arg11[%c0_38, %c0_39], %55 {strides = array<i32>} : memref<2x1xf32, #tpu.memory_space<vmem>>, vector<2x1xf32>,
    return
  }
  func.func @transform_0(%arg0: i32) -> (i32, i32) {
    %c0_i32 = arith.constant 0 : i32
    %c0_i32_0 = arith.constant 0 : i32
    %c0_i32_1 = arith.constant 0 : i32
    return %c0_i32, %c0_i32_0 : i32, i32
  }
  func.func @transform_1(%arg0: i32) -> (i32, i32) {
    %c0_i32 = arith.constant 0 : i32
    %c0_i32_0 = arith.constant 0 : i32
    %c0_i32_1 = arith.constant 0 : i32
    return %c0_i32, %c0_i32_0 : i32, i32
  }
  func.func @transform_2(%arg0: i32) -> (i32, i32) {
    %c0_i32 = arith.constant 0 : i32
    %c0_i32_0 = arith.constant 0 : i32
    %c0_i32_1 = arith.constant 0 : i32
    return %c0_i32, %c0_i32_0 : i32, i32
  }
  func.func @transform_3(%arg0: i32) -> (i32, i32) {
    %c0_i32 = arith.constant 0 : i32
    %c0_i32_0 = arith.constant 0 : i32
    %c0_i32_1 = arith.constant 0 : i32
    return %c0_i32, %c0_i32_0 : i32, i32
  }
  func.func @transform_4(%arg0: i32) -> (i32, i32) {
    %c0_i32 = arith.constant 0 : i32
    %c0_i32_0 = arith.constant 0 : i32
    %c0_i32_1 = arith.constant 0 : i32
    return %c0_i32, %c0_i32_0 : i32, i32
  }
  func.func @transform_5(%arg0: i32) -> (i32, i32) {
    %c0_i32 = arith.constant 0 : i32
    %c0_i32_0 = arith.constant 0 : i32
    %c0_i32_1 = arith.constant 0 : i32
    return %c0_i32, %c0_i32_0 : i32, i32
  }
  func.func @transform_6(%arg0: i32) -> (i32, i32) {
    %c0_i32 = arith.constant 0 : i32
    %c0_i32_0 = arith.constant 0 : i32
    %c0_i32_1 = arith.constant 0 : i32
    return %c0_i32, %c0_i32_0 : i32, i32
  }
  func.func @transform_7(%arg0: i32) -> (i32, i32) {
    %c0_i32 = arith.constant 0 : i32
    %c0_i32_0 = arith.constant 0 : i32
    %c0_i32_1 = arith.constant 0 : i32
    return %c0_i32, %c0_i32_0 : i32, i32
  }
  func.func @transform_8(%arg0: i32) -> (i32, i32) {
    %c0_i32 = arith.constant 0 : i32
    %c0_i32_0 = arith.constant 0 : i32
    %c0_i32_1 = arith.constant 0 : i32
    return %c0_i32, %c0_i32_0 : i32, i32
  }
  func.func @transform_9(%arg0: i32) -> (i32, i32) {
    %c0_i32 = arith.constant 0 : i32
    %c0_i32_0 = arith.constant 0 : i32
    %c0_i32_1 = arith.constant 0 : i32
    return %c0_i32, %c0_i32_0 : i32, i32
  }
  func.func @transform_10(%arg0: i32) -> (i32, i32) {
    %c0_i32 = arith.constant 0 : i32
    %c0_i32_0 = arith.constant 0 : i32
    %c0_i32_1 = arith.constant 0 : i32
    return %c0_i32, %c0_i32_0 : i32, i32
  }
}

</mosaic_0001>

<llo_original>
// kernel: tpu_custom_call.1
$region0: #{tpu_custom_call.1}
  #allocation0 [shape = 'u32[]', space=smem, size = 0x4, offset = 0x4, fixed_abs, tag = 'smem constant byte address 0x4 - core index']
  #allocation1 [shape = 'u32[144,128]{1,0:T(1,128)}', space=vmem, size = 0x12000, scoped, tag = 'internal scratch']
  #allocation2 [shape = 'f32[1,1]{1,0:T(1,128)S(1)}', space=vmem, size = 0x200, scoped, tag = 'scoped memory for tpu_custom_call.1']
  %s0 = inlined_call_operand.hbm [shape: f32[2,256], index: 0, kind: input, shape index: {}]
  %s1 = inlined_call_operand.vmem [shape: bf16[256,1024], index: 1, kind: input, shape index: {}]
  %s2 = inlined_call_operand.vmem [shape: f32[1,1024], index: 2, kind: input, shape index: {}]
  %s3 = inlined_call_operand.hbm [shape: bf16[1024,512], index: 3, kind: input, shape index: {}]
  %s4 = inlined_call_operand.vmem [shape: f32[512,32], index: 4, kind: input, shape index: {}]
  %s5 = inlined_call_operand.vmem [shape: f32[32,512], index: 5, kind: input, shape index: {}]
  %s6 = inlined_call_operand.vmem [shape: f32[1,32], index: 6, kind: input, shape index: {}]
  %s7 = inlined_call_operand.vmem [shape: f32[1,32], index: 7, kind: input, shape index: {}]
  %s8 = inlined_call_operand.vmem [shape: f32[512,1], index: 8, kind: input, shape index: {}]
  %s9 = inlined_call_operand.<no memory space> [shape: f32[1,1], index: 9, kind: input, shape index: {}]
  %s10 = inlined_call_operand.vmem [shape: f32[2,1], index: 10, kind: output, shape index: {}]
  %s11 = sld [smem:[#allocation0]]
  $region58: #{tpu_custom_call.1} parent=0
    _
  %s13 = ssub.s32 1, %s11
  %s14 = scalar_select 0, %s13, %s11
  %v15 = vstv %s9
  %16 = vst [vmem:[#allocation2] sm:$0x1] %v15
  $region1: #{tpu_custom_call.1} parent=0
    #allocation3 [shape = 'u8[2048]{0}', space=vmem, size = 0x800, scoped, tag = 'input window, operand 0, single buffered']
    #allocation4 [shape = 's32[1]{0}', space=sflag, size = 0x4, scoped, tag = 'scoped memory for tpu_custom_call.1']
    #allocation5 [shape = 'u8[1048576]{0}', space=vmem, size = 0x100000, scoped, tag = 'input window, operand 3, single buffered']
    #allocation6 [shape = 's32[1]{0}', space=sflag, size = 0x4, scoped, tag = 'scoped memory for tpu_custom_call.1']
    %17 = vsyncpa [#allocation4], 0
    %18 = vsyncpa [#allocation6], 0
    // Predicated region
    $region2: #{tpu_custom_call.1} parent=1 // pred_check
      _
    $region3: #{tpu_custom_call.1} parent=1 // pred_check_branch
      %20 = sbr.rel (0) target = $region5
    $region4: #{tpu_custom_call.1} parent=1 // pred_region
      %s22 = ssub.s32 64, 64
      %23 = vsyncadd [#allocation4], %s22
      %s25 = sshll.u32 [#allocation3], 4
      %s26 = int_to_ptr.vmem [resolvable:$true] %s25
      %28 = dma.hbm_to_vmem [thread:$0]  %s0, 64, %s26, [#allocation4]
    $region5: #{tpu_custom_call.1} parent=1 // pred_fallthru
      _
    // Predicated region
    $region6: #{tpu_custom_call.1} parent=1 // pred_check
      _
    $region7: #{tpu_custom_call.1} parent=1 // pred_check_branch
      %30 = sbr.rel (0) target = $region9
    $region8: #{tpu_custom_call.1} parent=1 // pred_region
      _
    $region9: #{tpu_custom_call.1} parent=1 // pred_fallthru
      _
    // Predicated region
    $region10: #{tpu_custom_call.1} parent=1 // pred_check
      _
    $region11: #{tpu_custom_call.1} parent=1 // pred_check_branch
      %32 = sbr.rel (0) target = $region13
    $region12: #{tpu_custom_call.1} parent=1 // pred_region
      _
    $region13: #{tpu_custom_call.1} parent=1 // pred_fallthru
      _
    // Predicated region
    $region14: #{tpu_custom_call.1} parent=1 // pred_check
      _
    $region15: #{tpu_custom_call.1} parent=1 // pred_check_branch
      %34 = sbr.rel (0) target = $region17
    $region16: #{tpu_custom_call.1} parent=1 // pred_region
      %s36 = ssub.s32 32768, 32768
      %37 = vsyncadd [#allocation6], %s36
      %s38 = sshll.u32 [#allocation5], 4
      %s39 = int_to_ptr.vmem [resolvable:$true] %s38
      %44 = dma.hbm_to_vmem [thread:$0]  %s3, 32768, %s39, [#allocation6], 256, 256, 16
    $region17: #{tpu_custom_call.1} parent=1 // pred_fallthru
      _
    // Predicated region
    $region18: #{tpu_custom_call.1} parent=1 // pred_check
      _
    $region19: #{tpu_custom_call.1} parent=1 // pred_check_branch
      %46 = sbr.rel (0) target = $region21
    $region20: #{tpu_custom_call.1} parent=1 // pred_region
      _
    $region21: #{tpu_custom_call.1} parent=1 // pred_fallthru
      _
    // Predicated region
    $region22: #{tpu_custom_call.1} parent=1 // pred_check
      _
    $region23: #{tpu_custom_call.1} parent=1 // pred_check_branch
      %48 = sbr.rel (0) target = $region25
    $region24: #{tpu_custom_call.1} parent=1 // pred_region
      _
    $region25: #{tpu_custom_call.1} parent=1 // pred_fallthru
      _
    // Predicated region
    $region26: #{tpu_custom_call.1} parent=1 // pred_check
      _
    $region27: #{tpu_custom_call.1} parent=1 // pred_check_branch
      %50 = sbr.rel (0) target = $region29
    $region28: #{tpu_custom_call.1} parent=1 // pred_region
      _
    $region29: #{tpu_custom_call.1} parent=1 // pred_fallthru
      _
    // Predicated region
    $region30: #{tpu_custom_call.1} parent=1 // pred_check
      _
    $region31: #{tpu_custom_call.1} parent=1 // pred_check_branch
      %52 = sbr.rel (0) target = $region33
    $region32: #{tpu_custom_call.1} parent=1 // pred_region
      _
    $region33: #{tpu_custom_call.1} parent=1 // pred_fallthru
      _
    // Predicated region
    $region34: #{tpu_custom_call.1} parent=1 // pred_check
      _
    $region35: #{tpu_custom_call.1} parent=1 // pred_check_branch
      %54 = sbr.rel (0) target = $region37
    $region36: #{tpu_custom_call.1} parent=1 // pred_region
      _
    $region37: #{tpu_custom_call.1} parent=1 // pred_fallthru
      _
    // Predicated region
    $region38: #{tpu_custom_call.1} parent=1 // pred_check
      _
    $region39: #{tpu_custom_call.1} parent=1 // pred_check_branch
      %56 = sbr.rel (0) target = $region41
    $region40: #{tpu_custom_call.1} parent=1 // pred_region
      _
    $region41: #{tpu_custom_call.1} parent=1 // pred_fallthru
      _
    // Predicated region
    $region42: #{tpu_custom_call.1} parent=1 // pred_check
      _
    $region43: #{tpu_custom_call.1} parent=1 // pred_check_branch
      %58 = sbr.rel (0) target = $region45
    $region44: #{tpu_custom_call.1} parent=1 // pred_region
      %59 = dma.done [#allocation4], 64
    $region45: #{tpu_custom_call.1} parent=1 // pred_fallthru
      _
    // Predicated region
    $region46: #{tpu_custom_call.1} parent=1 // pred_check
      _
    $region47: #{tpu_custom_call.1} parent=1 // pred_check_branch
      %61 = sbr.rel (0) target = $region49
    $region48: #{tpu_custom_call.1} parent=1 // pred_region
      %62 = dma.done [#allocation6], 32768
    $region49: #{tpu_custom_call.1} parent=1 // pred_fallthru
      _
    %v63 = vld [vmem:[#allocation3] sm:$0xf]
    %v66 = vunpack.c.l.s4 1983009808
    %v67 = vunpack.c.0.s8 %v66
    %v68 = vlaneseq
    %v69 = vshrl.u32 %v68, 7
    %v70 = vsub.s32 %v67, %v69
    %v71 = vrot.slane %v63, %v70
    %v72 = vcombine.high %v71, %v71
    %v75 = vpack.c.bf16 %v71, %v71
    %v76 = vpack.c.bf16 %v72, %v72
    %v77 = vld [vmem:[%s1] sm:$0xff]
    %v78 = vld [vmem:[%s1 + $0x8] sm:$0xff]
    %v79 = vld [vmem:[%s1 + $0x10] sm:$0xff]
    %v80 = vld [vmem:[%s1 + $0x18] sm:$0xff]
    %v81 = vld [vmem:[%s1 + $0x20] sm:$0xff]
    %v82 = vld [vmem:[%s1 + $0x28] sm:$0xff]
    %v83 = vld [vmem:[%s1 + $0x30] sm:$0xff]
    %v84 = vld [vmem:[%s1 + $0x38] sm:$0xff]
    %v85 = vld [vmem:[%s1 + $0x40] sm:$0xff]
    %v86 = vld [vmem:[%s1 + $0x48] sm:$0xff]
    %v87 = vld [vmem:[%s1 + $0x50] sm:$0xff]
    %v88 = vld [vmem:[%s1 + $0x58] sm:$0xff]
    %v89 = vld [vmem:[%s1 + $0x60] sm:$0xff]
    %v90 = vld [vmem:[%s1 + $0x68] sm:$0xff]
    %v91 = vld [vmem:[%s1 + $0x70] sm:$0xff]
    %v92 = vld [vmem:[%s1 + $0x78] sm:$0xff]
    %v93 = vld [vmem:[%s1 + $0x80] sm:$0xff]
    %v94 = vld [vmem:[%s1 + $0x88] sm:$0xff]
    %v95 = vld [vmem:[%s1 + $0x90] sm:$0xff]
    %v96 = vld [vmem:[%s1 + $0x98] sm:$0xff]
    %v97 = vld [vmem:[%s1 + $0xa0] sm:$0xff]
    %v98 = vld [vmem:[%s1 + $0xa8] sm:$0xff]
    %v99 = vld [vmem:[%s1 + $0xb0] sm:$0xff]
    %v100 = vld [vmem:[%s1 + $0xb8] sm:$0xff]
    %v101 = vld [vmem:[%s1 + $0xc0] sm:$0xff]
    %v102 = vld [vmem:[%s1 + $0xc8] sm:$0xff]
    %v103 = vld [vmem:[%s1 + $0xd0] sm:$0xff]
    %v104 = vld [vmem:[%s1 + $0xd8] sm:$0xff]
    %v105 = vld [vmem:[%s1 + $0xe0] sm:$0xff]
    %v106 = vld [vmem:[%s1 + $0xe8] sm:$0xff]
    %v107 = vld [vmem:[%s1 + $0xf0] sm:$0xff]
    %v108 = vld [vmem:[%s1 + $0xf8] sm:$0xff]
    %v109 = vld [vmem:[%s1 + $0x100] sm:$0xff]
    %v110 = vld [vmem:[%s1 + $0x108] sm:$0xff]
    %v111 = vld [vmem:[%s1 + $0x110] sm:$0xff]
    %v112 = vld [vmem:[%s1 + $0x118] sm:$0xff]
    %v113 = vld [vmem:[%s1 + $0x120] sm:$0xff]
    %v114 = vld [vmem:[%s1 + $0x128] sm:$0xff]
    %v115 = vld [vmem:[%s1 + $0x130] sm:$0xff]
    %v116 = vld [vmem:[%s1 + $0x138] sm:$0xff]
    %v117 = vld [vmem:[%s1 + $0x140] sm:$0xff]
    %v118 = vld [vmem:[%s1 + $0x148] sm:$0xff]
    %v119 = vld [vmem:[%s1 + $0x150] sm:$0xff]
    %v120 = vld [vmem:[%s1 + $0x158] sm:$0xff]
    %v121 = vld [vmem:[%s1 + $0x160] sm:$0xff]
    %v122 = vld [vmem:[%s1 + $0x168] sm:$0xff]
    %v123 = vld [vmem:[%s1 + $0x170] sm:$0xff]
    %v124 = vld [vmem:[%s1 + $0x178] sm:$0xff]
    %v125 = vld [vmem:[%s1 + $0x180] sm:$0xff]
    %v126 = vld [vmem:[%s1 + $0x188] sm:$0xff]
    %v127 = vld [vmem:[%s1 + $0x190] sm:$0xff]
    %v128 = vld [vmem:[%s1 + $0x198] sm:$0xff]
    %v129 = vld [vmem:[%s1 + $0x1a0] sm:$0xff]
    %v130 = vld [vmem:[%s1 + $0x1a8] sm:$0xff]
    %v131 = vld [vmem:[%s1 + $0x1b0] sm:$0xff]
    %v132 = vld [vmem:[%s1 + $0x1b8] sm:$0xff]
    %v133 = vld [vmem:[%s1 + $0x1c0] sm:$0xff]
    %v134 = vld [vmem:[%s1 + $0x1c8] sm:$0xff]
    %v135 = vld [vmem:[%s1 + $0x1d0] sm:$0xff]
    %v136 = vld [vmem:[%s1 + $0x1d8] sm:$0xff]
    %v137 = vld [vmem:[%s1 + $0x1e0] sm:$0xff]
    %v138 = vld [vmem:[%s1 + $0x1e8] sm:$0xff]
    %v139 = vld [vmem:[%s1 + $0x1f0] sm:$0xff]
    %v140 = vld [vmem:[%s1 + $0x1f8] sm:$0xff]
    %v141 = vld [vmem:[%s1 + $0x200] sm:$0xff]
    %v142 = vld [vmem:[%s1 + $0x208] sm:$0xff]
    %v143 = vld [vmem:[%s1 + $0x210] sm:$0xff]
    %v144 = vld [vmem:[%s1 + $0x218] sm:$0xff]
    %v145 = vld [vmem:[%s1 + $0x220] sm:$0xff]
    %v146 = vld [vmem:[%s1 + $0x228] sm:$0xff]
    %v147 = vld [vmem:[%s1 + $0x230] sm:$0xff]
    %v148 = vld [vmem:[%s1 + $0x238] sm:$0xff]
    %v149 = vld [vmem:[%s1 + $0x240] sm:$0xff]
    %v150 = vld [vmem:[%s1 + $0x248] sm:$0xff]
    %v151 = vld [vmem:[%s1 + $0x250] sm:$0xff]
    %v152 = vld [vmem:[%s1 + $0x258] sm:$0xff]
    %v153 = vld [vmem:[%s1 + $0x260] sm:$0xff]
    %v154 = vld [vmem:[%s1 + $0x268] sm:$0xff]
    %v155 = vld [vmem:[%s1 + $0x270] sm:$0xff]
    %v156 = vld [vmem:[%s1 + $0x278] sm:$0xff]
    %v157 = vld [vmem:[%s1 + $0x280] sm:$0xff]
    %v158 = vld [vmem:[%s1 + $0x288] sm:$0xff]
    %v159 = vld [vmem:[%s1 + $0x290] sm:$0xff]
    %v160 = vld [vmem:[%s1 + $0x298] sm:$0xff]
    %v161 = vld [vmem:[%s1 + $0x2a0] sm:$0xff]
    %v162 = vld [vmem:[%s1 + $0x2a8] sm:$0xff]
    %v163 = vld [vmem:[%s1 + $0x2b0] sm:$0xff]
    %v164 = vld [vmem:[%s1 + $0x2b8] sm:$0xff]
    %v165 = vld [vmem:[%s1 + $0x2c0] sm:$0xff]
    %v166 = vld [vmem:[%s1 + $0x2c8] sm:$0xff]
    %v167 = vld [vmem:[%s1 + $0x2d0] sm:$0xff]
    %v168 = vld [vmem:[%s1 + $0x2d8] sm:$0xff]
    %v169 = vld [vmem:[%s1 + $0x2e0] sm:$0xff]
    %v170 = vld [vmem:[%s1 + $0x2e8] sm:$0xff]
    %v171 = vld [vmem:[%s1 + $0x2f0] sm:$0xff]
    %v172 = vld [vmem:[%s1 + $0x2f8] sm:$0xff]
    %v173 = vld [vmem:[%s1 + $0x300] sm:$0xff]
    %v174 = vld [vmem:[%s1 + $0x308] sm:$0xff]
    %v175 = vld [vmem:[%s1 + $0x310] sm:$0xff]
    %v176 = vld [vmem:[%s1 + $0x318] sm:$0xff]
    %v177 = vld [vmem:[%s1 + $0x320] sm:$0xff]
    %v178 = vld [vmem:[%s1 + $0x328] sm:$0xff]
    %v179 = vld [vmem:[%s1 + $0x330] sm:$0xff]
    %v180 = vld [vmem:[%s1 + $0x338] sm:$0xff]
    %v181 = vld [vmem:[%s1 + $0x340] sm:$0xff]
    %v182 = vld [vmem:[%s1 + $0x348] sm:$0xff]
    %v183 = vld [vmem:[%s1 + $0x350] sm:$0xff]
    %v184 = vld [vmem:[%s1 + $0x358] sm:$0xff]
    %v185 = vld [vmem:[%s1 + $0x360] sm:$0xff]
    %v186 = vld [vmem:[%s1 + $0x368] sm:$0xff]
    %v187 = vld [vmem:[%s1 + $0x370] sm:$0xff]
    %v188 = vld [vmem:[%s1 + $0x378] sm:$0xff]
    %v189 = vld [vmem:[%s1 + $0x380] sm:$0xff]
    %v190 = vld [vmem:[%s1 + $0x388] sm:$0xff]
    %v191 = vld [vmem:[%s1 + $0x390] sm:$0xff]
    %v192 = vld [vmem:[%s1 + $0x398] sm:$0xff]
    %v193 = vld [vmem:[%s1 + $0x3a0] sm:$0xff]
    %v194 = vld [vmem:[%s1 + $0x3a8] sm:$0xff]
    %v195 = vld [vmem:[%s1 + $0x3b0] sm:$0xff]
    %v196 = vld [vmem:[%s1 + $0x3b8] sm:$0xff]
    %v197 = vld [vmem:[%s1 + $0x3c0] sm:$0xff]
    %v198 = vld [vmem:[%s1 + $0x3c8] sm:$0xff]
    %v199 = vld [vmem:[%s1 + $0x3d0] sm:$0xff]
    %v200 = vld [vmem:[%s1 + $0x3d8] sm:$0xff]
    %v201 = vld [vmem:[%s1 + $0x3e0] sm:$0xff]
    %v202 = vld [vmem:[%s1 + $0x3e8] sm:$0xff]
    %v203 = vld [vmem:[%s1 + $0x3f0] sm:$0xff]
    %v204 = vld [vmem:[%s1 + $0x3f8] sm:$0xff]
    %v205 = vld [vmem:[%s2] sm:$0xff]
    %v207 = vlaneseq
    %v208 = vshrl.u32 %v207, 7
    %v209 = vsub.s32 0, %v208
    %v210 = vrot.slane %v205, %v209
    %v211 = vlaneseq
    %v212 = vshrl.u32 %v211, 7
    %v213 = vsub.s32 1, %v212
    %v214 = vrot.slane %v205, %v213
    %v215 = vlaneseq
    %v216 = vshrl.u32 %v215, 7
    %v217 = vsub.s32 2, %v216
    %v218 = vrot.slane %v205, %v217
    %v219 = vlaneseq
    %v220 = vshrl.u32 %v219, 7
    %v221 = vsub.s32 3, %v220
    %v222 = vrot.slane %v205, %v221
    %v223 = vlaneseq
    %v224 = vshrl.u32 %v223, 7
    %v225 = vsub.s32 4, %v224
    %v226 = vrot.slane %v205, %v225
    %v227 = vlaneseq
    %v228 = vshrl.u32 %v227, 7
    %v229 = vsub.s32 5, %v228
    %v230 = vrot.slane %v205, %v229
    %v231 = vlaneseq
    %v232 = vshrl.u32 %v231, 7
    %v233 = vsub.s32 6, %v232
    %v234 = vrot.slane %v205, %v233
    %v235 = vlaneseq
    %v236 = vshrl.u32 %v235, 7
    %v237 = vsub.s32 7, %v236
    %v238 = vrot.slane %v205, %v237
    %v375 = vunpack.c.l.b16 %v77
    %v376 = vunpack.c.h.b16 %v77
    %v377 = vunpack.c.l.b16 %v78
    %v378 = vunpack.c.h.b16 %v78
    %v379 = vunpack.c.l.b16 %v79
    %v380 = vunpack.c.h.b16 %v79
    %v381 = vunpack.c.l.b16 %v80
    %v382 = vunpack.c.h.b16 %v80
    %v383 = vunpack.c.l.b16 %v81
    %v384 = vunpack.c.h.b16 %v81
    %v385 = vunpack.c.l.b16 %v82
    %v386 = vunpack.c.h.b16 %v82
    %v387 = vunpack.c.l.b16 %v83
    %v388 = vunpack.c.h.b16 %v83
    %v389 = vunpack.c.l.b16 %v84
    %v390 = vunpack.c.h.b16 %v84
    %v391 = vunpack.c.l.b16 %v85
    %v392 = vunpack.c.h.b16 %v85
    %v393 = vunpack.c.l.b16 %v86
    %v394 = vunpack.c.h.b16 %v86
    %v395 = vunpack.c.l.b16 %v87
    %v396 = vunpack.c.h.b16 %v87
    %v397 = vunpack.c.l.b16 %v88
    %v398 = vunpack.c.h.b16 %v88
    %v399 = vunpack.c.l.b16 %v89
    %v400 = vunpack.c.h.b16 %v89
    %v401 = vunpack.c.l.b16 %v90
    %v402 = vunpack.c.h.b16 %v90
    %v403 = vunpack.c.l.b16 %v91
    %v404 = vunpack.c.h.b16 %v91
    %v405 = vunpack.c.l.b16 %v92
    %v406 = vunpack.c.h.b16 %v92
    %v407 = vunpack.c.l.b16 %v93
    %v408 = vunpack.c.h.b16 %v93
    %v409 = vunpack.c.l.b16 %v94
    %v410 = vunpack.c.h.b16 %v94
    %v411 = vunpack.c.l.b16 %v95
    %v412 = vunpack.c.h.b16 %v95
    %v413 = vunpack.c.l.b16 %v96
    %v414 = vunpack.c.h.b16 %v96
    %v415 = vunpack.c.l.b16 %v97
    %v416 = vunpack.c.h.b16 %v97
    %v417 = vunpack.c.l.b16 %v98
    %v418 = vunpack.c.h.b16 %v98
    %v419 = vunpack.c.l.b16 %v99
    %v420 = vunpack.c.h.b16 %v99
    %v421 = vunpack.c.l.b16 %v100
    %v422 = vunpack.c.h.b16 %v100
    %v423 = vunpack.c.l.b16 %v101
    %v424 = vunpack.c.h.b16 %v101
    %v425 = vunpack.c.l.b16 %v102
    %v426 = vunpack.c.h.b16 %v102
    %v427 = vunpack.c.l.b16 %v103
    %v428 = vunpack.c.h.b16 %v103
    %v429 = vunpack.c.l.b16 %v104
    %v430 = vunpack.c.h.b16 %v104
    %v431 = vunpack.c.l.b16 %v105
    %v432 = vunpack.c.h.b16 %v105
    %v433 = vunpack.c.l.b16 %v106
    %v434 = vunpack.c.h.b16 %v106
    %v435 = vunpack.c.l.b16 %v107
    %v436 = vunpack.c.h.b16 %v107
    %v437 = vunpack.c.l.b16 %v108
    %v438 = vunpack.c.h.b16 %v108
    %v439 = vunpack.c.l.b16 %v109
    %v440 = vunpack.c.h.b16 %v109
    %v441 = vunpack.c.l.b16 %v110
    %v442 = vunpack.c.h.b16 %v110
    %v443 = vunpack.c.l.b16 %v111
    %v444 = vunpack.c.h.b16 %v111
    %v445 = vunpack.c.l.b16 %v112
    %v446 = vunpack.c.h.b16 %v112
    %v447 = vunpack.c.l.b16 %v113
    %v448 = vunpack.c.h.b16 %v113
    %v449 = vunpack.c.l.b16 %v114
    %v450 = vunpack.c.h.b16 %v114
    %v451 = vunpack.c.l.b16 %v115
    %v452 = vunpack.c.h.b16 %v115
    %v453 = vunpack.c.l.b16 %v116
    %v454 = vunpack.c.h.b16 %v116
    %v455 = vunpack.c.l.b16 %v117
    %v456 = vunpack.c.h.b16 %v117
    %v457 = vunpack.c.l.b16 %v118
    %v458 = vunpack.c.h.b16 %v118
    %v459 = vunpack.c.l.b16 %v119
    %v460 = vunpack.c.h.b16 %v119
    %v461 = vunpack.c.l.b16 %v120
    %v462 = vunpack.c.h.b16 %v120
    %v463 = vunpack.c.l.b16 %v121
    %v464 = vunpack.c.h.b16 %v121
    %v465 = vunpack.c.l.b16 %v122
    %v466 = vunpack.c.h.b16 %v122
    %v467 = vunpack.c.l.b16 %v123
    %v468 = vunpack.c.h.b16 %v123
    %v469 = vunpack.c.l.b16 %v124
    %v470 = vunpack.c.h.b16 %v124
    %v471 = vunpack.c.l.b16 %v125
    %v472 = vunpack.c.h.b16 %v125
    %v473 = vunpack.c.l.b16 %v126
    %v474 = vunpack.c.h.b16 %v126
    %v475 = vunpack.c.l.b16 %v127
    %v476 = vunpack.c.h.b16 %v127
    %v477 = vunpack.c.l.b16 %v128
    %v478 = vunpack.c.h.b16 %v128
    %v479 = vunpack.c.l.b16 %v129
    %v480 = vunpack.c.h.b16 %v129
    %v481 = vunpack.c.l.b16 %v130
    %v482 = vunpack.c.h.b16 %v130
    %v483 = vunpack.c.l.b16 %v131
    %v484 = vunpack.c.h.b16 %v131
    %v485 = vunpack.c.l.b16 %v132
    %v486 = vunpack.c.h.b16 %v132
    %v487 = vunpack.c.l.b16 %v133
    %v488 = vunpack.c.h.b16 %v133
    %v489 = vunpack.c.l.b16 %v134
    %v490 = vunpack.c.h.b16 %v134
    %v491 = vunpack.c.l.b16 %v135
    %v492 = vunpack.c.h.b16 %v135
    %v493 = vunpack.c.l.b16 %v136
    %v494 = vunpack.c.h.b16 %v136
    %v495 = vunpack.c.l.b16 %v137
    %v496 = vunpack.c.h.b16 %v137
    %v497 = vunpack.c.l.b16 %v138
    %v498 = vunpack.c.h.b16 %v138
    %v499 = vunpack.c.l.b16 %v139
    %v500 = vunpack.c.h.b16 %v139
    %v501 = vunpack.c.l.b16 %v140
    %v502 = vunpack.c.h.b16 %v140
    %v503 = vunpack.c.l.b16 %v141
    %v504 = vunpack.c.h.b16 %v141
    %v505 = vunpack.c.l.b16 %v142
    %v506 = vunpack.c.h.b16 %v142
    %v507 = vunpack.c.l.b16 %v143
    %v508 = vunpack.c.h.b16 %v143
    %v509 = vunpack.c.l.b16 %v144
    %v510 = vunpack.c.h.b16 %v144
    %v511 = vunpack.c.l.b16 %v145
    %v512 = vunpack.c.h.b16 %v145
    %v513 = vunpack.c.l.b16 %v146
    %v514 = vunpack.c.h.b16 %v146
    %v515 = vunpack.c.l.b16 %v147
    %v516 = vunpack.c.h.b16 %v147
    %v517 = vunpack.c.l.b16 %v148
    %v518 = vunpack.c.h.b16 %v148
    %v519 = vunpack.c.l.b16 %v149
    %v520 = vunpack.c.h.b16 %v149
    %v521 = vunpack.c.l.b16 %v150
    %v522 = vunpack.c.h.b16 %v150
    %v523 = vunpack.c.l.b16 %v151
    %v524 = vunpack.c.h.b16 %v151
    %v525 = vunpack.c.l.b16 %v152
    %v526 = vunpack.c.h.b16 %v152
    %v527 = vunpack.c.l.b16 %v153
    %v528 = vunpack.c.h.b16 %v153
    %v529 = vunpack.c.l.b16 %v154
    %v530 = vunpack.c.h.b16 %v154
    %v531 = vunpack.c.l.b16 %v155
    %v532 = vunpack.c.h.b16 %v155
    %v533 = vunpack.c.l.b16 %v156
    %v534 = vunpack.c.h.b16 %v156
    %v535 = vunpack.c.l.b16 %v157
    %v536 = vunpack.c.h.b16 %v157
    %v537 = vunpack.c.l.b16 %v158
    %v538 = vunpack.c.h.b16 %v158
    %v539 = vunpack.c.l.b16 %v159
    %v540 = vunpack.c.h.b16 %v159
    %v541 = vunpack.c.l.b16 %v160
    %v542 = vunpack.c.h.b16 %v160
    %v543 = vunpack.c.l.b16 %v161
    %v544 = vunpack.c.h.b16 %v161
    %v545 = vunpack.c.l.b16 %v162
    %v546 = vunpack.c.h.b16 %v162
    %v547 = vunpack.c.l.b16 %v163
    %v548 = vunpack.c.h.b16 %v163
    %v549 = vunpack.c.l.b16 %v164
    %v550 = vunpack.c.h.b16 %v164
    %v551 = vunpack.c.l.b16 %v165
    %v552 = vunpack.c.h.b16 %v165
    %v553 = vunpack.c.l.b16 %v166
    %v554 = vunpack.c.h.b16 %v166
    %v555 = vunpack.c.l.b16 %v167
    %v556 = vunpack.c.h.b16 %v167
    %v557 = vunpack.c.l.b16 %v168
    %v558 = vunpack.c.h.b16 %v168
    %v559 = vunpack.c.l.b16 %v169
    %v560 = vunpack.c.h.b16 %v169
    %v561 = vunpack.c.l.b16 %v170
    %v562 = vunpack.c.h.b16 %v170
    %v563 = vunpack.c.l.b16 %v171
    %v564 = vunpack.c.h.b16 %v171
    %v565 = vunpack.c.l.b16 %v172
    %v566 = vunpack.c.h.b16 %v172
    %v567 = vunpack.c.l.b16 %v173
    %v568 = vunpack.c.h.b16 %v173
    %v569 = vunpack.c.l.b16 %v174
    %v570 = vunpack.c.h.b16 %v174
    %v571 = vunpack.c.l.b16 %v175
    %v572 = vunpack.c.h.b16 %v175
    %v573 = vunpack.c.l.b16 %v176
    %v574 = vunpack.c.h.b16 %v176
    %v575 = vunpack.c.l.b16 %v177
    %v576 = vunpack.c.h.b16 %v177
    %v577 = vunpack.c.l.b16 %v178
    %v578 = vunpack.c.h.b16 %v178
    %v579 = vunpack.c.l.b16 %v179
    %v580 = vunpack.c.h.b16 %v179
    %v581 = vunpack.c.l.b16 %v180
    %v582 = vunpack.c.h.b16 %v180
    %v583 = vunpack.c.l.b16 %v181
    %v584 = vunpack.c.h.b16 %v181
    %v585 = vunpack.c.l.b16 %v182
    %v586 = vunpack.c.h.b16 %v182
    %v587 = vunpack.c.l.b16 %v183
    %v588 = vunpack.c.h.b16 %v183
    %v589 = vunpack.c.l.b16 %v184
    %v590 = vunpack.c.h.b16 %v184
    %v591 = vunpack.c.l.b16 %v185
    %v592 = vunpack.c.h.b16 %v185
    %v593 = vunpack.c.l.b16 %v186
    %v594 = vunpack.c.h.b16 %v186
    %v595 = vunpack.c.l.b16 %v187
    %v596 = vunpack.c.h.b16 %v187
    %v597 = vunpack.c.l.b16 %v188
    %v598 = vunpack.c.h.b16 %v188
    %v599 = vunpack.c.l.b16 %v189
    %v600 = vunpack.c.h.b16 %v189
    %v601 = vunpack.c.l.b16 %v190
    %v602 = vunpack.c.h.b16 %v190
    %v603 = vunpack.c.l.b16 %v191
    %v604 = vunpack.c.h.b16 %v191
    %v605 = vunpack.c.l.b16 %v192
    %v606 = vunpack.c.h.b16 %v192
    %v607 = vunpack.c.l.b16 %v193
    %v608 = vunpack.c.h.b16 %v193
    %v609 = vunpack.c.l.b16 %v194
    %v610 = vunpack.c.h.b16 %v194
    %v611 = vunpack.c.l.b16 %v195
    %v612 = vunpack.c.h.b16 %v195
    %v613 = vunpack.c.l.b16 %v196
    %v614 = vunpack.c.h.b16 %v196
    %v615 = vunpack.c.l.b16 %v197
    %v616 = vunpack.c.h.b16 %v197
    %v617 = vunpack.c.l.b16 %v198
    %v618 = vunpack.c.h.b16 %v198
    %v619 = vunpack.c.l.b16 %v199
    %v620 = vunpack.c.h.b16 %v199
    %v621 = vunpack.c.l.b16 %v200
    %v622 = vunpack.c.h.b16 %v200
    %v623 = vunpack.c.l.b16 %v201
    %v624 = vunpack.c.h.b16 %v201
    %v625 = vunpack.c.l.b16 %v202
    %v626 = vunpack.c.h.b16 %v202
    %v627 = vunpack.c.l.b16 %v203
    %v628 = vunpack.c.h.b16 %v203
    %v629 = vunpack.c.l.b16 %v204
    %v630 = vunpack.c.h.b16 %v204
    %v631 = vpack.c.b16 %v383, %v375
    %v632 = vpack.c.b16 %v384, %v376
    %v633 = vpack.c.b16 %v385, %v377
    %v634 = vpack.c.b16 %v386, %v378
    %v635 = vpack.c.b16 %v387, %v379
    %v636 = vpack.c.b16 %v388, %v380
    %v637 = vpack.c.b16 %v389, %v381
    %v638 = vpack.c.b16 %v390, %v382
    %v639 = vpack.c.b16 %v399, %v391
    %v640 = vpack.c.b16 %v400, %v392
    %v641 = vpack.c.b16 %v401, %v393
    %v642 = vpack.c.b16 %v402, %v394
    %v643 = vpack.c.b16 %v403, %v395
    %v644 = vpack.c.b16 %v404, %v396
    %v645 = vpack.c.b16 %v405, %v397
    %v646 = vpack.c.b16 %v406, %v398
    %v647 = vpack.c.b16 %v415, %v407
    %v648 = vpack.c.b16 %v416, %v408
    %v649 = vpack.c.b16 %v417, %v409
    %v650 = vpack.c.b16 %v418, %v410
    %v651 = vpack.c.b16 %v419, %v411
    %v652 = vpack.c.b16 %v420, %v412
    %v653 = vpack.c.b16 %v421, %v413
    %v654 = vpack.c.b16 %v422, %v414
    %v655 = vpack.c.b16 %v431, %v423
    %v656 = vpack.c.b16 %v432, %v424
    %v657 = vpack.c.b16 %v433, %v425
    %v658 = vpack.c.b16 %v434, %v426
    %v659 = vpack.c.b16 %v435, %v427
    %v660 = vpack.c.b16 %v436, %v428
    %v661 = vpack.c.b16 %v437, %v429
    %v662 = vpack.c.b16 %v438, %v430
    %v663 = vpack.c.b16 %v447, %v439
    %v664 = vpack.c.b16 %v448, %v440
    %v665 = vpack.c.b16 %v449, %v441
    %v666 = vpack.c.b16 %v450, %v442
    %v667 = vpack.c.b16 %v451, %v443
    %v668 = vpack.c.b16 %v452, %v444
    %v669 = vpack.c.b16 %v453, %v445
    %v670 = vpack.c.b16 %v454, %v446
    %v671 = vpack.c.b16 %v463, %v455
    %v672 = vpack.c.b16 %v464, %v456
    %v673 = vpack.c.b16 %v465, %v457
    %v674 = vpack.c.b16 %v466, %v458
    %v675 = vpack.c.b16 %v467, %v459
    %v676 = vpack.c.b16 %v468, %v460
    %v677 = vpack.c.b16 %v469, %v461
    %v678 = vpack.c.b16 %v470, %v462
    %v679 = vpack.c.b16 %v479, %v471
    %v680 = vpack.c.b16 %v480, %v472
    %v681 = vpack.c.b16 %v481, %v473
    %v682 = vpack.c.b16 %v482, %v474
    %v683 = vpack.c.b16 %v483, %v475
    %v684 = vpack.c.b16 %v484, %v476
    %v685 = vpack.c.b16 %v485, %v477
    %v686 = vpack.c.b16 %v486, %v478
    %v687 = vpack.c.b16 %v495, %v487
    %v688 = vpack.c.b16 %v496, %v488
    %v689 = vpack.c.b16 %v497, %v489
    %v690 = vpack.c.b16 %v498, %v490
    %v691 = vpack.c.b16 %v499, %v491
    %v692 = vpack.c.b16 %v500, %v492
    %v693 = vpack.c.b16 %v501, %v493
    %v694 = vpack.c.b16 %v502, %v494
    %v695 = vpack.c.b16 %v511, %v503
    %v696 = vpack.c.b16 %v512, %v504
    %v697 = vpack.c.b16 %v513, %v505
    %v698 = vpack.c.b16 %v514, %v506
    %v699 = vpack.c.b16 %v515, %v507
    %v700 = vpack.c.b16 %v516, %v508
    %v701 = vpack.c.b16 %v517, %v509
    %v702 = vpack.c.b16 %v518, %v510
    %v703 = vpack.c.b16 %v527, %v519
    %v704 = vpack.c.b16 %v528, %v520
    %v705 = vpack.c.b16 %v529, %v521
    %v706 = vpack.c.b16 %v530, %v522
    %v707 = vpack.c.b16 %v531, %v523
    %v708 = vpack.c.b16 %v532, %v524
    %v709 = vpack.c.b16 %v533, %v525
    %v710 = vpack.c.b16 %v534, %v526
    %v711 = vpack.c.b16 %v543, %v535
    %v712 = vpack.c.b16 %v544, %v536
    %v713 = vpack.c.b16 %v545, %v537
    %v714 = vpack.c.b16 %v546, %v538
    %v715 = vpack.c.b16 %v547, %v539
    %v716 = vpack.c.b16 %v548, %v540
    %v717 = vpack.c.b16 %v549, %v541
    %v718 = vpack.c.b16 %v550, %v542
    %v719 = vpack.c.b16 %v559, %v551
    %v720 = vpack.c.b16 %v560, %v552
    %v721 = vpack.c.b16 %v561, %v553
    %v722 = vpack.c.b16 %v562, %v554
    %v723 = vpack.c.b16 %v563, %v555
    %v724 = vpack.c.b16 %v564, %v556
    %v725 = vpack.c.b16 %v565, %v557
    %v726 = vpack.c.b16 %v566, %v558
    %v727 = vpack.c.b16 %v575, %v567
    %v728 = vpack.c.b16 %v576, %v568
    %v729 = vpack.c.b16 %v577, %v569
    %v730 = vpack.c.b16 %v578, %v570
    %v731 = vpack.c.b16 %v579, %v571
    %v732 = vpack.c.b16 %v580, %v572
    %v733 = vpack.c.b16 %v581, %v573
    %v734 = vpack.c.b16 %v582, %v574
    %v735 = vpack.c.b16 %v591, %v583
    %v736 = vpack.c.b16 %v592, %v584
    %v737 = vpack.c.b16 %v593, %v585
    %v738 = vpack.c.b16 %v594, %v586
    %v739 = vpack.c.b16 %v595, %v587
    %v740 = vpack.c.b16 %v596, %v588
    %v741 = vpack.c.b16 %v597, %v589
    %v742 = vpack.c.b16 %v598, %v590
    %v743 = vpack.c.b16 %v607, %v599
    %v744 = vpack.c.b16 %v608, %v600
    %v745 = vpack.c.b16 %v609, %v601
    %v746 = vpack.c.b16 %v610, %v602
    %v747 = vpack.c.b16 %v611, %v603
    %v748 = vpack.c.b16 %v612, %v604
    %v749 = vpack.c.b16 %v613, %v605
    %v750 = vpack.c.b16 %v614, %v606
    %v751 = vpack.c.b16 %v623, %v615
    %v752 = vpack.c.b16 %v624, %v616
    %v753 = vpack.c.b16 %v625, %v617
    %v754 = vpack.c.b16 %v626, %v618
    %v755 = vpack.c.b16 %v627, %v619
    %v756 = vpack.c.b16 %v628, %v620
    %v757 = vpack.c.b16 %v629, %v621
    %v758 = vpack.c.b16 %v630, %v622
    %887 = vmatprep.subr.bf16.mxu0 %v632
    %888 = vmatpush1.bf16.msra.mxu0 %v631
    %889 = vmatprep.subr.bf16.mxu0 %v640
    %890 = vmatpush1.bf16.msra.mxu0 %v639
    %891 = vmatprep.subr.bf16.mxu0 %v648
    %892 = vmatpush1.bf16.msra.mxu0 %v647
    %893 = vmatprep.subr.bf16.mxu0 %v656
    %894 = vmatpush1.bf16.msra.mxu0 %v655
    %895 = vmatprep.subr.bf16.mxu0 %v664
    %896 = vmatpush1.bf16.msra.mxu0 %v663
    %897 = vmatprep.subr.bf16.mxu0 %v672
    %898 = vmatpush1.bf16.msra.mxu0 %v671
    %899 = vmatprep.subr.bf16.mxu0 %v680
    %900 = vmatpush1.bf16.msra.mxu0 %v679
    %901 = vmatprep.subr.bf16.mxu0 %v688
    %902 = vmatpush1.bf16.msra.mxu0 %v687
    %903 = vmatprep.subr.bf16.mxu0 %v696
    %904 = vmatpush1.bf16.msra.mxu0 %v695
    %905 = vmatprep.subr.bf16.mxu0 %v704
    %906 = vmatpush1.bf16.msra.mxu0 %v703
    %907 = vmatprep.subr.bf16.mxu0 %v712
    %908 = vmatpush1.bf16.msra.mxu0 %v711
    %909 = vmatprep.subr.bf16.mxu0 %v720
    %910 = vmatpush1.bf16.msra.mxu0 %v719
    %911 = vmatprep.subr.bf16.mxu0 %v728
    %912 = vmatpush1.bf16.msra.mxu0 %v727
    %913 = vmatprep.subr.bf16.mxu0 %v736
    %914 = vmatpush1.bf16.msra.mxu0 %v735
    %915 = vmatprep.subr.bf16.mxu0 %v744
    %916 = vmatpush1.bf16.msra.mxu0 %v743
    %917 = vmatprep.subr.bf16.mxu0 %v752
    %918 = vmatpush1.bf16.msra.mxu0 %v751
    %919 = vmatprep.mubr.bf16.mxu0 %v76
    %920 = vmatmul.mubr.bf16.gmra.mrb[0].mxu0 %v75
    %v921 = vpop.f32.mrb[0].mxu0
    %v922 = vadd.f32 %v210, %v921
    %v923 = vpop.f32.mrb[0].mxu0
    %v924 = vadd.f32 %v214, %v923
    %v925 = vpop.f32.mrb[0].mxu0
    %v926 = vpop.f32.mrb[0].mxu0
    %927 = vdwg.mxu0
    %928 = vmatprep.subr.bf16.mxu0 %v634
    %929 = vmatpush1.bf16.msra.mxu0 %v633
    %930 = vmatprep.subr.bf16.mxu0 %v642
    %931 = vmatpush1.bf16.msra.mxu0 %v641
    %932 = vmatprep.subr.bf16.mxu0 %v650
    %933 = vmatpush1.bf16.msra.mxu0 %v649
    %934 = vmatprep.subr.bf16.mxu0 %v658
    %935 = vmatpush1.bf16.msra.mxu0 %v657
    %936 = vmatprep.subr.bf16.mxu0 %v666
    %937 = vmatpush1.bf16.msra.mxu0 %v665
    %938 = vmatprep.subr.bf16.mxu0 %v674
    %939 = vmatpush1.bf16.msra.mxu0 %v673
    %940 = vmatprep.subr.bf16.mxu0 %v682
    %941 = vmatpush1.bf16.msra.mxu0 %v681
    %942 = vmatprep.subr.bf16.mxu0 %v690
    %943 = vmatpush1.bf16.msra.mxu0 %v689
    %944 = vmatprep.subr.bf16.mxu0 %v698
    %945 = vmatpush1.bf16.msra.mxu0 %v697
    %946 = vmatprep.subr.bf16.mxu0 %v706
    %947 = vmatpush1.bf16.msra.mxu0 %v705
    %948 = vmatprep.subr.bf16.mxu0 %v714
    %949 = vmatpush1.bf16.msra.mxu0 %v713
    %950 = vmatprep.subr.bf16.mxu0 %v722
    %951 = vmatpush1.bf16.msra.mxu0 %v721
    %952 = vmatprep.subr.bf16.mxu0 %v730
    %953 = vmatpush1.bf16.msra.mxu0 %v729
    %954 = vmatprep.subr.bf16.mxu0 %v738
    %955 = vmatpush1.bf16.msra.mxu0 %v737
    %956 = vmatprep.subr.bf16.mxu0 %v746
    %957 = vmatpush1.bf16.msra.mxu0 %v745
    %958 = vmatprep.subr.bf16.mxu0 %v754
    %959 = vmatpush1.bf16.msra.mxu0 %v753
    %960 = vmatprep.mubr.bf16.mxu0 %v76
    %961 = vmatmul.mubr.bf16.gmra.mrb[0].mxu0 %v75
    %v962 = vpop.f32.mrb[0].mxu0
    %v963 = vadd.f32 %v218, %v962
    %v964 = vpop.f32.mrb[0].mxu0
    %v965 = vadd.f32 %v222, %v964
    %v966 = vpop.f32.mrb[0].mxu0
    %v967 = vpop.f32.mrb[0].mxu0
    %968 = vdwg.mxu0
    %969 = vmatprep.subr.bf16.mxu0 %v636
    %970 = vmatpush1.bf16.msra.mxu0 %v635
    %971 = vmatprep.subr.bf16.mxu0 %v644
    %972 = vmatpush1.bf16.msra.mxu0 %v643
    %973 = vmatprep.subr.bf16.mxu0 %v652
    %974 = vmatpush1.bf16.msra.mxu0 %v651
    %975 = vmatprep.subr.bf16.mxu0 %v660
    %976 = vmatpush1.bf16.msra.mxu0 %v659
    %977 = vmatprep.subr.bf16.mxu0 %v668
    %978 = vmatpush1.bf16.msra.mxu0 %v667
    %979 = vmatprep.subr.bf16.mxu0 %v676
    %980 = vmatpush1.bf16.msra.mxu0 %v675
    %981 = vmatprep.subr.bf16.mxu0 %v684
    %982 = vmatpush1.bf16.msra.mxu0 %v683
    %983 = vmatprep.subr.bf16.mxu0 %v692
    %984 = vmatpush1.bf16.msra.mxu0 %v691
    %985 = vmatprep.subr.bf16.mxu0 %v700
    %986 = vmatpush1.bf16.msra.mxu0 %v699
    %987 = vmatprep.subr.bf16.mxu0 %v708
    %988 = vmatpush1.bf16.msra.mxu0 %v707
    %989 = vmatprep.subr.bf16.mxu0 %v716
    %990 = vmatpush1.bf16.msra.mxu0 %v715
    %991 = vmatprep.subr.bf16.mxu0 %v724
    %992 = vmatpush1.bf16.msra.mxu0 %v723
    %993 = vmatprep.subr.bf16.mxu0 %v732
    %994 = vmatpush1.bf16.msra.mxu0 %v731
    %995 = vmatprep.subr.bf16.mxu0 %v740
    %996 = vmatpush1.bf16.msra.mxu0 %v739
    %997 = vmatprep.subr.bf16.mxu0 %v748
    %998 = vmatpush1.bf16.msra.mxu0 %v747
    %999 = vmatprep.subr.bf16.mxu0 %v756
    %1000 = vmatpush1.bf16.msra.mxu0 %v755
    %1001 = vmatprep.mubr.bf16.mxu0 %v76
    %1002 = vmatmul.mubr.bf16.gmra.mrb[0].mxu0 %v75
    %v1003 = vpop.f32.mrb[0].mxu0
    %v1004 = vadd.f32 %v226, %v1003
    %v1005 = vpop.f32.mrb[0].mxu0
    %v1006 = vadd.f32 %v230, %v1005
    %v1007 = vpop.f32.mrb[0].mxu0
    %v1008 = vpop.f32.mrb[0].mxu0
    %1009 = vdwg.mxu0
    %1010 = vmatprep.subr.bf16.mxu0 %v638
    %1011 = vmatpush1.bf16.msra.mxu0 %v637
    %1012 = vmatprep.subr.bf16.mxu0 %v646
    %1013 = vmatpush1.bf16.msra.mxu0 %v645
    %1014 = vmatprep.subr.bf16.mxu0 %v654
    %1015 = vmatpush1.bf16.msra.mxu0 %v653
    %1016 = vmatprep.subr.bf16.mxu0 %v662
    %1017 = vmatpush1.bf16.msra.mxu0 %v661
    %1018 = vmatprep.subr.bf16.mxu0 %v670
    %1019 = vmatpush1.bf16.msra.mxu0 %v669
    %1020 = vmatprep.subr.bf16.mxu0 %v678
    %1021 = vmatpush1.bf16.msra.mxu0 %v677
    %1022 = vmatprep.subr.bf16.mxu0 %v686
    %1023 = vmatpush1.bf16.msra.mxu0 %v685
    %1024 = vmatprep.subr.bf16.mxu0 %v694
    %1025 = vmatpush1.bf16.msra.mxu0 %v693
    %1026 = vmatprep.subr.bf16.mxu0 %v702
    %1027 = vmatpush1.bf16.msra.mxu0 %v701
    %1028 = vmatprep.subr.bf16.mxu0 %v710
    %1029 = vmatpush1.bf16.msra.mxu0 %v709
    %1030 = vmatprep.subr.bf16.mxu0 %v718
    %1031 = vmatpush1.bf16.msra.mxu0 %v717
    %1032 = vmatprep.subr.bf16.mxu0 %v726
    %1033 = vmatpush1.bf16.msra.mxu0 %v725
    %1034 = vmatprep.subr.bf16.mxu0 %v734
    %1035 = vmatpush1.bf16.msra.mxu0 %v733
    %1036 = vmatprep.subr.bf16.mxu0 %v742
    %1037 = vmatpush1.bf16.msra.mxu0 %v741
    %1038 = vmatprep.subr.bf16.mxu0 %v750
    %1039 = vmatpush1.bf16.msra.mxu0 %v749
    %1040 = vmatprep.subr.bf16.mxu0 %v758
    %1041 = vmatpush1.bf16.msra.mxu0 %v757
    %1042 = vmatprep.mubr.bf16.mxu0 %v76
    %1043 = vmatmul.mubr.bf16.gmra.mrb[0].mxu0 %v75
    %v1044 = vpop.f32.mrb[0].mxu0
    %v1045 = vadd.f32 %v234, %v1044
    %v1046 = vpop.f32.mrb[0].mxu0
    %v1047 = vadd.f32 %v238, %v1046
    %v1048 = vpop.f32.mrb[0].mxu0
    %v1049 = vpop.f32.mrb[0].mxu0
    %1050 = vdwg.mxu0
    %vm1051 = vcmp.ge.f32.partialorder %v922, 0.0
    %vm1052 = vcmp.ge.f32.partialorder %v924, 0.0
    %vm1053 = vcmp.ge.f32.partialorder %v963, 0.0
    %vm1054 = vcmp.ge.f32.partialorder %v965, 0.0
    %vm1055 = vcmp.ge.f32.partialorder %v1004, 0.0
    %vm1056 = vcmp.ge.f32.partialorder %v1006, 0.0
    %vm1057 = vcmp.ge.f32.partialorder %v1045, 0.0
    %vm1058 = vcmp.ge.f32.partialorder %v1047, 0.0
    %v1059 = vmul.f32 %v922, 0.2
    %v1060 = vmul.f32 %v924, 0.2
    %v1061 = vmul.f32 %v963, 0.2
    %v1062 = vmul.f32 %v965, 0.2
    %v1063 = vmul.f32 %v1004, 0.2
    %v1064 = vmul.f32 %v1006, 0.2
    %v1065 = vmul.f32 %v1045, 0.2
    %v1066 = vmul.f32 %v1047, 0.2
    %v1067 = vsel %vm1051, %v922, %v1059
    %v1068 = vsel %vm1052, %v924, %v1060
    %v1069 = vsel %vm1053, %v963, %v1061
    %v1070 = vsel %vm1054, %v965, %v1062
    %v1071 = vsel %vm1055, %v1004, %v1063
    %v1072 = vsel %vm1056, %v1006, %v1064
    %v1073 = vsel %vm1057, %v1045, %v1065
    %v1074 = vsel %vm1058, %v1047, %v1066
    %v1075 = vpack.c.bf16 %v1067, %v1067
    %v1076 = vpack.c.bf16 %v1068, %v1068
    %v1077 = vpack.c.bf16 %v1069, %v1069
    %v1078 = vpack.c.bf16 %v1070, %v1070
    %v1079 = vpack.c.bf16 %v1071, %v1071
    %v1080 = vpack.c.bf16 %v1072, %v1072
    %v1081 = vpack.c.bf16 %v1073, %v1073
    %v1082 = vpack.c.bf16 %v1074, %v1074
    %v1083 = vld [vmem:[#allocation5] sm:$0xff]
    %v1084 = vld [vmem:[#allocation5 + $0x8] sm:$0xff]
    %v1085 = vld [vmem:[#allocation5 + $0x10] sm:$0xff]
    %v1086 = vld [vmem:[#allocation5 + $0x18] sm:$0xff]
    %v1087 = vld [vmem:[#allocation5 + $0x20] sm:$0xff]
    %v1088 = vld [vmem:[#allocation5 + $0x28] sm:$0xff]
    %v1089 = vld [vmem:[#allocation5 + $0x30] sm:$0xff]
    %v1090 = vld [vmem:[#allocation5 + $0x38] sm:$0xff]
    %v1091 = vld [vmem:[#allocation5 + $0x40] sm:$0xff]
    %v1092 = vld [vmem:[#allocation5 + $0x48] sm:$0xff]
    %v1093 = vld [vmem:[#allocation5 + $0x50] sm:$0xff]
    %v1094 = vld [vmem:[#allocation5 + $0x58] sm:$0xff]
    %v1095 = vld [vmem:[#allocation5 + $0x60] sm:$0xff]
    %v1096 = vld [vmem:[#allocation5 + $0x68] sm:$0xff]
    %v1097 = vld [vmem:[#allocation5 + $0x70] sm:$0xff]
    %v1098 = vld [vmem:[#allocation5 + $0x78] sm:$0xff]
    %v1099 = vld [vmem:[#allocation5 + $0x80] sm:$0xff]
    %v1100 = vld [vmem:[#allocation5 + $0x88] sm:$0xff]
    %v1101 = vld [vmem:[#allocation5 + $0x90] sm:$0xff]
    %v1102 = vld [vmem:[#allocation5 + $0x98] sm:$0xff]
    %v1103 = vld [vmem:[#allocation5 + $0xa0] sm:$0xff]
    %v1104 = vld [vmem:[#allocation5 + $0xa8] sm:$0xff]
    %v1105 = vld [vmem:[#allocation5 + $0xb0] sm:$0xff]
    %v1106 = vld [vmem:[#allocation5 + $0xb8] sm:$0xff]
    %v1107 = vld [vmem:[#allocation5 + $0xc0] sm:$0xff]
    %v1108 = vld [vmem:[#allocation5 + $0xc8] sm:$0xff]
    %v1109 = vld [vmem:[#allocation5 + $0xd0] sm:$0xff]
    %v1110 = vld [vmem:[#allocation5 + $0xd8] sm:$0xff]
    %v1111 = vld [vmem:[#allocation5 + $0xe0] sm:$0xff]
    %v1112 = vld [vmem:[#allocation5 + $0xe8] sm:$0xff]
    %v1113 = vld [vmem:[#allocation5 + $0xf0] sm:$0xff]
    %v1114 = vld [vmem:[#allocation5 + $0xf8] sm:$0xff]
    %v1115 = vld [vmem:[#allocation5 + $0x100] sm:$0xff]
    %v1116 = vld [vmem:[#allocation5 + $0x108] sm:$0xff]
    %v1117 = vld [vmem:[#allocation5 + $0x110] sm:$0xff]
    %v1118 = vld [vmem:[#allocation5 + $0x118] sm:$0xff]
    %v1119 = vld [vmem:[#allocation5 + $0x120] sm:$0xff]
    %v1120 = vld [vmem:[#allocation5 + $0x128] sm:$0xff]
    %v1121 = vld [vmem:[#allocation5 + $0x130] sm:$0xff]
    %v1122 = vld [vmem:[#allocation5 + $0x138] sm:$0xff]
    %v1123 = vld [vmem:[#allocation5 + $0x140] sm:$0xff]
    %v1124 = vld [vmem:[#allocation5 + $0x148] sm:$0xff]
    %v1125 = vld [vmem:[#allocation5 + $0x150] sm:$0xff]
    %v1126 = vld [vmem:[#allocation5 + $0x158] sm:$0xff]
    %v1127 = vld [vmem:[#allocation5 + $0x160] sm:$0xff]
    %v1128 = vld [vmem:[#allocation5 + $0x168] sm:$0xff]
    %v1129 = vld [vmem:[#allocation5 + $0x170] sm:$0xff]
    %v1130 = vld [vmem:[#allocation5 + $0x178] sm:$0xff]
    %v1131 = vld [vmem:[#allocation5 + $0x180] sm:$0xff]
    %v1132 = vld [vmem:[#allocation5 + $0x188] sm:$0xff]
    %v1133 = vld [vmem:[#allocation5 + $0x190] sm:$0xff]
    %v1134 = vld [vmem:[#allocation5 + $0x198] sm:$0xff]
    %v1135 = vld [vmem:[#allocation5 + $0x1a0] sm:$0xff]
    %v1136 = vld [vmem:[#allocation5 + $0x1a8] sm:$0xff]
    %v1137 = vld [vmem:[#allocation5 + $0x1b0] sm:$0xff]
    %v1138 = vld [vmem:[#allocation5 + $0x1b8] sm:$0xff]
    %v1139 = vld [vmem:[#allocation5 + $0x1c0] sm:$0xff]
    %v1140 = vld [vmem:[#allocation5 + $0x1c8] sm:$0xff]
    %v1141 = vld [vmem:[#allocation5 + $0x1d0] sm:$0xff]
    %v1142 = vld [vmem:[#allocation5 + $0x1d8] sm:$0xff]
    %v1143 = vld [vmem:[#allocation5 + $0x1e0] sm:$0xff]
    %v1144 = vld [vmem:[#allocation5 + $0x1e8] sm:$0xff]
    %v1145 = vld [vmem:[#allocation5 + $0x1f0] sm:$0xff]
    %v1146 = vld [vmem:[#allocation5 + $0x1f8] sm:$0xff]
    %v1147 = vld [vmem:[#allocation5 + $0x200] sm:$0xff]
    %v1148 = vld [vmem:[#allocation5 + $0x208] sm:$0xff]
    %v1149 = vld [vmem:[#allocation5 + $0x210] sm:$0xff]
    %v1150 = vld [vmem:[#allocation5 + $0x218] sm:$0xff]
    %v1151 = vld [vmem:[#allocation5 + $0x220] sm:$0xff]
    %v1152 = vld [vmem:[#allocation5 + $0x228] sm:$0xff]
    %v1153 = vld [vmem:[#allocation5 + $0x230] sm:$0xff]
    %v1154 = vld [vmem:[#allocation5 + $0x238] sm:$0xff]
    %v1155 = vld [vmem:[#allocation5 + $0x240] sm:$0xff]
    %v1156 = vld [vmem:[#allocation5 + $0x248] sm:$0xff]
    %v1157 = vld [vmem:[#allocation5 + $0x250] sm:$0xff]
    %v1158 = vld [vmem:[#allocation5 + $0x258] sm:$0xff]
    %v1159 = vld [vmem:[#allocation5 + $0x260] sm:$0xff]
    %v1160 = vld [vmem:[#allocation5 + $0x268] sm:$0xff]
    %v1161 = vld [vmem:[#allocation5 + $0x270] sm:$0xff]
    %v1162 = vld [vmem:[#allocation5 + $0x278] sm:$0xff]
    %v1163 = vld [vmem:[#allocation5 + $0x280] sm:$0xff]
    %v1164 = vld [vmem:[#allocation5 + $0x288] sm:$0xff]
    %v1165 = vld [vmem:[#allocation5 + $0x290] sm:$0xff]
    %v1166 = vld [vmem:[#allocation5 + $0x298] sm:$0xff]
    %v1167 = vld [vmem:[#allocation5 + $0x2a0] sm:$0xff]
    %v1168 = vld [vmem:[#allocation5 + $0x2a8] sm:$0xff]
    %v1169 = vld [vmem:[#allocation5 + $0x2b0] sm:$0xff]
    %v1170 = vld [vmem:[#allocation5 + $0x2b8] sm:$0xff]
    %v1171 = vld [vmem:[#allocation5 + $0x2c0] sm:$0xff]
    %v1172 = vld [vmem:[#allocation5 + $0x2c8] sm:$0xff]
    %v1173 = vld [vmem:[#allocation5 + $0x2d0] sm:$0xff]
    %v1174 = vld [vmem:[#allocation5 + $0x2d8] sm:$0xff]
    %v1175 = vld [vmem:[#allocation5 + $0x2e0] sm:$0xff]
    %v1176 = vld [vmem:[#allocation5 + $0x2e8] sm:$0xff]
    %v1177 = vld [vmem:[#allocation5 + $0x2f0] sm:$0xff]
    %v1178 = vld [vmem:[#allocation5 + $0x2f8] sm:$0xff]
    %v1179 = vld [vmem:[#allocation5 + $0x300] sm:$0xff]
    %v1180 = vld [vmem:[#allocation5 + $0x308] sm:$0xff]
    %v1181 = vld [vmem:[#allocation5 + $0x310] sm:$0xff]
    %v1182 = vld [vmem:[#allocation5 + $0x318] sm:$0xff]
    %v1183 = vld [vmem:[#allocation5 + $0x320] sm:$0xff]
    %v1184 = vld [vmem:[#allocation5 + $0x328] sm:$0xff]
    %v1185 = vld [vmem:[#allocation5 + $0x330] sm:$0xff]
    %v1186 = vld [vmem:[#allocation5 + $0x338] sm:$0xff]
    %v1187 = vld [vmem:[#allocation5 + $0x340] sm:$0xff]
    %v1188 = vld [vmem:[#allocation5 + $0x348] sm:$0xff]
    %v1189 = vld [vmem:[#allocation5 + $0x350] sm:$0xff]
    %v1190 = vld [vmem:[#allocation5 + $0x358] sm:$0xff]
    %v1191 = vld [vmem:[#allocation5 + $0x360] sm:$0xff]
    %v1192 = vld [vmem:[#allocation5 + $0x368] sm:$0xff]
    %v1193 = vld [vmem:[#allocation5 + $0x370] sm:$0xff]
    %v1194 = vld [vmem:[#allocation5 + $0x378] sm:$0xff]
    %v1195 = vld [vmem:[#allocation5 + $0x380] sm:$0xff]
    %v1196 = vld [vmem:[#allocation5 + $0x388] sm:$0xff]
    %v1197 = vld [vmem:[#allocation5 + $0x390] sm:$0xff]
    %v1198 = vld [vmem:[#allocation5 + $0x398] sm:$0xff]
    %v1199 = vld [vmem:[#allocation5 + $0x3a0] sm:$0xff]
    %v1200 = vld [vmem:[#allocation5 + $0x3a8] sm:$0xff]
    %v1201 = vld [vmem:[#allocation5 + $0x3b0] sm:$0xff]
    %v1202 = vld [vmem:[#allocation5 + $0x3b8] sm:$0xff]
    %v1203 = vld [vmem:[#allocation5 + $0x3c0] sm:$0xff]
    %v1204 = vld [vmem:[#allocation5 + $0x3c8] sm:$0xff]
    %v1205 = vld [vmem:[#allocation5 + $0x3d0] sm:$0xff]
    %v1206 = vld [vmem:[#allocation5 + $0x3d8] sm:$0xff]
    %v1207 = vld [vmem:[#allocation5 + $0x3e0] sm:$0xff]
    %v1208 = vld [vmem:[#allocation5 + $0x3e8] sm:$0xff]
    %v1209 = vld [vmem:[#allocation5 + $0x3f0] sm:$0xff]
    %v1210 = vld [vmem:[#allocation5 + $0x3f8] sm:$0xff]
    %v1211 = vld [vmem:[#allocation5 + $0x400] sm:$0xff]
    %v1212 = vld [vmem:[#allocation5 + $0x408] sm:$0xff]
    %v1213 = vld [vmem:[#allocation5 + $0x410] sm:$0xff]
    %v1214 = vld [vmem:[#allocation5 + $0x418] sm:$0xff]
    %v1215 = vld [vmem:[#allocation5 + $0x420] sm:$0xff]
    %v1216 = vld [vmem:[#allocation5 + $0x428] sm:$0xff]
    %v1217 = vld [vmem:[#allocation5 + $0x430] sm:$0xff]
    %v1218 = vld [vmem:[#allocation5 + $0x438] sm:$0xff]
    %v1219 = vld [vmem:[#allocation5 + $0x440] sm:$0xff]
    %v1220 = vld [vmem:[#allocation5 + $0x448] sm:$0xff]
    %v1221 = vld [vmem:[#allocation5 + $0x450] sm:$0xff]
    %v1222 = vld [vmem:[#allocation5 + $0x458] sm:$0xff]
    %v1223 = vld [vmem:[#allocation5 + $0x460] sm:$0xff]
    %v1224 = vld [vmem:[#allocation5 + $0x468] sm:$0xff]
    %v1225 = vld [vmem:[#allocation5 + $0x470] sm:$0xff]
    %v1226 = vld [vmem:[#allocation5 + $0x478] sm:$0xff]
    %v1227 = vld [vmem:[#allocation5 + $0x480] sm:$0xff]
    %v1228 = vld [vmem:[#allocation5 + $0x488] sm:$0xff]
    %v1229 = vld [vmem:[#allocation5 + $0x490] sm:$0xff]
    %v1230 = vld [vmem:[#allocation5 + $0x498] sm:$0xff]
    %v1231 = vld [vmem:[#allocation5 + $0x4a0] sm:$0xff]
    %v1232 = vld [vmem:[#allocation5 + $0x4a8] sm:$0xff]
    %v1233 = vld [vmem:[#allocation5 + $0x4b0] sm:$0xff]
    %v1234 = vld [vmem:[#allocation5 + $0x4b8] sm:$0xff]
    %v1235 = vld [vmem:[#allocation5 + $0x4c0] sm:$0xff]
    %v1236 = vld [vmem:[#allocation5 + $0x4c8] sm:$0xff]
    %v1237 = vld [vmem:[#allocation5 + $0x4d0] sm:$0xff]
    %v1238 = vld [vmem:[#allocation5 + $0x4d8] sm:$0xff]
    %v1239 = vld [vmem:[#allocation5 + $0x4e0] sm:$0xff]
    %v1240 = vld [vmem:[#allocation5 + $0x4e8] sm:$0xff]
    %v1241 = vld [vmem:[#allocation5 + $0x4f0] sm:$0xff]
    %v1242 = vld [vmem:[#allocation5 + $0x4f8] sm:$0xff]
    %v1243 = vld [vmem:[#allocation5 + $0x500] sm:$0xff]
    %v1244 = vld [vmem:[#allocation5 + $0x508] sm:$0xff]
    %v1245 = vld [vmem:[#allocation5 + $0x510] sm:$0xff]
    %v1246 = vld [vmem:[#allocation5 + $0x518] sm:$0xff]
    %v1247 = vld [vmem:[#allocation5 + $0x520] sm:$0xff]
    %v1248 = vld [vmem:[#allocation5 + $0x528] sm:$0xff]
    %v1249 = vld [vmem:[#allocation5 + $0x530] sm:$0xff]
    %v1250 = vld [vmem:[#allocation5 + $0x538] sm:$0xff]
    %v1251 = vld [vmem:[#allocation5 + $0x540] sm:$0xff]
    %v1252 = vld [vmem:[#allocation5 + $0x548] sm:$0xff]
    %v1253 = vld [vmem:[#allocation5 + $0x550] sm:$0xff]
    %v1254 = vld [vmem:[#allocation5 + $0x558] sm:$0xff]
    %v1255 = vld [vmem:[#allocation5 + $0x560] sm:$0xff]
    %v1256 = vld [vmem:[#allocation5 + $0x568] sm:$0xff]
    %v1257 = vld [vmem:[#allocation5 + $0x570] sm:$0xff]
    %v1258 = vld [vmem:[#allocation5 + $0x578] sm:$0xff]
    %v1259 = vld [vmem:[#allocation5 + $0x580] sm:$0xff]
    %v1260 = vld [vmem:[#allocation5 + $0x588] sm:$0xff]
    %v1261 = vld [vmem:[#allocation5 + $0x590] sm:$0xff]
    %v1262 = vld [vmem:[#allocation5 + $0x598] sm:$0xff]
    %v1263 = vld [vmem:[#allocation5 + $0x5a0] sm:$0xff]
    %v1264 = vld [vmem:[#allocation5 + $0x5a8] sm:$0xff]
    %v1265 = vld [vmem:[#allocation5 + $0x5b0] sm:$0xff]
    %v1266 = vld [vmem:[#allocation5 + $0x5b8] sm:$0xff]
    %v1267 = vld [vmem:[#allocation5 + $0x5c0] sm:$0xff]
    %v1268 = vld [vmem:[#allocation5 + $0x5c8] sm:$0xff]
    %v1269 = vld [vmem:[#allocation5 + $0x5d0] sm:$0xff]
    %v1270 = vld [vmem:[#allocation5 + $0x5d8] sm:$0xff]
    %v1271 = vld [vmem:[#allocation5 + $0x5e0] sm:$0xff]
    %v1272 = vld [vmem:[#allocation5 + $0x5e8] sm:$0xff]
    %v1273 = vld [vmem:[#allocation5 + $0x5f0] sm:$0xff]
    %v1274 = vld [vmem:[#allocation5 + $0x5f8] sm:$0xff]
    %v1275 = vld [vmem:[#allocation5 + $0x600] sm:$0xff]
    %v1276 = vld [vmem:[#allocation5 + $0x608] sm:$0xff]
    %v1277 = vld [vmem:[#allocation5 + $0x610] sm:$0xff]
    %v1278 = vld [vmem:[#allocation5 + $0x618] sm:$0xff]
    %v1279 = vld [vmem:[#allocation5 + $0x620] sm:$0xff]
    %v1280 = vld [vmem:[#allocation5 + $0x628] sm:$0xff]
    %v1281 = vld [vmem:[#allocation5 + $0x630] sm:$0xff]
    %v1282 = vld [vmem:[#allocation5 + $0x638] sm:$0xff]
    %v1283 = vld [vmem:[#allocation5 + $0x640] sm:$0xff]
    %v1284 = vld [vmem:[#allocation5 + $0x648] sm:$0xff]
    %v1285 = vld [vmem:[#allocation5 + $0x650] sm:$0xff]
    %v1286 = vld [vmem:[#allocation5 + $0x658] sm:$0xff]
    %v1287 = vld [vmem:[#allocation5 + $0x660] sm:$0xff]
    %v1288 = vld [vmem:[#allocation5 + $0x668] sm:$0xff]
    %v1289 = vld [vmem:[#allocation5 + $0x670] sm:$0xff]
    %v1290 = vld [vmem:[#allocation5 + $0x678] sm:$0xff]
    %v1291 = vld [vmem:[#allocation5 + $0x680] sm:$0xff]
    %v1292 = vld [vmem:[#allocation5 + $0x688] sm:$0xff]
    %v1293 = vld [vmem:[#allocation5 + $0x690] sm:$0xff]
    %v1294 = vld [vmem:[#allocation5 + $0x698] sm:$0xff]
    %v1295 = vld [vmem:[#allocation5 + $0x6a0] sm:$0xff]
    %v1296 = vld [vmem:[#allocation5 + $0x6a8] sm:$0xff]
    %v1297 = vld [vmem:[#allocation5 + $0x6b0] sm:$0xff]
    %v1298 = vld [vmem:[#allocation5 + $0x6b8] sm:$0xff]
    %v1299 = vld [vmem:[#allocation5 + $0x6c0] sm:$0xff]
    %v1300 = vld [vmem:[#allocation5 + $0x6c8] sm:$0xff]
    %v1301 = vld [vmem:[#allocation5 + $0x6d0] sm:$0xff]
    %v1302 = vld [vmem:[#allocation5 + $0x6d8] sm:$0xff]
    %v1303 = vld [vmem:[#allocation5 + $0x6e0] sm:$0xff]
    %v1304 = vld [vmem:[#allocation5 + $0x6e8] sm:$0xff]
    %v1305 = vld [vmem:[#allocation5 + $0x6f0] sm:$0xff]
    %v1306 = vld [vmem:[#allocation5 + $0x6f8] sm:$0xff]
    %v1307 = vld [vmem:[#allocation5 + $0x700] sm:$0xff]
    %v1308 = vld [vmem:[#allocation5 + $0x708] sm:$0xff]
    %v1309 = vld [vmem:[#allocation5 + $0x710] sm:$0xff]
    %v1310 = vld [vmem:[#allocation5 + $0x718] sm:$0xff]
    %v1311 = vld [vmem:[#allocation5 + $0x720] sm:$0xff]
    %v1312 = vld [vmem:[#allocation5 + $0x728] sm:$0xff]
    %v1313 = vld [vmem:[#allocation5 + $0x730] sm:$0xff]
    %v1314 = vld [vmem:[#allocation5 + $0x738] sm:$0xff]
    %v1315 = vld [vmem:[#allocation5 + $0x740] sm:$0xff]
    %v1316 = vld [vmem:[#allocation5 + $0x748] sm:$0xff]
    %v1317 = vld [vmem:[#allocation5 + $0x750] sm:$0xff]
    %v1318 = vld [vmem:[#allocation5 + $0x758] sm:$0xff]
    %v1319 = vld [vmem:[#allocation5 + $0x760] sm:$0xff]
    %v1320 = vld [vmem:[#allocation5 + $0x768] sm:$0xff]
    %v1321 = vld [vmem:[#allocation5 + $0x770] sm:$0xff]
    %v1322 = vld [vmem:[#allocation5 + $0x778] sm:$0xff]
    %v1323 = vld [vmem:[#allocation5 + $0x780] sm:$0xff]
    %v1324 = vld [vmem:[#allocation5 + $0x788] sm:$0xff]
    %v1325 = vld [vmem:[#allocation5 + $0x790] sm:$0xff]
    %v1326 = vld [vmem:[#allocation5 + $0x798] sm:$0xff]
    %v1327 = vld [vmem:[#allocation5 + $0x7a0] sm:$0xff]
    %v1328 = vld [vmem:[#allocation5 + $0x7a8] sm:$0xff]
    %v1329 = vld [vmem:[#allocation5 + $0x7b0] sm:$0xff]
    %v1330 = vld [vmem:[#allocation5 + $0x7b8] sm:$0xff]
    %v1331 = vld [vmem:[#allocation5 + $0x7c0] sm:$0xff]
    %v1332 = vld [vmem:[#allocation5 + $0x7c8] sm:$0xff]
    %v1333 = vld [vmem:[#allocation5 + $0x7d0] sm:$0xff]
    %v1334 = vld [vmem:[#allocation5 + $0x7d8] sm:$0xff]
    %v1335 = vld [vmem:[#allocation5 + $0x7e0] sm:$0xff]
    %v1336 = vld [vmem:[#allocation5 + $0x7e8] sm:$0xff]
    %v1337 = vld [vmem:[#allocation5 + $0x7f0] sm:$0xff]
    %v1338 = vld [vmem:[#allocation5 + $0x7f8] sm:$0xff]
    %v1595 = vunpack.c.l.b16 %v1083
    %v1596 = vunpack.c.h.b16 %v1083
    %v1597 = vunpack.c.l.b16 %v1084
    %v1598 = vunpack.c.h.b16 %v1084
    %v1599 = vunpack.c.l.b16 %v1085
    %v1600 = vunpack.c.h.b16 %v1085
    %v1601 = vunpack.c.l.b16 %v1086
    %v1602 = vunpack.c.h.b16 %v1086
    %v1603 = vunpack.c.l.b16 %v1087
    %v1604 = vunpack.c.h.b16 %v1087
    %v1605 = vunpack.c.l.b16 %v1088
    %v1606 = vunpack.c.h.b16 %v1088
    %v1607 = vunpack.c.l.b16 %v1089
    %v1608 = vunpack.c.h.b16 %v1089
    %v1609 = vunpack.c.l.b16 %v1090
    %v1610 = vunpack.c.h.b16 %v1090
    %v1611 = vunpack.c.l.b16 %v1091
    %v1612 = vunpack.c.h.b16 %v1091
    %v1613 = vunpack.c.l.b16 %v1092
    %v1614 = vunpack.c.h.b16 %v1092
    %v1615 = vunpack.c.l.b16 %v1093
    %v1616 = vunpack.c.h.b16 %v1093
    %v1617 = vunpack.c.l.b16 %v1094
    %v1618 = vunpack.c.h.b16 %v1094
    %v1619 = vunpack.c.l.b16 %v1095
    %v1620 = vunpack.c.h.b16 %v1095
    %v1621 = vunpack.c.l.b16 %v1096
    %v1622 = vunpack.c.h.b16 %v1096
    %v1623 = vunpack.c.l.b16 %v1097
    %v1624 = vunpack.c.h.b16 %v1097
    %v1625 = vunpack.c.l.b16 %v1098
    %v1626 = vunpack.c.h.b16 %v1098
    %v1627 = vunpack.c.l.b16 %v1099
    %v1628 = vunpack.c.h.b16 %v1099
    %v1629 = vunpack.c.l.b16 %v1100
    %v1630 = vunpack.c.h.b16 %v1100
    %v1631 = vunpack.c.l.b16 %v1101
    %v1632 = vunpack.c.h.b16 %v1101
    %v1633 = vunpack.c.l.b16 %v1102
    %v1634 = vunpack.c.h.b16 %v1102
    %v1635 = vunpack.c.l.b16 %v1103
    %v1636 = vunpack.c.h.b16 %v1103
    %v1637 = vunpack.c.l.b16 %v1104
    %v1638 = vunpack.c.h.b16 %v1104
    %v1639 = vunpack.c.l.b16 %v1105
    %v1640 = vunpack.c.h.b16 %v1105
    %v1641 = vunpack.c.l.b16 %v1106
    %v1642 = vunpack.c.h.b16 %v1106
    %v1643 = vunpack.c.l.b16 %v1107
    %v1644 = vunpack.c.h.b16 %v1107
    %v1645 = vunpack.c.l.b16 %v1108
    %v1646 = vunpack.c.h.b16 %v1108
    %v1647 = vunpack.c.l.b16 %v1109
    %v1648 = vunpack.c.h.b16 %v1109
    %v1649 = vunpack.c.l.b16 %v1110
    %v1650 = vunpack.c.h.b16 %v1110
    %v1651 = vunpack.c.l.b16 %v1111
    %v1652 = vunpack.c.h.b16 %v1111
    %v1653 = vunpack.c.l.b16 %v1112
    %v1654 = vunpack.c.h.b16 %v1112
    %v1655 = vunpack.c.l.b16 %v1113
    %v1656 = vunpack.c.h.b16 %v1113
    %v1657 = vunpack.c.l.b16 %v1114
    %v1658 = vunpack.c.h.b16 %v1114
    %v1659 = vunpack.c.l.b16 %v1115
    %v1660 = vunpack.c.h.b16 %v1115
    %v1661 = vunpack.c.l.b16 %v1116
    %v1662 = vunpack.c.h.b16 %v1116
    %v1663 = vunpack.c.l.b16 %v1117
    %v1664 = vunpack.c.h.b16 %v1117
    %v1665 = vunpack.c.l.b16 %v1118
    %v1666 = vunpack.c.h.b16 %v1118
    %v1667 = vunpack.c.l.b16 %v1119
    %v1668 = vunpack.c.h.b16 %v1119
    %v1669 = vunpack.c.l.b16 %v1120
    %v1670 = vunpack.c.h.b16 %v1120
    %v1671 = vunpack.c.l.b16 %v1121
    %v1672 = vunpack.c.h.b16 %v1121
    %v1673 = vunpack.c.l.b16 %v1122
    %v1674 = vunpack.c.h.b16 %v1122
    %v1675 = vunpack.c.l.b16 %v1123
    %v1676 = vunpack.c.h.b16 %v1123
    %v1677 = vunpack.c.l.b16 %v1124
    %v1678 = vunpack.c.h.b16 %v1124
    %v1679 = vunpack.c.l.b16 %v1125
    %v1680 = vunpack.c.h.b16 %v1125
    %v1681 = vunpack.c.l.b16 %v1126
    %v1682 = vunpack.c.h.b16 %v1126
    %v1683 = vunpack.c.l.b16 %v1127
    %v1684 = vunpack.c.h.b16 %v1127
    %v1685 = vunpack.c.l.b16 %v1128
    %v1686 = vunpack.c.h.b16 %v1128
    %v1687 = vunpack.c.l.b16 %v1129
    %v1688 = vunpack.c.h.b16 %v1129
    %v1689 = vunpack.c.l.b16 %v1130
    %v1690 = vunpack.c.h.b16 %v1130
    %v1691 = vunpack.c.l.b16 %v1131
    %v1692 = vunpack.c.h.b16 %v1131
    %v1693 = vunpack.c.l.b16 %v1132
    %v1694 = vunpack.c.h.b16 %v1132
    %v1695 = vunpack.c.l.b16 %v1133
    %v1696 = vunpack.c.h.b16 %v1133
    %v1697 = vunpack.c.l.b16 %v1134
    %v1698 = vunpack.c.h.b16 %v1134
    %v1699 = vunpack.c.l.b16 %v1135
    %v1700 = vunpack.c.h.b16 %v1135
    %v1701 = vunpack.c.l.b16 %v1136
    %v1702 = vunpack.c.h.b16 %v1136
    %v1703 = vunpack.c.l.b16 %v1137
    %v1704 = vunpack.c.h.b16 %v1137
    %v1705 = vunpack.c.l.b16 %v1138
    %v1706 = vunpack.c.h.b16 %v1138
    %v1707 = vunpack.c.l.b16 %v1139
    %v1708 = vunpack.c.h.b16 %v1139
    %v1709 = vunpack.c.l.b16 %v1140
    %v1710 = vunpack.c.h.b16 %v1140
    %v1711 = vunpack.c.l.b16 %v1141
    %v1712 = vunpack.c.h.b16 %v1141
    %v1713 = vunpack.c.l.b16 %v1142
    %v1714 = vunpack.c.h.b16 %v1142
    %v1715 = vunpack.c.l.b16 %v1143
    %v1716 = vunpack.c.h.b16 %v1143
    %v1717 = vunpack.c.l.b16 %v1144
    %v1718 = vunpack.c.h.b16 %v1144
    %v1719 = vunpack.c.l.b16 %v1145
    %v1720 = vunpack.c.h.b16 %v1145
    %v1721 = vunpack.c.l.b16 %v1146
    %v1722 = vunpack.c.h.b16 %v1146
    %v1723 = vunpack.c.l.b16 %v1147
    %v1724 = vunpack.c.h.b16 %v1147
    %v1725 = vunpack.c.l.b16 %v1148
    %v1726 = vunpack.c.h.b16 %v1148
    %v1727 = vunpack.c.l.b16 %v1149
    %v1728 = vunpack.c.h.b16 %v1149
    %v1729 = vunpack.c.l.b16 %v1150
    %v1730 = vunpack.c.h.b16 %v1150
    %v1731 = vunpack.c.l.b16 %v1151
    %v1732 = vunpack.c.h.b16 %v1151
    %v1733 = vunpack.c.l.b16 %v1152
    %v1734 = vunpack.c.h.b16 %v1152
    %v1735 = vunpack.c.l.b16 %v1153
    %v1736 = vunpack.c.h.b16 %v1153
    %v1737 = vunpack.c.l.b16 %v1154
    %v1738 = vunpack.c.h.b16 %v1154
    %v1739 = vunpack.c.l.b16 %v1155
    %v1740 = vunpack.c.h.b16 %v1155
    %v1741 = vunpack.c.l.b16 %v1156
    %v1742 = vunpack.c.h.b16 %v1156
    %v1743 = vunpack.c.l.b16 %v1157
    %v1744 = vunpack.c.h.b16 %v1157
    %v1745 = vunpack.c.l.b16 %v1158
    %v1746 = vunpack.c.h.b16 %v1158
    %v1747 = vunpack.c.l.b16 %v1159
    %v1748 = vunpack.c.h.b16 %v1159
    %v1749 = vunpack.c.l.b16 %v1160
    %v1750 = vunpack.c.h.b16 %v1160
    %v1751 = vunpack.c.l.b16 %v1161
    %v1752 = vunpack.c.h.b16 %v1161
    %v1753 = vunpack.c.l.b16 %v1162
    %v1754 = vunpack.c.h.b16 %v1162
    %v1755 = vunpack.c.l.b16 %v1163
    %v1756 = vunpack.c.h.b16 %v1163
    %v1757 = vunpack.c.l.b16 %v1164
    %v1758 = vunpack.c.h.b16 %v1164
    %v1759 = vunpack.c.l.b16 %v1165
    %v1760 = vunpack.c.h.b16 %v1165
    %v1761 = vunpack.c.l.b16 %v1166
    %v1762 = vunpack.c.h.b16 %v1166
    %v1763 = vunpack.c.l.b16 %v1167
    %v1764 = vunpack.c.h.b16 %v1167
    %v1765 = vunpack.c.l.b16 %v1168
    %v1766 = vunpack.c.h.b16 %v1168
    %v1767 = vunpack.c.l.b16 %v1169
    %v1768 = vunpack.c.h.b16 %v1169
    %v1769 = vunpack.c.l.b16 %v1170
    %v1770 = vunpack.c.h.b16 %v1170
    %v1771 = vunpack.c.l.b16 %v1171
    %v1772 = vunpack.c.h.b16 %v1171
    %v1773 = vunpack.c.l.b16 %v1172
    %v1774 = vunpack.c.h.b16 %v1172
    %v1775 = vunpack.c.l.b16 %v1173
    %v1776 = vunpack.c.h.b16 %v1173
    %v1777 = vunpack.c.l.b16 %v1174
    %v1778 = vunpack.c.h.b16 %v1174
    %v1779 = vunpack.c.l.b16 %v1175
    %v1780 = vunpack.c.h.b16 %v1175
    %v1781 = vunpack.c.l.b16 %v1176
    %v1782 = vunpack.c.h.b16 %v1176
    %v1783 = vunpack.c.l.b16 %v1177
    %v1784 = vunpack.c.h.b16 %v1177
    %v1785 = vunpack.c.l.b16 %v1178
    %v1786 = vunpack.c.h.b16 %v1178
    %v1787 = vunpack.c.l.b16 %v1179
    %v1788 = vunpack.c.h.b16 %v1179
    %v1789 = vunpack.c.l.b16 %v1180
    %v1790 = vunpack.c.h.b16 %v1180
    %v1791 = vunpack.c.l.b16 %v1181
    %v1792 = vunpack.c.h.b16 %v1181
    %v1793 = vunpack.c.l.b16 %v1182
    %v1794 = vunpack.c.h.b16 %v1182
    %v1795 = vunpack.c.l.b16 %v1183
    %v1796 = vunpack.c.h.b16 %v1183
    %v1797 = vunpack.c.l.b16 %v1184
    %v1798 = vunpack.c.h.b16 %v1184
    %v1799 = vunpack.c.l.b16 %v1185
    %v1800 = vunpack.c.h.b16 %v1185
    %v1801 = vunpack.c.l.b16 %v1186
    %v1802 = vunpack.c.h.b16 %v1186
    %v1803 = vunpack.c.l.b16 %v1187
    %v1804 = vunpack.c.h.b16 %v1187
    %v1805 = vunpack.c.l.b16 %v1188
    %v1806 = vunpack.c.h.b16 %v1188
    %v1807 = vunpack.c.l.b16 %v1189
    %v1808 = vunpack.c.h.b16 %v1189
    %v1809 = vunpack.c.l.b16 %v1190
    %v1810 = vunpack.c.h.b16 %v1190
    %v1811 = vunpack.c.l.b16 %v1191
    %v1812 = vunpack.c.h.b16 %v1191
    %v1813 = vunpack.c.l.b16 %v1192
    %v1814 = vunpack.c.h.b16 %v1192
    %v1815 = vunpack.c.l.b16 %v1193
    %v1816 = vunpack.c.h.b16 %v1193
    %v1817 = vunpack.c.l.b16 %v1194
    %v1818 = vunpack.c.h.b16 %v1194
    %v1819 = vunpack.c.l.b16 %v1195
    %v1820 = vunpack.c.h.b16 %v1195
    %v1821 = vunpack.c.l.b16 %v1196
    %v1822 = vunpack.c.h.b16 %v1196
    %v1823 = vunpack.c.l.b16 %v1197
    %v1824 = vunpack.c.h.b16 %v1197
    %v1825 = vunpack.c.l.b16 %v1198
    %v1826 = vunpack.c.h.b16 %v1198
    %v1827 = vunpack.c.l.b16 %v1199
    %v1828 = vunpack.c.h.b16 %v1199
    %v1829 = vunpack.c.l.b16 %v1200
    %v1830 = vunpack.c.h.b16 %v1200
    %v1831 = vunpack.c.l.b16 %v1201
    %v1832 = vunpack.c.h.b16 %v1201
    %v1833 = vunpack.c.l.b16 %v1202
    %v1834 = vunpack.c.h.b16 %v1202
    %v1835 = vunpack.c.l.b16 %v1203
    %v1836 = vunpack.c.h.b16 %v1203
    %v1837 = vunpack.c.l.b16 %v1204
    %v1838 = vunpack.c.h.b16 %v1204
    %v1839 = vunpack.c.l.b16 %v1205
    %v1840 = vunpack.c.h.b16 %v1205
    %v1841 = vunpack.c.l.b16 %v1206
    %v1842 = vunpack.c.h.b16 %v1206
    %v1843 = vunpack.c.l.b16 %v1207
    %v1844 = vunpack.c.h.b16 %v1207
    %v1845 = vunpack.c.l.b16 %v1208
    %v1846 = vunpack.c.h.b16 %v1208
    %v1847 = vunpack.c.l.b16 %v1209
    %v1848 = vunpack.c.h.b16 %v1209
    %v1849 = vunpack.c.l.b16 %v1210
    %v1850 = vunpack.c.h.b16 %v1210
    %v1851 = vunpack.c.l.b16 %v1211
    %v1852 = vunpack.c.h.b16 %v1211
    %v1853 = vunpack.c.l.b16 %v1212
    %v1854 = vunpack.c.h.b16 %v1212
    %v1855 = vunpack.c.l.b16 %v1213
    %v1856 = vunpack.c.h.b16 %v1213
    %v1857 = vunpack.c.l.b16 %v1214
    %v1858 = vunpack.c.h.b16 %v1214
    %v1859 = vunpack.c.l.b16 %v1215
    %v1860 = vunpack.c.h.b16 %v1215
    %v1861 = vunpack.c.l.b16 %v1216
    %v1862 = vunpack.c.h.b16 %v1216
    %v1863 = vunpack.c.l.b16 %v1217
    %v1864 = vunpack.c.h.b16 %v1217
    %v1865 = vunpack.c.l.b16 %v1218
    %v1866 = vunpack.c.h.b16 %v1218
    %v1867 = vunpack.c.l.b16 %v1219
    %v1868 = vunpack.c.h.b16 %v1219
    %v1869 = vunpack.c.l.b16 %v1220
    %v1870 = vunpack.c.h.b16 %v1220
    %v1871 = vunpack.c.l.b16 %v1221
    %v1872 = vunpack.c.h.b16 %v1221
    %v1873 = vunpack.c.l.b16 %v1222
    %v1874 = vunpack.c.h.b16 %v1222
    %v1875 = vunpack.c.l.b16 %v1223
    %v1876 = vunpack.c.h.b16 %v1223
    %v1877 = vunpack.c.l.b16 %v1224
    %v1878 = vunpack.c.h.b16 %v1224
    %v1879 = vunpack.c.l.b16 %v1225
    %v1880 = vunpack.c.h.b16 %v1225
    %v1881 = vunpack.c.l.b16 %v1226
    %v1882 = vunpack.c.h.b16 %v1226
    %v1883 = vunpack.c.l.b16 %v1227
    %v1884 = vunpack.c.h.b16 %v1227
    %v1885 = vunpack.c.l.b16 %v1228
    %v1886 = vunpack.c.h.b16 %v1228
    %v1887 = vunpack.c.l.b16 %v1229
    %v1888 = vunpack.c.h.b16 %v1229
    %v1889 = vunpack.c.l.b16 %v1230
    %v1890 = vunpack.c.h.b16 %v1230
    %v1891 = vunpack.c.l.b16 %v1231
    %v1892 = vunpack.c.h.b16 %v1231
    %v1893 = vunpack.c.l.b16 %v1232
    %v1894 = vunpack.c.h.b16 %v1232
    %v1895 = vunpack.c.l.b16 %v1233
    %v1896 = vunpack.c.h.b16 %v1233
    %v1897 = vunpack.c.l.b16 %v1234
    %v1898 = vunpack.c.h.b16 %v1234
    %v1899 = vunpack.c.l.b16 %v1235
    %v1900 = vunpack.c.h.b16 %v1235
    %v1901 = vunpack.c.l.b16 %v1236
    %v1902 = vunpack.c.h.b16 %v1236
    %v1903 = vunpack.c.l.b16 %v1237
    %v1904 = vunpack.c.h.b16 %v1237
    %v1905 = vunpack.c.l.b16 %v1238
    %v1906 = vunpack.c.h.b16 %v1238
    %v1907 = vunpack.c.l.b16 %v1239
    %v1908 = vunpack.c.h.b16 %v1239
    %v1909 = vunpack.c.l.b16 %v1240
    %v1910 = vunpack.c.h.b16 %v1240
    %v1911 = vunpack.c.l.b16 %v1241
    %v1912 = vunpack.c.h.b16 %v1241
    %v1913 = vunpack.c.l.b16 %v1242
    %v1914 = vunpack.c.h.b16 %v1242
    %v1915 = vunpack.c.l.b16 %v1243
    %v1916 = vunpack.c.h.b16 %v1243
    %v1917 = vunpack.c.l.b16 %v1244
    %v1918 = vunpack.c.h.b16 %v1244
    %v1919 = vunpack.c.l.b16 %v1245
    %v1920 = vunpack.c.h.b16 %v1245
    %v1921 = vunpack.c.l.b16 %v1246
    %v1922 = vunpack.c.h.b16 %v1246
    %v1923 = vunpack.c.l.b16 %v1247
    %v1924 = vunpack.c.h.b16 %v1247
    %v1925 = vunpack.c.l.b16 %v1248
    %v1926 = vunpack.c.h.b16 %v1248
    %v1927 = vunpack.c.l.b16 %v1249
    %v1928 = vunpack.c.h.b16 %v1249
    %v1929 = vunpack.c.l.b16 %v1250
    %v1930 = vunpack.c.h.b16 %v1250
    %v1931 = vunpack.c.l.b16 %v1251
    %v1932 = vunpack.c.h.b16 %v1251
    %v1933 = vunpack.c.l.b16 %v1252
    %v1934 = vunpack.c.h.b16 %v1252
    %v1935 = vunpack.c.l.b16 %v1253
    %v1936 = vunpack.c.h.b16 %v1253
    %v1937 = vunpack.c.l.b16 %v1254
    %v1938 = vunpack.c.h.b16 %v1254
    %v1939 = vunpack.c.l.b16 %v1255
    %v1940 = vunpack.c.h.b16 %v1255
    %v1941 = vunpack.c.l.b16 %v1256
    %v1942 = vunpack.c.h.b16 %v1256
    %v1943 = vunpack.c.l.b16 %v1257
    %v1944 = vunpack.c.h.b16 %v1257
    %v1945 = vunpack.c.l.b16 %v1258
    %v1946 = vunpack.c.h.b16 %v1258
    %v1947 = vunpack.c.l.b16 %v1259
    %v1948 = vunpack.c.h.b16 %v1259
    %v1949 = vunpack.c.l.b16 %v1260
    %v1950 = vunpack.c.h.b16 %v1260
    %v1951 = vunpack.c.l.b16 %v1261
    %v1952 = vunpack.c.h.b16 %v1261
    %v1953 = vunpack.c.l.b16 %v1262
    %v1954 = vunpack.c.h.b16 %v1262
    %v1955 = vunpack.c.l.b16 %v1263
    %v1956 = vunpack.c.h.b16 %v1263
    %v1957 = vunpack.c.l.b16 %v1264
    %v1958 = vunpack.c.h.b16 %v1264
    %v1959 = vunpack.c.l.b16 %v1265
    %v1960 = vunpack.c.h.b16 %v1265
    %v1961 = vunpack.c.l.b16 %v1266
    %v1962 = vunpack.c.h.b16 %v1266
    %v1963 = vunpack.c.l.b16 %v1267
    %v1964 = vunpack.c.h.b16 %v1267
    %v1965 = vunpack.c.l.b16 %v1268
    %v1966 = vunpack.c.h.b16 %v1268
    %v1967 = vunpack.c.l.b16 %v1269
    %v1968 = vunpack.c.h.b16 %v1269
    %v1969 = vunpack.c.l.b16 %v1270
    %v1970 = vunpack.c.h.b16 %v1270
    %v1971 = vunpack.c.l.b16 %v1271
    %v1972 = vunpack.c.h.b16 %v1271
    %v1973 = vunpack.c.l.b16 %v1272
    %v1974 = vunpack.c.h.b16 %v1272
    %v1975 = vunpack.c.l.b16 %v1273
    %v1976 = vunpack.c.h.b16 %v1273
    %v1977 = vunpack.c.l.b16 %v1274
    %v1978 = vunpack.c.h.b16 %v1274
    %v1979 = vunpack.c.l.b16 %v1275
    %v1980 = vunpack.c.h.b16 %v1275
    %v1981 = vunpack.c.l.b16 %v1276
    %v1982 = vunpack.c.h.b16 %v1276
    %v1983 = vunpack.c.l.b16 %v1277
    %v1984 = vunpack.c.h.b16 %v1277
    %v1985 = vunpack.c.l.b16 %v1278
    %v1986 = vunpack.c.h.b16 %v1278
    %v1987 = vunpack.c.l.b16 %v1279
    %v1988 = vunpack.c.h.b16 %v1279
    %v1989 = vunpack.c.l.b16 %v1280
    %v1990 = vunpack.c.h.b16 %v1280
    %v1991 = vunpack.c.l.b16 %v1281
    %v1992 = vunpack.c.h.b16 %v1281
    %v1993 = vunpack.c.l.b16 %v1282
    %v1994 = vunpack.c.h.b16 %v1282
    %v1995 = vunpack.c.l.b16 %v1283
    %v1996 = vunpack.c.h.b16 %v1283
    %v1997 = vunpack.c.l.b16 %v1284
    %v1998 = vunpack.c.h.b16 %v1284
    %v1999 = vunpack.c.l.b16 %v1285
    %v2000 = vunpack.c.h.b16 %v1285
    %v2001 = vunpack.c.l.b16 %v1286
    %v2002 = vunpack.c.h.b16 %v1286
    %v2003 = vunpack.c.l.b16 %v1287
    %v2004 = vunpack.c.h.b16 %v1287
    %v2005 = vunpack.c.l.b16 %v1288
    %v2006 = vunpack.c.h.b16 %v1288
    %v2007 = vunpack.c.l.b16 %v1289
    %v2008 = vunpack.c.h.b16 %v1289
    %v2009 = vunpack.c.l.b16 %v1290
    %v2010 = vunpack.c.h.b16 %v1290
    %v2011 = vunpack.c.l.b16 %v1291
    %v2012 = vunpack.c.h.b16 %v1291
    %v2013 = vunpack.c.l.b16 %v1292
    %v2014 = vunpack.c.h.b16 %v1292
    %v2015 = vunpack.c.l.b16 %v1293
    %v2016 = vunpack.c.h.b16 %v1293
    %v2017 = vunpack.c.l.b16 %v1294
    %v2018 = vunpack.c.h.b16 %v1294
    %v2019 = vunpack.c.l.b16 %v1295
    %v2020 = vunpack.c.h.b16 %v1295
    %v2021 = vunpack.c.l.b16 %v1296
    %v2022 = vunpack.c.h.b16 %v1296
    %v2023 = vunpack.c.l.b16 %v1297
    %v2024 = vunpack.c.h.b16 %v1297
    %v2025 = vunpack.c.l.b16 %v1298
    %v2026 = vunpack.c.h.b16 %v1298
    %v2027 = vunpack.c.l.b16 %v1299
    %v2028 = vunpack.c.h.b16 %v1299
    %v2029 = vunpack.c.l.b16 %v1300
    %v2030 = vunpack.c.h.b16 %v1300
    %v2031 = vunpack.c.l.b16 %v1301
    %v2032 = vunpack.c.h.b16 %v1301
    %v2033 = vunpack.c.l.b16 %v1302
    %v2034 = vunpack.c.h.b16 %v1302
    %v2035 = vunpack.c.l.b16 %v1303
    %v2036 = vunpack.c.h.b16 %v1303
    %v2037 = vunpack.c.l.b16 %v1304
    %v2038 = vunpack.c.h.b16 %v1304
    %v2039 = vunpack.c.l.b16 %v1305
    %v2040 = vunpack.c.h.b16 %v1305
    %v2041 = vunpack.c.l.b16 %v1306
    %v2042 = vunpack.c.h.b16 %v1306
    %v2043 = vunpack.c.l.b16 %v1307
    %v2044 = vunpack.c.h.b16 %v1307
    %v2045 = vunpack.c.l.b16 %v1308
    %v2046 = vunpack.c.h.b16 %v1308
    %v2047 = vunpack.c.l.b16 %v1309
    %v2048 = vunpack.c.h.b16 %v1309
    %v2049 = vunpack.c.l.b16 %v1310
    %v2050 = vunpack.c.h.b16 %v1310
    %v2051 = vunpack.c.l.b16 %v1311
    %v2052 = vunpack.c.h.b16 %v1311
    %v2053 = vunpack.c.l.b16 %v1312
    %v2054 = vunpack.c.h.b16 %v1312
    %v2055 = vunpack.c.l.b16 %v1313
    %v2056 = vunpack.c.h.b16 %v1313
    %v2057 = vunpack.c.l.b16 %v1314
    %v2058 = vunpack.c.h.b16 %v1314
    %v2059 = vunpack.c.l.b16 %v1315
    %v2060 = vunpack.c.h.b16 %v1315
    %v2061 = vunpack.c.l.b16 %v1316
    %v2062 = vunpack.c.h.b16 %v1316
    %v2063 = vunpack.c.l.b16 %v1317
    %v2064 = vunpack.c.h.b16 %v1317
    %v2065 = vunpack.c.l.b16 %v1318
    %v2066 = vunpack.c.h.b16 %v1318
    %v2067 = vunpack.c.l.b16 %v1319
    %v2068 = vunpack.c.h.b16 %v1319
    %v2069 = vunpack.c.l.b16 %v1320
    %v2070 = vunpack.c.h.b16 %v1320
    %v2071 = vunpack.c.l.b16 %v1321
    %v2072 = vunpack.c.h.b16 %v1321
    %v2073 = vunpack.c.l.b16 %v1322
    %v2074 = vunpack.c.h.b16 %v1322
    %v2075 = vunpack.c.l.b16 %v1323
    %v2076 = vunpack.c.h.b16 %v1323
    %v2077 = vunpack.c.l.b16 %v1324
    %v2078 = vunpack.c.h.b16 %v1324
    %v2079 = vunpack.c.l.b16 %v1325
    %v2080 = vunpack.c.h.b16 %v1325
    %v2081 = vunpack.c.l.b16 %v1326
    %v2082 = vunpack.c.h.b16 %v1326
    %v2083 = vunpack.c.l.b16 %v1327
    %v2084 = vunpack.c.h.b16 %v1327
    %v2085 = vunpack.c.l.b16 %v1328
    %v2086 = vunpack.c.h.b16 %v1328
    %v2087 = vunpack.c.l.b16 %v1329
    %v2088 = vunpack.c.h.b16 %v1329
    %v2089 = vunpack.c.l.b16 %v1330
    %v2090 = vunpack.c.h.b16 %v1330
    %v2091 = vunpack.c.l.b16 %v1331
    %v2092 = vunpack.c.h.b16 %v1331
    %v2093 = vunpack.c.l.b16 %v1332
    %v2094 = vunpack.c.h.b16 %v1332
    %v2095 = vunpack.c.l.b16 %v1333
    %v2096 = vunpack.c.h.b16 %v1333
    %v2097 = vunpack.c.l.b16 %v1334
    %v2098 = vunpack.c.h.b16 %v1334
    %v2099 = vunpack.c.l.b16 %v1335
    %v2100 = vunpack.c.h.b16 %v1335
    %v2101 = vunpack.c.l.b16 %v1336
    %v2102 = vunpack.c.h.b16 %v1336
    %v2103 = vunpack.c.l.b16 %v1337
    %v2104 = vunpack.c.h.b16 %v1337
    %v2105 = vunpack.c.l.b16 %v1338
    %v2106 = vunpack.c.h.b16 %v1338
    %v2107 = vpack.c.b16 %v1599, %v1595
    %v2108 = vpack.c.b16 %v1600, %v1596
    %v2109 = vpack.c.b16 %v1601, %v1597
    %v2110 = vpack.c.b16 %v1602, %v1598
    %v2111 = vpack.c.b16 %v1607, %v1603
    %v2112 = vpack.c.b16 %v1608, %v1604
    %v2113 = vpack.c.b16 %v1609, %v1605
    %v2114 = vpack.c.b16 %v1610, %v1606
    %v2115 = vpack.c.b16 %v1615, %v1611
    %v2116 = vpack.c.b16 %v1616, %v1612
    %v2117 = vpack.c.b16 %v1617, %v1613
    %v2118 = vpack.c.b16 %v1618, %v1614
    %v2119 = vpack.c.b16 %v1623, %v1619
    %v2120 = vpack.c.b16 %v1624, %v1620
    %v2121 = vpack.c.b16 %v1625, %v1621
    %v2122 = vpack.c.b16 %v1626, %v1622
    %v2123 = vpack.c.b16 %v1631, %v1627
    %v2124 = vpack.c.b16 %v1632, %v1628
    %v2125 = vpack.c.b16 %v1633, %v1629
    %v2126 = vpack.c.b16 %v1634, %v1630
    %v2127 = vpack.c.b16 %v1639, %v1635
    %v2128 = vpack.c.b16 %v1640, %v1636
    %v2129 = vpack.c.b16 %v1641, %v1637
    %v2130 = vpack.c.b16 %v1642, %v1638
    %v2131 = vpack.c.b16 %v1647, %v1643
    %v2132 = vpack.c.b16 %v1648, %v1644
    %v2133 = vpack.c.b16 %v1649, %v1645
    %v2134 = vpack.c.b16 %v1650, %v1646
    %v2135 = vpack.c.b16 %v1655, %v1651
    %v2136 = vpack.c.b16 %v1656, %v1652
    %v2137 = vpack.c.b16 %v1657, %v1653
    %v2138 = vpack.c.b16 %v1658, %v1654
    %v2139 = vpack.c.b16 %v1663, %v1659
    %v2140 = vpack.c.b16 %v1664, %v1660
    %v2141 = vpack.c.b16 %v1665, %v1661
    %v2142 = vpack.c.b16 %v1666, %v1662
    %v2143 = vpack.c.b16 %v1671, %v1667
    %v2144 = vpack.c.b16 %v1672, %v1668
    %v2145 = vpack.c.b16 %v1673, %v1669
    %v2146 = vpack.c.b16 %v1674, %v1670
    %v2147 = vpack.c.b16 %v1679, %v1675
    %v2148 = vpack.c.b16 %v1680, %v1676
    %v2149 = vpack.c.b16 %v1681, %v1677
    %v2150 = vpack.c.b16 %v1682, %v1678
    %v2151 = vpack.c.b16 %v1687, %v1683
    %v2152 = vpack.c.b16 %v1688, %v1684
    %v2153 = vpack.c.b16 %v1689, %v1685
    %v2154 = vpack.c.b16 %v1690, %v1686
    %v2155 = vpack.c.b16 %v1695, %v1691
    %v2156 = vpack.c.b16 %v1696, %v1692
    %v2157 = vpack.c.b16 %v1697, %v1693
    %v2158 = vpack.c.b16 %v1698, %v1694
    %v2159 = vpack.c.b16 %v1703, %v1699
    %v2160 = vpack.c.b16 %v1704, %v1700
    %v2161 = vpack.c.b16 %v1705, %v1701
    %v2162 = vpack.c.b16 %v1706, %v1702
    %v2163 = vpack.c.b16 %v1711, %v1707
    %v2164 = vpack.c.b16 %v1712, %v1708
    %v2165 = vpack.c.b16 %v1713, %v1709
    %v2166 = vpack.c.b16 %v1714, %v1710
    %v2167 = vpack.c.b16 %v1719, %v1715
    %v2168 = vpack.c.b16 %v1720, %v1716
    %v2169 = vpack.c.b16 %v1721, %v1717
    %v2170 = vpack.c.b16 %v1722, %v1718
    %v2171 = vpack.c.b16 %v1727, %v1723
    %v2172 = vpack.c.b16 %v1728, %v1724
    %v2173 = vpack.c.b16 %v1729, %v1725
    %v2174 = vpack.c.b16 %v1730, %v1726
    %v2175 = vpack.c.b16 %v1735, %v1731
    %v2176 = vpack.c.b16 %v1736, %v1732
    %v2177 = vpack.c.b16 %v1737, %v1733
    %v2178 = vpack.c.b16 %v1738, %v1734
    %v2179 = vpack.c.b16 %v1743, %v1739
    %v2180 = vpack.c.b16 %v1744, %v1740
    %v2181 = vpack.c.b16 %v1745, %v1741
    %v2182 = vpack.c.b16 %v1746, %v1742
    %v2183 = vpack.c.b16 %v1751, %v1747
    %v2184 = vpack.c.b16 %v1752, %v1748
    %v2185 = vpack.c.b16 %v1753, %v1749
    %v2186 = vpack.c.b16 %v1754, %v1750
    %v2187 = vpack.c.b16 %v1759, %v1755
    %v2188 = vpack.c.b16 %v1760, %v1756
    %v2189 = vpack.c.b16 %v1761, %v1757
    %v2190 = vpack.c.b16 %v1762, %v1758
    %v2191 = vpack.c.b16 %v1767, %v1763
    %v2192 = vpack.c.b16 %v1768, %v1764
    %v2193 = vpack.c.b16 %v1769, %v1765
    %v2194 = vpack.c.b16 %v1770, %v1766
    %v2195 = vpack.c.b16 %v1775, %v1771
    %v2196 = vpack.c.b16 %v1776, %v1772
    %v2197 = vpack.c.b16 %v1777, %v1773
    %v2198 = vpack.c.b16 %v1778, %v1774
    %v2199 = vpack.c.b16 %v1783, %v1779
    %v2200 = vpack.c.b16 %v1784, %v1780
    %v2201 = vpack.c.b16 %v1785, %v1781
    %v2202 = vpack.c.b16 %v1786, %v1782
    %v2203 = vpack.c.b16 %v1791, %v1787
    %v2204 = vpack.c.b16 %v1792, %v1788
    %v2205 = vpack.c.b16 %v1793, %v1789
    %v2206 = vpack.c.b16 %v1794, %v1790
    %v2207 = vpack.c.b16 %v1799, %v1795
    %v2208 = vpack.c.b16 %v1800, %v1796
    %v2209 = vpack.c.b16 %v1801, %v1797
    %v2210 = vpack.c.b16 %v1802, %v1798
    %v2211 = vpack.c.b16 %v1807, %v1803
    %v2212 = vpack.c.b16 %v1808, %v1804
    %v2213 = vpack.c.b16 %v1809, %v1805
    %v2214 = vpack.c.b16 %v1810, %v1806
    %v2215 = vpack.c.b16 %v1815, %v1811
    %v2216 = vpack.c.b16 %v1816, %v1812
    %v2217 = vpack.c.b16 %v1817, %v1813
    %v2218 = vpack.c.b16 %v1818, %v1814
    %v2219 = vpack.c.b16 %v1823, %v1819
    %v2220 = vpack.c.b16 %v1824, %v1820
    %v2221 = vpack.c.b16 %v1825, %v1821
    %v2222 = vpack.c.b16 %v1826, %v1822
    %v2223 = vpack.c.b16 %v1831, %v1827
    %v2224 = vpack.c.b16 %v1832, %v1828
    %v2225 = vpack.c.b16 %v1833, %v1829
    %v2226 = vpack.c.b16 %v1834, %v1830
    %v2227 = vpack.c.b16 %v1839, %v1835
    %v2228 = vpack.c.b16 %v1840, %v1836
    %v2229 = vpack.c.b16 %v1841, %v1837
    %v2230 = vpack.c.b16 %v1842, %v1838
    %v2231 = vpack.c.b16 %v1847, %v1843
    %v2232 = vpack.c.b16 %v1848, %v1844
    %v2233 = vpack.c.b16 %v1849, %v1845
    %v2234 = vpack.c.b16 %v1850, %v1846
    %v2235 = vpack.c.b16 %v1855, %v1851
    %v2236 = vpack.c.b16 %v1856, %v1852
    %v2237 = vpack.c.b16 %v1857, %v1853
    %v2238 = vpack.c.b16 %v1858, %v1854
    %v2239 = vpack.c.b16 %v1863, %v1859
    %v2240 = vpack.c.b16 %v1864, %v1860
    %v2241 = vpack.c.b16 %v1865, %v1861
    %v2242 = vpack.c.b16 %v1866, %v1862
    %v2243 = vpack.c.b16 %v1871, %v1867
    %v2244 = vpack.c.b16 %v1872, %v1868
    %v2245 = vpack.c.b16 %v1873, %v1869
    %v2246 = vpack.c.b16 %v1874, %v1870
    %v2247 = vpack.c.b16 %v1879, %v1875
    %v2248 = vpack.c.b16 %v1880, %v1876
    %v2249 = vpack.c.b16 %v1881, %v1877
    %v2250 = vpack.c.b16 %v1882, %v1878
    %v2251 = vpack.c.b16 %v1887, %v1883
    %v2252 = vpack.c.b16 %v1888, %v1884
    %v2253 = vpack.c.b16 %v1889, %v1885
    %v2254 = vpack.c.b16 %v1890, %v1886
    %v2255 = vpack.c.b16 %v1895, %v1891
    %v2256 = vpack.c.b16 %v1896, %v1892
    %v2257 = vpack.c.b16 %v1897, %v1893
    %v2258 = vpack.c.b16 %v1898, %v1894
    %v2259 = vpack.c.b16 %v1903, %v1899
    %v2260 = vpack.c.b16 %v1904, %v1900
    %v2261 = vpack.c.b16 %v1905, %v1901
    %v2262 = vpack.c.b16 %v1906, %v1902
    %v2263 = vpack.c.b16 %v1911, %v1907
    %v2264 = vpack.c.b16 %v1912, %v1908
    %v2265 = vpack.c.b16 %v1913, %v1909
    %v2266 = vpack.c.b16 %v1914, %v1910
    %v2267 = vpack.c.b16 %v1919, %v1915
    %v2268 = vpack.c.b16 %v1920, %v1916
    %v2269 = vpack.c.b16 %v1921, %v1917
    %v2270 = vpack.c.b16 %v1922, %v1918
    %v2271 = vpack.c.b16 %v1927, %v1923
    %v2272 = vpack.c.b16 %v1928, %v1924
    %v2273 = vpack.c.b16 %v1929, %v1925
    %v2274 = vpack.c.b16 %v1930, %v1926
    %v2275 = vpack.c.b16 %v1935, %v1931
    %v2276 = vpack.c.b16 %v1936, %v1932
    %v2277 = vpack.c.b16 %v1937, %v1933
    %v2278 = vpack.c.b16 %v1938, %v1934
    %v2279 = vpack.c.b16 %v1943, %v1939
    %v2280 = vpack.c.b16 %v1944, %v1940
    %v2281 = vpack.c.b16 %v1945, %v1941
    %v2282 = vpack.c.b16 %v1946, %v1942
    %v2283 = vpack.c.b16 %v1951, %v1947
    %v2284 = vpack.c.b16 %v1952, %v1948
    %v2285 = vpack.c.b16 %v1953, %v1949
    %v2286 = vpack.c.b16 %v1954, %v1950
    %v2287 = vpack.c.b16 %v1959, %v1955
    %v2288 = vpack.c.b16 %v1960, %v1956
    %v2289 = vpack.c.b16 %v1961, %v1957
    %v2290 = vpack.c.b16 %v1962, %v1958
    %v2291 = vpack.c.b16 %v1967, %v1963
    %v2292 = vpack.c.b16 %v1968, %v1964
    %v2293 = vpack.c.b16 %v1969, %v1965
    %v2294 = vpack.c.b16 %v1970, %v1966
    %v2295 = vpack.c.b16 %v1975, %v1971
    %v2296 = vpack.c.b16 %v1976, %v1972
    %v2297 = vpack.c.b16 %v1977, %v1973
    %v2298 = vpack.c.b16 %v1978, %v1974
    %v2299 = vpack.c.b16 %v1983, %v1979
    %v2300 = vpack.c.b16 %v1984, %v1980
    %v2301 = vpack.c.b16 %v1985, %v1981
    %v2302 = vpack.c.b16 %v1986, %v1982
    %v2303 = vpack.c.b16 %v1991, %v1987
    %v2304 = vpack.c.b16 %v1992, %v1988
    %v2305 = vpack.c.b16 %v1993, %v1989
    %v2306 = vpack.c.b16 %v1994, %v1990
    %v2307 = vpack.c.b16 %v1999, %v1995
    %v2308 = vpack.c.b16 %v2000, %v1996
    %v2309 = vpack.c.b16 %v2001, %v1997
    %v2310 = vpack.c.b16 %v2002, %v1998
    %v2311 = vpack.c.b16 %v2007, %v2003
    %v2312 = vpack.c.b16 %v2008, %v2004
    %v2313 = vpack.c.b16 %v2009, %v2005
    %v2314 = vpack.c.b16 %v2010, %v2006
    %v2315 = vpack.c.b16 %v2015, %v2011
    %v2316 = vpack.c.b16 %v2016, %v2012
    %v2317 = vpack.c.b16 %v2017, %v2013
    %v2318 = vpack.c.b16 %v2018, %v2014
    %v2319 = vpack.c.b16 %v2023, %v2019
    %v2320 = vpack.c.b16 %v2024, %v2020
    %v2321 = vpack.c.b16 %v2025, %v2021
    %v2322 = vpack.c.b16 %v2026, %v2022
    %v2323 = vpack.c.b16 %v2031, %v2027
    %v2324 = vpack.c.b16 %v2032, %v2028
    %v2325 = vpack.c.b16 %v2033, %v2029
    %v2326 = vpack.c.b16 %v2034, %v2030
    %v2327 = vpack.c.b16 %v2039, %v2035
    %v2328 = vpack.c.b16 %v2040, %v2036
    %v2329 = vpack.c.b16 %v2041, %v2037
    %v2330 = vpack.c.b16 %v2042, %v2038
    %v2331 = vpack.c.b16 %v2047, %v2043
    %v2332 = vpack.c.b16 %v2048, %v2044
    %v2333 = vpack.c.b16 %v2049, %v2045
    %v2334 = vpack.c.b16 %v2050, %v2046
    %v2335 = vpack.c.b16 %v2055, %v2051
    %v2336 = vpack.c.b16 %v2056, %v2052
    %v2337 = vpack.c.b16 %v2057, %v2053
    %v2338 = vpack.c.b16 %v2058, %v2054
    %v2339 = vpack.c.b16 %v2063, %v2059
    %v2340 = vpack.c.b16 %v2064, %v2060
    %v2341 = vpack.c.b16 %v2065, %v2061
    %v2342 = vpack.c.b16 %v2066, %v2062
    %v2343 = vpack.c.b16 %v2071, %v2067
    %v2344 = vpack.c.b16 %v2072, %v2068
    %v2345 = vpack.c.b16 %v2073, %v2069
    %v2346 = vpack.c.b16 %v2074, %v2070
    %v2347 = vpack.c.b16 %v2079, %v2075
    %v2348 = vpack.c.b16 %v2080, %v2076
    %v2349 = vpack.c.b16 %v2081, %v2077
    %v2350 = vpack.c.b16 %v2082, %v2078
    %v2351 = vpack.c.b16 %v2087, %v2083
    %v2352 = vpack.c.b16 %v2088, %v2084
    %v2353 = vpack.c.b16 %v2089, %v2085
    %v2354 = vpack.c.b16 %v2090, %v2086
    %v2355 = vpack.c.b16 %v2095, %v2091
    %v2356 = vpack.c.b16 %v2096, %v2092
    %v2357 = vpack.c.b16 %v2097, %v2093
    %v2358 = vpack.c.b16 %v2098, %v2094
    %v2359 = vpack.c.b16 %v2103, %v2099
    %v2360 = vpack.c.b16 %v2104, %v2100
    %v2361 = vpack.c.b16 %v2105, %v2101
    %v2362 = vpack.c.b16 %v2106, %v2102
    %2619 = vmatprep.subr.bf16.mxu0 %v2108
    %2620 = vmatpush1.bf16.msra.mxu0 %v2107
    %2621 = vmatprep.subr.bf16.mxu0 %v2112
    %2622 = vmatpush1.bf16.msra.mxu0 %v2111
    %2623 = vmatprep.subr.bf16.mxu0 %v2116
    %2624 = vmatpush1.bf16.msra.mxu0 %v2115
    %2625 = vmatprep.subr.bf16.mxu0 %v2120
    %2626 = vmatpush1.bf16.msra.mxu0 %v2119
    %2627 = vmatprep.subr.bf16.mxu0 %v2124
    %2628 = vmatpush1.bf16.msra.mxu0 %v2123
    %2629 = vmatprep.subr.bf16.mxu0 %v2128
    %2630 = vmatpush1.bf16.msra.mxu0 %v2127
    %2631 = vmatprep.subr.bf16.mxu0 %v2132
    %2632 = vmatpush1.bf16.msra.mxu0 %v2131
    %2633 = vmatprep.subr.bf16.mxu0 %v2136
    %2634 = vmatpush1.bf16.msra.mxu0 %v2135
    %2635 = vmatprep.subr.bf16.mxu0 %v2140
    %2636 = vmatpush1.bf16.msra.mxu0 %v2139
    %2637 = vmatprep.subr.bf16.mxu0 %v2144
    %2638 = vmatpush1.bf16.msra.mxu0 %v2143
    %2639 = vmatprep.subr.bf16.mxu0 %v2148
    %2640 = vmatpush1.bf16.msra.mxu0 %v2147
    %2641 = vmatprep.subr.bf16.mxu0 %v2152
    %2642 = vmatpush1.bf16.msra.mxu0 %v2151
    %2643 = vmatprep.subr.bf16.mxu0 %v2156
    %2644 = vmatpush1.bf16.msra.mxu0 %v2155
    %2645 = vmatprep.subr.bf16.mxu0 %v2160
    %2646 = vmatpush1.bf16.msra.mxu0 %v2159
    %2647 = vmatprep.subr.bf16.mxu0 %v2164
    %2648 = vmatpush1.bf16.msra.mxu0 %v2163
    %2649 = vmatprep.subr.bf16.mxu0 %v2168
    %2650 = vmatpush1.bf16.msra.mxu0 %v2167
    %2651 = vmatprep.mubr.bf16.mxu0 %v1076
    %2652 = vmatmul.mubr.bf16.gmra.mrb[0].mxu0 %v1075
    %v2653 = vpop.f32.mrb[0].mxu0
    %v2654 = vadd.f32 0.0, %v2653
    %v2655 = vpop.f32.mrb[0].mxu0
    %v2656 = vadd.f32 0.0, %v2655
    %v2657 = vpop.f32.mrb[0].mxu0
    %v2658 = vpop.f32.mrb[0].mxu0
    %2659 = vdwg.mxu0
    %2660 = vmatprep.subr.bf16.mxu0 %v2172
    %2661 = vmatpush1.bf16.msra.mxu0 %v2171
    %2662 = vmatprep.subr.bf16.mxu0 %v2176
    %2663 = vmatpush1.bf16.msra.mxu0 %v2175
    %2664 = vmatprep.subr.bf16.mxu0 %v2180
    %2665 = vmatpush1.bf16.msra.mxu0 %v2179
    %2666 = vmatprep.subr.bf16.mxu0 %v2184
    %2667 = vmatpush1.bf16.msra.mxu0 %v2183
    %2668 = vmatprep.subr.bf16.mxu0 %v2188
    %2669 = vmatpush1.bf16.msra.mxu0 %v2187
    %2670 = vmatprep.subr.bf16.mxu0 %v2192
    %2671 = vmatpush1.bf16.msra.mxu0 %v2191
    %2672 = vmatprep.subr.bf16.mxu0 %v2196
    %2673 = vmatpush1.bf16.msra.mxu0 %v2195
    %2674 = vmatprep.subr.bf16.mxu0 %v2200
    %2675 = vmatpush1.bf16.msra.mxu0 %v2199
    %2676 = vmatprep.subr.bf16.mxu0 %v2204
    %2677 = vmatpush1.bf16.msra.mxu0 %v2203
    %2678 = vmatprep.subr.bf16.mxu0 %v2208
    %2679 = vmatpush1.bf16.msra.mxu0 %v2207
    %2680 = vmatprep.subr.bf16.mxu0 %v2212
    %2681 = vmatpush1.bf16.msra.mxu0 %v2211
    %2682 = vmatprep.subr.bf16.mxu0 %v2216
    %2683 = vmatpush1.bf16.msra.mxu0 %v2215
    %2684 = vmatprep.subr.bf16.mxu0 %v2220
    %2685 = vmatpush1.bf16.msra.mxu0 %v2219
    %2686 = vmatprep.subr.bf16.mxu0 %v2224
    %2687 = vmatpush1.bf16.msra.mxu0 %v2223
    %2688 = vmatprep.subr.bf16.mxu0 %v2228
    %2689 = vmatpush1.bf16.msra.mxu0 %v2227
    %2690 = vmatprep.subr.bf16.mxu0 %v2232
    %2691 = vmatpush1.bf16.msra.mxu0 %v2231
    %2692 = vmatprep.mubr.bf16.mxu0 %v1078
    %2693 = vmatmul.mubr.bf16.gmra.mrb[0].mxu0 %v1077
    %v2694 = vpop.f32.mrb[0].mxu0
    %v2695 = vadd.f32 %v2654, %v2694
    %v2696 = vpop.f32.mrb[0].mxu0
    %v2697 = vadd.f32 %v2656, %v2696
    %v2698 = vpop.f32.mrb[0].mxu0
    %v2699 = vpop.f32.mrb[0].mxu0
    %2700 = vdwg.mxu0
    %2701 = vmatprep.subr.bf16.mxu0 %v2236
    %2702 = vmatpush1.bf16.msra.mxu0 %v2235
    %2703 = vmatprep.subr.bf16.mxu0 %v2240
    %2704 = vmatpush1.bf16.msra.mxu0 %v2239
    %2705 = vmatprep.subr.bf16.mxu0 %v2244
    %2706 = vmatpush1.bf16.msra.mxu0 %v2243
    %2707 = vmatprep.subr.bf16.mxu0 %v2248
    %2708 = vmatpush1.bf16.msra.mxu0 %v2247
    %2709 = vmatprep.subr.bf16.mxu0 %v2252
    %2710 = vmatpush1.bf16.msra.mxu0 %v2251
    %2711 = vmatprep.subr.bf16.mxu0 %v2256
    %2712 = vmatpush1.bf16.msra.mxu0 %v2255
    %2713 = vmatprep.subr.bf16.mxu0 %v2260
    %2714 = vmatpush1.bf16.msra.mxu0 %v2259
    %2715 = vmatprep.subr.bf16.mxu0 %v2264
    %2716 = vmatpush1.bf16.msra.mxu0 %v2263
    %2717 = vmatprep.subr.bf16.mxu0 %v2268
    %2718 = vmatpush1.bf16.msra.mxu0 %v2267
    %2719 = vmatprep.subr.bf16.mxu0 %v2272
    %2720 = vmatpush1.bf16.msra.mxu0 %v2271
    %2721 = vmatprep.subr.bf16.mxu0 %v2276
    %2722 = vmatpush1.bf16.msra.mxu0 %v2275
    %2723 = vmatprep.subr.bf16.mxu0 %v2280
    %2724 = vmatpush1.bf16.msra.mxu0 %v2279
    %2725 = vmatprep.subr.bf16.mxu0 %v2284
    %2726 = vmatpush1.bf16.msra.mxu0 %v2283
    %2727 = vmatprep.subr.bf16.mxu0 %v2288
    %2728 = vmatpush1.bf16.msra.mxu0 %v2287
    %2729 = vmatprep.subr.bf16.mxu0 %v2292
    %2730 = vmatpush1.bf16.msra.mxu0 %v2291
    %2731 = vmatprep.subr.bf16.mxu0 %v2296
    %2732 = vmatpush1.bf16.msra.mxu0 %v2295
    %2733 = vmatprep.mubr.bf16.mxu0 %v1080
    %2734 = vmatmul.mubr.bf16.gmra.mrb[0].mxu0 %v1079
    %v2735 = vpop.f32.mrb[0].mxu0
    %v2736 = vadd.f32 %v2695, %v2735
    %v2737 = vpop.f32.mrb[0].mxu0
    %v2738 = vadd.f32 %v2697, %v2737
    %v2739 = vpop.f32.mrb[0].mxu0
    %v2740 = vpop.f32.mrb[0].mxu0
    %2741 = vdwg.mxu0
    %2742 = vmatprep.subr.bf16.mxu0 %v2300
    %2743 = vmatpush1.bf16.msra.mxu0 %v2299
    %2744 = vmatprep.subr.bf16.mxu0 %v2304
    %2745 = vmatpush1.bf16.msra.mxu0 %v2303
    %2746 = vmatprep.subr.bf16.mxu0 %v2308
    %2747 = vmatpush1.bf16.msra.mxu0 %v2307
    %2748 = vmatprep.subr.bf16.mxu0 %v2312
    %2749 = vmatpush1.bf16.msra.mxu0 %v2311
    %2750 = vmatprep.subr.bf16.mxu0 %v2316
    %2751 = vmatpush1.bf16.msra.mxu0 %v2315
    %2752 = vmatprep.subr.bf16.mxu0 %v2320
    %2753 = vmatpush1.bf16.msra.mxu0 %v2319
    %2754 = vmatprep.subr.bf16.mxu0 %v2324
    %2755 = vmatpush1.bf16.msra.mxu0 %v2323
    %2756 = vmatprep.subr.bf16.mxu0 %v2328
    %2757 = vmatpush1.bf16.msra.mxu0 %v2327
    %2758 = vmatprep.subr.bf16.mxu0 %v2332
    %2759 = vmatpush1.bf16.msra.mxu0 %v2331
    %2760 = vmatprep.subr.bf16.mxu0 %v2336
    %2761 = vmatpush1.bf16.msra.mxu0 %v2335
    %2762 = vmatprep.subr.bf16.mxu0 %v2340
    %2763 = vmatpush1.bf16.msra.mxu0 %v2339
    %2764 = vmatprep.subr.bf16.mxu0 %v2344
    %2765 = vmatpush1.bf16.msra.mxu0 %v2343
    %2766 = vmatprep.subr.bf16.mxu0 %v2348
    %2767 = vmatpush1.bf16.msra.mxu0 %v2347
    %2768 = vmatprep.subr.bf16.mxu0 %v2352
    %2769 = vmatpush1.bf16.msra.mxu0 %v2351
    %2770 = vmatprep.subr.bf16.mxu0 %v2356
    %2771 = vmatpush1.bf16.msra.mxu0 %v2355
    %2772 = vmatprep.subr.bf16.mxu0 %v2360
    %2773 = vmatpush1.bf16.msra.mxu0 %v2359
    %2774 = vmatprep.mubr.bf16.mxu0 %v1082
    %2775 = vmatmul.mubr.bf16.gmra.mrb[0].mxu0 %v1081
    %v2776 = vpop.f32.mrb[0].mxu0
    %v2777 = vadd.f32 %v2736, %v2776
    %v2778 = vpop.f32.mrb[0].mxu0
    %v2779 = vadd.f32 %v2738, %v2778
    %v2780 = vpop.f32.mrb[0].mxu0
    %v2781 = vpop.f32.mrb[0].mxu0
    %2782 = vdwg.mxu0
    %2783 = vmatprep.subr.bf16.mxu0 %v2110
    %2784 = vmatpush1.bf16.msra.mxu0 %v2109
    %2785 = vmatprep.subr.bf16.mxu0 %v2114
    %2786 = vmatpush1.bf16.msra.mxu0 %v2113
    %2787 = vmatprep.subr.bf16.mxu0 %v2118
    %2788 = vmatpush1.bf16.msra.mxu0 %v2117
    %2789 = vmatprep.subr.bf16.mxu0 %v2122
    %2790 = vmatpush1.bf16.msra.mxu0 %v2121
    %2791 = vmatprep.subr.bf16.mxu0 %v2126
    %2792 = vmatpush1.bf16.msra.mxu0 %v2125
    %2793 = vmatprep.subr.bf16.mxu0 %v2130
    %2794 = vmatpush1.bf16.msra.mxu0 %v2129
    %2795 = vmatprep.subr.bf16.mxu0 %v2134
    %2796 = vmatpush1.bf16.msra.mxu0 %v2133
    %2797 = vmatprep.subr.bf16.mxu0 %v2138
    %2798 = vmatpush1.bf16.msra.mxu0 %v2137
    %2799 = vmatprep.subr.bf16.mxu0 %v2142
    %2800 = vmatpush1.bf16.msra.mxu0 %v2141
    %2801 = vmatprep.subr.bf16.mxu0 %v2146
    %2802 = vmatpush1.bf16.msra.mxu0 %v2145
    %2803 = vmatprep.subr.bf16.mxu0 %v2150
    %2804 = vmatpush1.bf16.msra.mxu0 %v2149
    %2805 = vmatprep.subr.bf16.mxu0 %v2154
    %2806 = vmatpush1.bf16.msra.mxu0 %v2153
    %2807 = vmatprep.subr.bf16.mxu0 %v2158
    %2808 = vmatpush1.bf16.msra.mxu0 %v2157
    %2809 = vmatprep.subr.bf16.mxu0 %v2162
    %2810 = vmatpush1.bf16.msra.mxu0 %v2161
    %2811 = vmatprep.subr.bf16.mxu0 %v2166
    %2812 = vmatpush1.bf16.msra.mxu0 %v2165
    %2813 = vmatprep.subr.bf16.mxu0 %v2170
    %2814 = vmatpush1.bf16.msra.mxu0 %v2169
    %2815 = vmatprep.mubr.bf16.mxu0 %v1076
    %2816 = vmatmul.mubr.bf16.gmra.mrb[0].mxu0 %v1075
    %v2817 = vpop.f32.mrb[0].mxu0
    %v2818 = vadd.f32 0.0, %v2817
    %v2819 = vpop.f32.mrb[0].mxu0
    %v2820 = vadd.f32 0.0, %v2819
    %v2821 = vpop.f32.mrb[0].mxu0
    %v2822 = vpop.f32.mrb[0].mxu0
    %2823 = vdwg.mxu0
    %2824 = vmatprep.subr.bf16.mxu0 %v2174
    %2825 = vmatpush1.bf16.msra.mxu0 %v2173
    %2826 = vmatprep.subr.bf16.mxu0 %v2178
    %2827 = vmatpush1.bf16.msra.mxu0 %v2177
    %2828 = vmatprep.subr.bf16.mxu0 %v2182
    %2829 = vmatpush1.bf16.msra.mxu0 %v2181
    %2830 = vmatprep.subr.bf16.mxu0 %v2186
    %2831 = vmatpush1.bf16.msra.mxu0 %v2185
    %2832 = vmatprep.subr.bf16.mxu0 %v2190
    %2833 = vmatpush1.bf16.msra.mxu0 %v2189
    %2834 = vmatprep.subr.bf16.mxu0 %v2194
    %2835 = vmatpush1.bf16.msra.mxu0 %v2193
    %2836 = vmatprep.subr.bf16.mxu0 %v2198
    %2837 = vmatpush1.bf16.msra.mxu0 %v2197
    %2838 = vmatprep.subr.bf16.mxu0 %v2202
    %2839 = vmatpush1.bf16.msra.mxu0 %v2201
    %2840 = vmatprep.subr.bf16.mxu0 %v2206
    %2841 = vmatpush1.bf16.msra.mxu0 %v2205
    %2842 = vmatprep.subr.bf16.mxu0 %v2210
    %2843 = vmatpush1.bf16.msra.mxu0 %v2209
    %2844 = vmatprep.subr.bf16.mxu0 %v2214
    %2845 = vmatpush1.bf16.msra.mxu0 %v2213
    %2846 = vmatprep.subr.bf16.mxu0 %v2218
    %2847 = vmatpush1.bf16.msra.mxu0 %v2217
    %2848 = vmatprep.subr.bf16.mxu0 %v2222
    %2849 = vmatpush1.bf16.msra.mxu0 %v2221
    %2850 = vmatprep.subr.bf16.mxu0 %v2226
    %2851 = vmatpush1.bf16.msra.mxu0 %v2225
    %2852 = vmatprep.subr.bf16.mxu0 %v2230
    %2853 = vmatpush1.bf16.msra.mxu0 %v2229
    %2854 = vmatprep.subr.bf16.mxu0 %v2234
    %2855 = vmatpush1.bf16.msra.mxu0 %v2233
    %2856 = vmatprep.mubr.bf16.mxu0 %v1078
    %2857 = vmatmul.mubr.bf16.gmra.mrb[0].mxu0 %v1077
    %v2858 = vpop.f32.mrb[0].mxu0
    %v2859 = vadd.f32 %v2818, %v2858
    %v2860 = vpop.f32.mrb[0].mxu0
    %v2861 = vadd.f32 %v2820, %v2860
    %v2862 = vpop.f32.mrb[0].mxu0
    %v2863 = vpop.f32.mrb[0].mxu0
    %2864 = vdwg.mxu0
    %2865 = vmatprep.subr.bf16.mxu0 %v2238
    %2866 = vmatpush1.bf16.msra.mxu0 %v2237
    %2867 = vmatprep.subr.bf16.mxu0 %v2242
    %2868 = vmatpush1.bf16.msra.mxu0 %v2241
    %2869 = vmatprep.subr.bf16.mxu0 %v2246
    %2870 = vmatpush1.bf16.msra.mxu0 %v2245
    %2871 = vmatprep.subr.bf16.mxu0 %v2250
    %2872 = vmatpush1.bf16.msra.mxu0 %v2249
    %2873 = vmatprep.subr.bf16.mxu0 %v2254
    %2874 = vmatpush1.bf16.msra.mxu0 %v2253
    %2875 = vmatprep.subr.bf16.mxu0 %v2258
    %2876 = vmatpush1.bf16.msra.mxu0 %v2257
    %2877 = vmatprep.subr.bf16.mxu0 %v2262
    %2878 = vmatpush1.bf16.msra.mxu0 %v2261
    %2879 = vmatprep.subr.bf16.mxu0 %v2266
    %2880 = vmatpush1.bf16.msra.mxu0 %v2265
    %2881 = vmatprep.subr.bf16.mxu0 %v2270
    %2882 = vmatpush1.bf16.msra.mxu0 %v2269
    %2883 = vmatprep.subr.bf16.mxu0 %v2274
    %2884 = vmatpush1.bf16.msra.mxu0 %v2273
    %2885 = vmatprep.subr.bf16.mxu0 %v2278
    %2886 = vmatpush1.bf16.msra.mxu0 %v2277
    %2887 = vmatprep.subr.bf16.mxu0 %v2282
    %2888 = vmatpush1.bf16.msra.mxu0 %v2281
    %2889 = vmatprep.subr.bf16.mxu0 %v2286
    %2890 = vmatpush1.bf16.msra.mxu0 %v2285
    %2891 = vmatprep.subr.bf16.mxu0 %v2290
    %2892 = vmatpush1.bf16.msra.mxu0 %v2289
    %2893 = vmatprep.subr.bf16.mxu0 %v2294
    %2894 = vmatpush1.bf16.msra.mxu0 %v2293
    %2895 = vmatprep.subr.bf16.mxu0 %v2298
    %2896 = vmatpush1.bf16.msra.mxu0 %v2297
    %2897 = vmatprep.mubr.bf16.mxu0 %v1080
    %2898 = vmatmul.mubr.bf16.gmra.mrb[0].mxu0 %v1079
    %v2899 = vpop.f32.mrb[0].mxu0
    %v2900 = vadd.f32 %v2859, %v2899
    %v2901 = vpop.f32.mrb[0].mxu0
    %v2902 = vadd.f32 %v2861, %v2901
    %v2903 = vpop.f32.mrb[0].mxu0
    %v2904 = vpop.f32.mrb[0].mxu0
    %2905 = vdwg.mxu0
    %2906 = vmatprep.subr.bf16.mxu0 %v2302
    %2907 = vmatpush1.bf16.msra.mxu0 %v2301
    %2908 = vmatprep.subr.bf16.mxu0 %v2306
    %2909 = vmatpush1.bf16.msra.mxu0 %v2305
    %2910 = vmatprep.subr.bf16.mxu0 %v2310
    %2911 = vmatpush1.bf16.msra.mxu0 %v2309
    %2912 = vmatprep.subr.bf16.mxu0 %v2314
    %2913 = vmatpush1.bf16.msra.mxu0 %v2313
    %2914 = vmatprep.subr.bf16.mxu0 %v2318
    %2915 = vmatpush1.bf16.msra.mxu0 %v2317
    %2916 = vmatprep.subr.bf16.mxu0 %v2322
    %2917 = vmatpush1.bf16.msra.mxu0 %v2321
    %2918 = vmatprep.subr.bf16.mxu0 %v2326
    %2919 = vmatpush1.bf16.msra.mxu0 %v2325
    %2920 = vmatprep.subr.bf16.mxu0 %v2330
    %2921 = vmatpush1.bf16.msra.mxu0 %v2329
    %2922 = vmatprep.subr.bf16.mxu0 %v2334
    %2923 = vmatpush1.bf16.msra.mxu0 %v2333
    %2924 = vmatprep.subr.bf16.mxu0 %v2338
    %2925 = vmatpush1.bf16.msra.mxu0 %v2337
    %2926 = vmatprep.subr.bf16.mxu0 %v2342
    %2927 = vmatpush1.bf16.msra.mxu0 %v2341
    %2928 = vmatprep.subr.bf16.mxu0 %v2346
    %2929 = vmatpush1.bf16.msra.mxu0 %v2345
    %2930 = vmatprep.subr.bf16.mxu0 %v2350
    %2931 = vmatpush1.bf16.msra.mxu0 %v2349
    %2932 = vmatprep.subr.bf16.mxu0 %v2354
    %2933 = vmatpush1.bf16.msra.mxu0 %v2353
    %2934 = vmatprep.subr.bf16.mxu0 %v2358
    %2935 = vmatpush1.bf16.msra.mxu0 %v2357
    %2936 = vmatprep.subr.bf16.mxu0 %v2362
    %2937 = vmatpush1.bf16.msra.mxu0 %v2361
    %2938 = vmatprep.mubr.bf16.mxu0 %v1082
    %2939 = vmatmul.mubr.bf16.gmra.mrb[0].mxu0 %v1081
    %v2940 = vpop.f32.mrb[0].mxu0
    %v2941 = vadd.f32 %v2900, %v2940
    %v2942 = vpop.f32.mrb[0].mxu0
    %v2943 = vadd.f32 %v2902, %v2942
    %v2944 = vpop.f32.mrb[0].mxu0
    %v2945 = vpop.f32.mrb[0].mxu0
    %2946 = vdwg.mxu0
    %vm2947 = vcmask 1041408
    %v2948 = vsel %vm2947, %v2777, 0.0
    %v2949 = vrot.slane %v2948, 4
    %v2950 = vadd.f32 %v2948, %v2949
    %v2951 = vrot.slane %v2950, 2
    %v2952 = vadd.f32 %v2950, %v2951
    %v2953 = vrot.slane %v2952, 1
    %v2954 = vadd.f32 %v2952, %v2953
    %v2955 = vsel %vm2947, %v2779, 0.0
    %v2956 = vrot.slane %v2955, 4
    %v2957 = vadd.f32 %v2955, %v2956
    %v2958 = vrot.slane %v2957, 2
    %v2959 = vadd.f32 %v2957, %v2958
    %v2960 = vrot.slane %v2959, 1
    %v2961 = vadd.f32 %v2959, %v2960
    %v2962 = vsel %vm2947, %v2941, 0.0
    %v2963 = vrot.slane %v2962, 4
    %v2964 = vadd.f32 %v2962, %v2963
    %v2965 = vrot.slane %v2964, 2
    %v2966 = vadd.f32 %v2964, %v2965
    %v2967 = vrot.slane %v2966, 1
    %v2968 = vadd.f32 %v2966, %v2967
    %v2969 = vsel %vm2947, %v2943, 0.0
    %v2970 = vrot.slane %v2969, 4
    %v2971 = vadd.f32 %v2969, %v2970
    %v2972 = vrot.slane %v2971, 2
    %v2973 = vadd.f32 %v2971, %v2972
    %v2974 = vrot.slane %v2973, 1
    %v2975 = vadd.f32 %v2973, %v2974
    %v2976 = vld [vmem:[%s4] sm:$0xff]
    %v2977 = vld [vmem:[%s4 + $0x8] sm:$0xff]
    %v2978 = vld [vmem:[%s4 + $0x10] sm:$0xff]
    %v2979 = vld [vmem:[%s4 + $0x18] sm:$0xff]
    %v2980 = vld [vmem:[%s4 + $0x20] sm:$0xff]
    %v2981 = vld [vmem:[%s4 + $0x28] sm:$0xff]
    %v2982 = vld [vmem:[%s4 + $0x30] sm:$0xff]
    %v2983 = vld [vmem:[%s4 + $0x38] sm:$0xff]
    %v2984 = vld [vmem:[%s4 + $0x40] sm:$0xff]
    %v2985 = vld [vmem:[%s4 + $0x48] sm:$0xff]
    %v2986 = vld [vmem:[%s4 + $0x50] sm:$0xff]
    %v2987 = vld [vmem:[%s4 + $0x58] sm:$0xff]
    %v2988 = vld [vmem:[%s4 + $0x60] sm:$0xff]
    %v2989 = vld [vmem:[%s4 + $0x68] sm:$0xff]
    %v2990 = vld [vmem:[%s4 + $0x70] sm:$0xff]
    %v2991 = vld [vmem:[%s4 + $0x78] sm:$0xff]
    %v2992 = vld [vmem:[%s4 + $0x80] sm:$0xff]
    %v2993 = vld [vmem:[%s4 + $0x88] sm:$0xff]
    %v2994 = vld [vmem:[%s4 + $0x90] sm:$0xff]
    %v2995 = vld [vmem:[%s4 + $0x98] sm:$0xff]
    %v2996 = vld [vmem:[%s4 + $0xa0] sm:$0xff]
    %v2997 = vld [vmem:[%s4 + $0xa8] sm:$0xff]
    %v2998 = vld [vmem:[%s4 + $0xb0] sm:$0xff]
    %v2999 = vld [vmem:[%s4 + $0xb8] sm:$0xff]
    %v3000 = vld [vmem:[%s4 + $0xc0] sm:$0xff]
    %v3001 = vld [vmem:[%s4 + $0xc8] sm:$0xff]
    %v3002 = vld [vmem:[%s4 + $0xd0] sm:$0xff]
    %v3003 = vld [vmem:[%s4 + $0xd8] sm:$0xff]
    %v3004 = vld [vmem:[%s4 + $0xe0] sm:$0xff]
    %v3005 = vld [vmem:[%s4 + $0xe8] sm:$0xff]
    %v3006 = vld [vmem:[%s4 + $0xf0] sm:$0xff]
    %v3007 = vld [vmem:[%s4 + $0xf8] sm:$0xff]
    %v3008 = vld [vmem:[%s4 + $0x100] sm:$0xff]
    %v3009 = vld [vmem:[%s4 + $0x108] sm:$0xff]
    %v3010 = vld [vmem:[%s4 + $0x110] sm:$0xff]
    %v3011 = vld [vmem:[%s4 + $0x118] sm:$0xff]
    %v3012 = vld [vmem:[%s4 + $0x120] sm:$0xff]
    %v3013 = vld [vmem:[%s4 + $0x128] sm:$0xff]
    %v3014 = vld [vmem:[%s4 + $0x130] sm:$0xff]
    %v3015 = vld [vmem:[%s4 + $0x138] sm:$0xff]
    %v3016 = vld [vmem:[%s4 + $0x140] sm:$0xff]
    %v3017 = vld [vmem:[%s4 + $0x148] sm:$0xff]
    %v3018 = vld [vmem:[%s4 + $0x150] sm:$0xff]
    %v3019 = vld [vmem:[%s4 + $0x158] sm:$0xff]
    %v3020 = vld [vmem:[%s4 + $0x160] sm:$0xff]
    %v3021 = vld [vmem:[%s4 + $0x168] sm:$0xff]
    %v3022 = vld [vmem:[%s4 + $0x170] sm:$0xff]
    %v3023 = vld [vmem:[%s4 + $0x178] sm:$0xff]
    %v3024 = vld [vmem:[%s4 + $0x180] sm:$0xff]
    %v3025 = vld [vmem:[%s4 + $0x188] sm:$0xff]
    %v3026 = vld [vmem:[%s4 + $0x190] sm:$0xff]
    %v3027 = vld [vmem:[%s4 + $0x198] sm:$0xff]
    %v3028 = vld [vmem:[%s4 + $0x1a0] sm:$0xff]
    %v3029 = vld [vmem:[%s4 + $0x1a8] sm:$0xff]
    %v3030 = vld [vmem:[%s4 + $0x1b0] sm:$0xff]
    %v3031 = vld [vmem:[%s4 + $0x1b8] sm:$0xff]
    %v3032 = vld [vmem:[%s4 + $0x1c0] sm:$0xff]
    %v3033 = vld [vmem:[%s4 + $0x1c8] sm:$0xff]
    %v3034 = vld [vmem:[%s4 + $0x1d0] sm:$0xff]
    %v3035 = vld [vmem:[%s4 + $0x1d8] sm:$0xff]
    %v3036 = vld [vmem:[%s4 + $0x1e0] sm:$0xff]
    %v3037 = vld [vmem:[%s4 + $0x1e8] sm:$0xff]
    %v3038 = vld [vmem:[%s4 + $0x1f0] sm:$0xff]
    %v3039 = vld [vmem:[%s4 + $0x1f8] sm:$0xff]
    %3040 = vmatprep.subr.mxu0 0.0
    %3041 = vmatpush1.msra.mxu0 %v2976
    %3042 = vmatprep.subr.mxu0 0.0
    %3043 = vmatpush1.msra.mxu0 %v2977
    %3044 = vmatprep.subr.mxu0 0.0
    %3045 = vmatpush1.msra.mxu0 %v2978
    %3046 = vmatprep.subr.mxu0 0.0
    %3047 = vmatpush1.msra.mxu0 %v2979
    %3048 = vmatprep.subr.mxu0 0.0
    %3049 = vmatpush1.msra.mxu0 %v2980
    %3050 = vmatprep.subr.mxu0 0.0
    %3051 = vmatpush1.msra.mxu0 %v2981
    %3052 = vmatprep.subr.mxu0 0.0
    %3053 = vmatpush1.msra.mxu0 %v2982
    %3054 = vmatprep.subr.mxu0 0.0
    %3055 = vmatpush1.msra.mxu0 %v2983
    %3056 = vmatprep.subr.mxu0 0.0
    %3057 = vmatpush1.msra.mxu0 %v2984
    %3058 = vmatprep.subr.mxu0 0.0
    %3059 = vmatpush1.msra.mxu0 %v2985
    %3060 = vmatprep.subr.mxu0 0.0
    %3061 = vmatpush1.msra.mxu0 %v2986
    %3062 = vmatprep.subr.mxu0 0.0
    %3063 = vmatpush1.msra.mxu0 %v2987
    %3064 = vmatprep.subr.mxu0 0.0
    %3065 = vmatpush1.msra.mxu0 %v2988
    %3066 = vmatprep.subr.mxu0 0.0
    %3067 = vmatpush1.msra.mxu0 %v2989
    %3068 = vmatprep.subr.mxu0 0.0
    %3069 = vmatpush1.msra.mxu0 %v2990
    %3070 = vmatprep.subr.mxu0 0.0
    %3071 = vmatpush1.msra.mxu0 %v2991
    %3072 = vmatprep.subr.mxu0 0.0
    %3073 = vmatpush1.msra.mxu0 %v2992
    %3074 = vmatprep.subr.mxu0 0.0
    %3075 = vmatpush1.msra.mxu0 %v2993
    %3076 = vmatprep.subr.mxu0 0.0
    %3077 = vmatpush1.msra.mxu0 %v2994
    %3078 = vmatprep.subr.mxu0 0.0
    %3079 = vmatpush1.msra.mxu0 %v2995
    %3080 = vmatprep.subr.mxu0 0.0
    %3081 = vmatpush1.msra.mxu0 %v2996
    %3082 = vmatprep.subr.mxu0 0.0
    %3083 = vmatpush1.msra.mxu0 %v2997
    %3084 = vmatprep.subr.mxu0 0.0
    %3085 = vmatpush1.msra.mxu0 %v2998
    %3086 = vmatprep.subr.mxu0 0.0
    %3087 = vmatpush1.msra.mxu0 %v2999
    %3088 = vmatprep.subr.mxu0 0.0
    %3089 = vmatpush1.msra.mxu0 %v3000
    %3090 = vmatprep.subr.mxu0 0.0
    %3091 = vmatpush1.msra.mxu0 %v3001
    %3092 = vmatprep.subr.mxu0 0.0
    %3093 = vmatpush1.msra.mxu0 %v3002
    %3094 = vmatprep.subr.mxu0 0.0
    %3095 = vmatpush1.msra.mxu0 %v3003
    %3096 = vmatprep.subr.mxu0 0.0
    %3097 = vmatpush1.msra.mxu0 %v3004
    %3098 = vmatprep.subr.mxu0 0.0
    %3099 = vmatpush1.msra.mxu0 %v3005
    %3100 = vmatprep.subr.mxu0 0.0
    %3101 = vmatpush1.msra.mxu0 %v3006
    %3102 = vmatprep.subr.mxu0 0.0
    %3103 = vmatpush1.msra.mxu0 %v3007
    %3104 = vmatprep.mubr.f32.mxu0 %v2961
    %3105 = vmatmul.mubr.f32.gmra.mrb[0].mxu0 %v2954
    %v3106 = vpop.f32.mrb[0].mxu0
    %v3107 = vadd.f32 0.0, %v3106
    %v3108 = vpop.f32.mrb[0].mxu0
    %3109 = vdwg.mxu0
    %3110 = vmatprep.subr.mxu0 0.0
    %3111 = vmatpush1.msra.mxu0 %v3008
    %3112 = vmatprep.subr.mxu0 0.0
    %3113 = vmatpush1.msra.mxu0 %v3009
    %3114 = vmatprep.subr.mxu0 0.0
    %3115 = vmatpush1.msra.mxu0 %v3010
    %3116 = vmatprep.subr.mxu0 0.0
    %3117 = vmatpush1.msra.mxu0 %v3011
    %3118 = vmatprep.subr.mxu0 0.0
    %3119 = vmatpush1.msra.mxu0 %v3012
    %3120 = vmatprep.subr.mxu0 0.0
    %3121 = vmatpush1.msra.mxu0 %v3013
    %3122 = vmatprep.subr.mxu0 0.0
    %3123 = vmatpush1.msra.mxu0 %v3014
    %3124 = vmatprep.subr.mxu0 0.0
    %3125 = vmatpush1.msra.mxu0 %v3015
    %3126 = vmatprep.subr.mxu0 0.0
    %3127 = vmatpush1.msra.mxu0 %v3016
    %3128 = vmatprep.subr.mxu0 0.0
    %3129 = vmatpush1.msra.mxu0 %v3017
    %3130 = vmatprep.subr.mxu0 0.0
    %3131 = vmatpush1.msra.mxu0 %v3018
    %3132 = vmatprep.subr.mxu0 0.0
    %3133 = vmatpush1.msra.mxu0 %v3019
    %3134 = vmatprep.subr.mxu0 0.0
    %3135 = vmatpush1.msra.mxu0 %v3020
    %3136 = vmatprep.subr.mxu0 0.0
    %3137 = vmatpush1.msra.mxu0 %v3021
    %3138 = vmatprep.subr.mxu0 0.0
    %3139 = vmatpush1.msra.mxu0 %v3022
    %3140 = vmatprep.subr.mxu0 0.0
    %3141 = vmatpush1.msra.mxu0 %v3023
    %3142 = vmatprep.subr.mxu0 0.0
    %3143 = vmatpush1.msra.mxu0 %v3024
    %3144 = vmatprep.subr.mxu0 0.0
    %3145 = vmatpush1.msra.mxu0 %v3025
    %3146 = vmatprep.subr.mxu0 0.0
    %3147 = vmatpush1.msra.mxu0 %v3026
    %3148 = vmatprep.subr.mxu0 0.0
    %3149 = vmatpush1.msra.mxu0 %v3027
    %3150 = vmatprep.subr.mxu0 0.0
    %3151 = vmatpush1.msra.mxu0 %v3028
    %3152 = vmatprep.subr.mxu0 0.0
    %3153 = vmatpush1.msra.mxu0 %v3029
    %3154 = vmatprep.subr.mxu0 0.0
    %3155 = vmatpush1.msra.mxu0 %v3030
    %3156 = vmatprep.subr.mxu0 0.0
    %3157 = vmatpush1.msra.mxu0 %v3031
    %3158 = vmatprep.subr.mxu0 0.0
    %3159 = vmatpush1.msra.mxu0 %v3032
    %3160 = vmatprep.subr.mxu0 0.0
    %3161 = vmatpush1.msra.mxu0 %v3033
    %3162 = vmatprep.subr.mxu0 0.0
    %3163 = vmatpush1.msra.mxu0 %v3034
    %3164 = vmatprep.subr.mxu0 0.0
    %3165 = vmatpush1.msra.mxu0 %v3035
    %3166 = vmatprep.subr.mxu0 0.0
    %3167 = vmatpush1.msra.mxu0 %v3036
    %3168 = vmatprep.subr.mxu0 0.0
    %3169 = vmatpush1.msra.mxu0 %v3037
    %3170 = vmatprep.subr.mxu0 0.0
    %3171 = vmatpush1.msra.mxu0 %v3038
    %3172 = vmatprep.subr.mxu0 0.0
    %3173 = vmatpush1.msra.mxu0 %v3039
    %3174 = vmatprep.mubr.f32.mxu0 %v2975
    %3175 = vmatmul.mubr.f32.gmra.mrb[0].mxu0 %v2968
    %v3176 = vpop.f32.mrb[0].mxu0
    %v3177 = vadd.f32 %v3107, %v3176
    %v3178 = vpop.f32.mrb[0].mxu0
    %3179 = vdwg.mxu0
    %v3180 = vmul.f32 %v2777, %v2777
    %v3181 = vmul.f32 %v2779, %v2779
    %v3182 = vmul.f32 %v2941, %v2941
    %v3183 = vmul.f32 %v2943, %v2943
    %v3184 = vsel %vm2947, %v3180, 0.0
    %v3185 = vrot.slane %v3184, 4
    %v3186 = vadd.f32 %v3184, %v3185
    %v3187 = vrot.slane %v3186, 2
    %v3188 = vadd.f32 %v3186, %v3187
    %v3189 = vrot.slane %v3188, 1
    %v3190 = vadd.f32 %v3188, %v3189
    %v3191 = vsel %vm2947, %v3181, 0.0
    %v3192 = vrot.slane %v3191, 4
    %v3193 = vadd.f32 %v3191, %v3192
    %v3194 = vrot.slane %v3193, 2
    %v3195 = vadd.f32 %v3193, %v3194
    %v3196 = vrot.slane %v3195, 1
    %v3197 = vadd.f32 %v3195, %v3196
    %v3198 = vsel %vm2947, %v3182, 0.0
    %v3199 = vrot.slane %v3198, 4
    %v3200 = vadd.f32 %v3198, %v3199
    %v3201 = vrot.slane %v3200, 2
    %v3202 = vadd.f32 %v3200, %v3201
    %v3203 = vrot.slane %v3202, 1
    %v3204 = vadd.f32 %v3202, %v3203
    %v3205 = vsel %vm2947, %v3183, 0.0
    %v3206 = vrot.slane %v3205, 4
    %v3207 = vadd.f32 %v3205, %v3206
    %v3208 = vrot.slane %v3207, 2
    %v3209 = vadd.f32 %v3207, %v3208
    %v3210 = vrot.slane %v3209, 1
    %v3211 = vadd.f32 %v3209, %v3210
    %3212 = vmatprep.subr.mxu0 0.0
    %3213 = vmatpush1.msra.mxu0 %v2976
    %3214 = vmatprep.subr.mxu0 0.0
    %3215 = vmatpush1.msra.mxu0 %v2977
    %3216 = vmatprep.subr.mxu0 0.0
    %3217 = vmatpush1.msra.mxu0 %v2978
    %3218 = vmatprep.subr.mxu0 0.0
    %3219 = vmatpush1.msra.mxu0 %v2979
    %3220 = vmatprep.subr.mxu0 0.0
    %3221 = vmatpush1.msra.mxu0 %v2980
    %3222 = vmatprep.subr.mxu0 0.0
    %3223 = vmatpush1.msra.mxu0 %v2981
    %3224 = vmatprep.subr.mxu0 0.0
    %3225 = vmatpush1.msra.mxu0 %v2982
    %3226 = vmatprep.subr.mxu0 0.0
    %3227 = vmatpush1.msra.mxu0 %v2983
    %3228 = vmatprep.subr.mxu0 0.0
    %3229 = vmatpush1.msra.mxu0 %v2984
    %3230 = vmatprep.subr.mxu0 0.0
    %3231 = vmatpush1.msra.mxu0 %v2985
    %3232 = vmatprep.subr.mxu0 0.0
    %3233 = vmatpush1.msra.mxu0 %v2986
    %3234 = vmatprep.subr.mxu0 0.0
    %3235 = vmatpush1.msra.mxu0 %v2987
    %3236 = vmatprep.subr.mxu0 0.0
    %3237 = vmatpush1.msra.mxu0 %v2988
    %3238 = vmatprep.subr.mxu0 0.0
    %3239 = vmatpush1.msra.mxu0 %v2989
    %3240 = vmatprep.subr.mxu0 0.0
    %3241 = vmatpush1.msra.mxu0 %v2990
    %3242 = vmatprep.subr.mxu0 0.0
    %3243 = vmatpush1.msra.mxu0 %v2991
    %3244 = vmatprep.subr.mxu0 0.0
    %3245 = vmatpush1.msra.mxu0 %v2992
    %3246 = vmatprep.subr.mxu0 0.0
    %3247 = vmatpush1.msra.mxu0 %v2993
    %3248 = vmatprep.subr.mxu0 0.0
    %3249 = vmatpush1.msra.mxu0 %v2994
    %3250 = vmatprep.subr.mxu0 0.0
    %3251 = vmatpush1.msra.mxu0 %v2995
    %3252 = vmatprep.subr.mxu0 0.0
    %3253 = vmatpush1.msra.mxu0 %v2996
    %3254 = vmatprep.subr.mxu0 0.0
    %3255 = vmatpush1.msra.mxu0 %v2997
    %3256 = vmatprep.subr.mxu0 0.0
    %3257 = vmatpush1.msra.mxu0 %v2998
    %3258 = vmatprep.subr.mxu0 0.0
    %3259 = vmatpush1.msra.mxu0 %v2999
    %3260 = vmatprep.subr.mxu0 0.0
    %3261 = vmatpush1.msra.mxu0 %v3000
    %3262 = vmatprep.subr.mxu0 0.0
    %3263 = vmatpush1.msra.mxu0 %v3001
    %3264 = vmatprep.subr.mxu0 0.0
    %3265 = vmatpush1.msra.mxu0 %v3002
    %3266 = vmatprep.subr.mxu0 0.0
    %3267 = vmatpush1.msra.mxu0 %v3003
    %3268 = vmatprep.subr.mxu0 0.0
    %3269 = vmatpush1.msra.mxu0 %v3004
    %3270 = vmatprep.subr.mxu0 0.0
    %3271 = vmatpush1.msra.mxu0 %v3005
    %3272 = vmatprep.subr.mxu0 0.0
    %3273 = vmatpush1.msra.mxu0 %v3006
    %3274 = vmatprep.subr.mxu0 0.0
    %3275 = vmatpush1.msra.mxu0 %v3007
    %3276 = vmatprep.mubr.f32.mxu0 %v3197
    %3277 = vmatmul.mubr.f32.gmra.mrb[0].mxu0 %v3190
    %v3278 = vpop.f32.mrb[0].mxu0
    %v3279 = vadd.f32 0.0, %v3278
    %v3280 = vpop.f32.mrb[0].mxu0
    %3281 = vdwg.mxu0
    %3282 = vmatprep.subr.mxu0 0.0
    %3283 = vmatpush1.msra.mxu0 %v3008
    %3284 = vmatprep.subr.mxu0 0.0
    %3285 = vmatpush1.msra.mxu0 %v3009
    %3286 = vmatprep.subr.mxu0 0.0
    %3287 = vmatpush1.msra.mxu0 %v3010
    %3288 = vmatprep.subr.mxu0 0.0
    %3289 = vmatpush1.msra.mxu0 %v3011
    %3290 = vmatprep.subr.mxu0 0.0
    %3291 = vmatpush1.msra.mxu0 %v3012
    %3292 = vmatprep.subr.mxu0 0.0
    %3293 = vmatpush1.msra.mxu0 %v3013
    %3294 = vmatprep.subr.mxu0 0.0
    %3295 = vmatpush1.msra.mxu0 %v3014
    %3296 = vmatprep.subr.mxu0 0.0
    %3297 = vmatpush1.msra.mxu0 %v3015
    %3298 = vmatprep.subr.mxu0 0.0
    %3299 = vmatpush1.msra.mxu0 %v3016
    %3300 = vmatprep.subr.mxu0 0.0
    %3301 = vmatpush1.msra.mxu0 %v3017
    %3302 = vmatprep.subr.mxu0 0.0
    %3303 = vmatpush1.msra.mxu0 %v3018
    %3304 = vmatprep.subr.mxu0 0.0
    %3305 = vmatpush1.msra.mxu0 %v3019
    %3306 = vmatprep.subr.mxu0 0.0
    %3307 = vmatpush1.msra.mxu0 %v3020
    %3308 = vmatprep.subr.mxu0 0.0
    %3309 = vmatpush1.msra.mxu0 %v3021
    %3310 = vmatprep.subr.mxu0 0.0
    %3311 = vmatpush1.msra.mxu0 %v3022
    %3312 = vmatprep.subr.mxu0 0.0
    %3313 = vmatpush1.msra.mxu0 %v3023
    %3314 = vmatprep.subr.mxu0 0.0
    %3315 = vmatpush1.msra.mxu0 %v3024
    %3316 = vmatprep.subr.mxu0 0.0
    %3317 = vmatpush1.msra.mxu0 %v3025
    %3318 = vmatprep.subr.mxu0 0.0
    %3319 = vmatpush1.msra.mxu0 %v3026
    %3320 = vmatprep.subr.mxu0 0.0
    %3321 = vmatpush1.msra.mxu0 %v3027
    %3322 = vmatprep.subr.mxu0 0.0
    %3323 = vmatpush1.msra.mxu0 %v3028
    %3324 = vmatprep.subr.mxu0 0.0
    %3325 = vmatpush1.msra.mxu0 %v3029
    %3326 = vmatprep.subr.mxu0 0.0
    %3327 = vmatpush1.msra.mxu0 %v3030
    %3328 = vmatprep.subr.mxu0 0.0
    %3329 = vmatpush1.msra.mxu0 %v3031
    %3330 = vmatprep.subr.mxu0 0.0
    %3331 = vmatpush1.msra.mxu0 %v3032
    %3332 = vmatprep.subr.mxu0 0.0
    %3333 = vmatpush1.msra.mxu0 %v3033
    %3334 = vmatprep.subr.mxu0 0.0
    %3335 = vmatpush1.msra.mxu0 %v3034
    %3336 = vmatprep.subr.mxu0 0.0
    %3337 = vmatpush1.msra.mxu0 %v3035
    %3338 = vmatprep.subr.mxu0 0.0
    %3339 = vmatpush1.msra.mxu0 %v3036
    %3340 = vmatprep.subr.mxu0 0.0
    %3341 = vmatpush1.msra.mxu0 %v3037
    %3342 = vmatprep.subr.mxu0 0.0
    %3343 = vmatpush1.msra.mxu0 %v3038
    %3344 = vmatprep.subr.mxu0 0.0
    %3345 = vmatpush1.msra.mxu0 %v3039
    %3346 = vmatprep.mubr.f32.mxu0 %v3211
    %3347 = vmatmul.mubr.f32.gmra.mrb[0].mxu0 %v3204
    %v3348 = vpop.f32.mrb[0].mxu0
    %v3349 = vadd.f32 %v3279, %v3348
    %v3350 = vpop.f32.mrb[0].mxu0
    %3351 = vdwg.mxu0
    %v3352 = vrcp.pop 32.0
    %v3353 = vmul.f32 %v3177, %v3352
    %v3354 = vmul.f32 %v3349, %v3352
    %v3355 = vmul.f32 %v3353, %v3353
    %v3356 = vsub.f32 %v3354, %v3355
    %v3357 = vld [vmem:[%s6] sm:$0x1]
    %v3358 = vadd.f32 %v3356, 1e-05
    %v3359 = vrsqrt.pop %v3358
    %v3360 = vmul.f32 %v3357, %v3359
    %v3361 = vld [vmem:[%s7] sm:$0x1]
    %v3362 = vmul.f32 %v3353, %v3360
    %v3363 = vsub.f32 %v3361, %v3362
    %v3364 = vld [vmem:[%s5] sm:$0xff]
    %v3365 = vld [vmem:[%s5 + $0x8] sm:$0xff]
    %v3366 = vld [vmem:[%s5 + $0x10] sm:$0xff]
    %v3367 = vld [vmem:[%s5 + $0x18] sm:$0xff]
    %v3368 = vld [vmem:[%s5 + $0x20] sm:$0xff]
    %v3369 = vld [vmem:[%s5 + $0x28] sm:$0xff]
    %v3370 = vld [vmem:[%s5 + $0x30] sm:$0xff]
    %v3371 = vld [vmem:[%s5 + $0x38] sm:$0xff]
    %v3372 = vld [vmem:[%s5 + $0x40] sm:$0xff]
    %v3373 = vld [vmem:[%s5 + $0x48] sm:$0xff]
    %v3374 = vld [vmem:[%s5 + $0x50] sm:$0xff]
    %v3375 = vld [vmem:[%s5 + $0x58] sm:$0xff]
    %v3376 = vld [vmem:[%s5 + $0x60] sm:$0xff]
    %v3377 = vld [vmem:[%s5 + $0x68] sm:$0xff]
    %v3378 = vld [vmem:[%s5 + $0x70] sm:$0xff]
    %v3379 = vld [vmem:[%s5 + $0x78] sm:$0xff]
    %vm3380 = vcmask 261120
    %v3382 = vsel %vm3380, %v3360, 0
    %3384 = vmatprep.subr.mxu0 %v3365
    %3385 = vmatpush1.msra.mxu0 %v3364
    %3386 = vmatprep.subr.mxu0 %v3369
    %3387 = vmatpush1.msra.mxu0 %v3368
    %3388 = vmatprep.subr.mxu0 %v3373
    %3389 = vmatpush1.msra.mxu0 %v3372
    %3390 = vmatprep.subr.mxu0 %v3377
    %3391 = vmatpush1.msra.mxu0 %v3376
    %3392 = vmatprep.subr.mxu0 0.0
    %3393 = vmatpush1.msra.mxu0 0.0
    %3394 = vmatprep.subr.mxu0 0.0
    %3395 = vmatpush1.msra.mxu0 0.0
    %3396 = vmatprep.subr.mxu0 0.0
    %3397 = vmatpush1.msra.mxu0 0.0
    %3398 = vmatprep.subr.mxu0 0.0
    %3399 = vmatpush1.msra.mxu0 0.0
    %3400 = vmatprep.subr.mxu0 0.0
    %3401 = vmatpush1.msra.mxu0 0.0
    %3402 = vmatprep.subr.mxu0 0.0
    %3403 = vmatpush1.msra.mxu0 0.0
    %3404 = vmatprep.subr.mxu0 0.0
    %3405 = vmatpush1.msra.mxu0 0.0
    %3406 = vmatprep.subr.mxu0 0.0
    %3407 = vmatpush1.msra.mxu0 0.0
    %3408 = vmatprep.subr.mxu0 0.0
    %3409 = vmatpush1.msra.mxu0 0.0
    %3410 = vmatprep.subr.mxu0 0.0
    %3411 = vmatpush1.msra.mxu0 0.0
    %3412 = vmatprep.subr.mxu0 0.0
    %3413 = vmatpush1.msra.mxu0 0.0
    %3414 = vmatprep.subr.mxu0 0.0
    %3415 = vmatpush1.msra.mxu0 0.0
    %3416 = vmatprep.subr.mxu0 0.0
    %3417 = vmatpush1.msra.mxu0 0.0
    %3418 = vmatprep.subr.mxu0 0.0
    %3419 = vmatpush1.msra.mxu0 0.0
    %3420 = vmatprep.subr.mxu0 0.0
    %3421 = vmatpush1.msra.mxu0 0.0
    %3422 = vmatprep.subr.mxu0 0.0
    %3423 = vmatpush1.msra.mxu0 0.0
    %3424 = vmatprep.subr.mxu0 0.0
    %3425 = vmatpush1.msra.mxu0 0.0
    %3426 = vmatprep.subr.mxu0 0.0
    %3427 = vmatpush1.msra.mxu0 0.0
    %3428 = vmatprep.subr.mxu0 0.0
    %3429 = vmatpush1.msra.mxu0 0.0
    %3430 = vmatprep.subr.mxu0 0.0
    %3431 = vmatpush1.msra.mxu0 0.0
    %3432 = vmatprep.subr.mxu0 0.0
    %3433 = vmatpush1.msra.mxu0 0.0
    %3434 = vmatprep.subr.mxu0 0.0
    %3435 = vmatpush1.msra.mxu0 0.0
    %3436 = vmatprep.subr.mxu0 0.0
    %3437 = vmatpush1.msra.mxu0 0.0
    %3438 = vmatprep.subr.mxu0 0.0
    %3439 = vmatpush1.msra.mxu0 0.0
    %3440 = vmatprep.subr.mxu0 0.0
    %3441 = vmatpush1.msra.mxu0 0.0
    %3442 = vmatprep.subr.mxu0 0.0
    %3443 = vmatpush1.msra.mxu0 0.0
    %3444 = vmatprep.subr.mxu0 0.0
    %3445 = vmatpush1.msra.mxu0 0.0
    %3446 = vmatprep.subr.mxu0 0.0
    %3447 = vmatpush1.msra.mxu0 0.0
    %3448 = vmatprep.mubr.f32.mxu0 0.0
    %3449 = vmatmul.mubr.f32.gmra.mrb[0].mxu0 %v3382
    %v3450 = vpop.f32.mrb[0].mxu0
    %v3451 = vadd.f32 0.0, %v3450
    %v3452 = vpop.f32.mrb[0].mxu0
    %v3453 = vadd.f32 0.0, %v3452
    %3454 = vdwg.mxu0
    %3455 = vmatprep.subr.mxu0 %v3367
    %3456 = vmatpush1.msra.mxu0 %v3366
    %3457 = vmatprep.subr.mxu0 %v3371
    %3458 = vmatpush1.msra.mxu0 %v3370
    %3459 = vmatprep.subr.mxu0 %v3375
    %3460 = vmatpush1.msra.mxu0 %v3374
    %3461 = vmatprep.subr.mxu0 %v3379
    %3462 = vmatpush1.msra.mxu0 %v3378
    %3463 = vmatprep.subr.mxu0 0.0
    %3464 = vmatpush1.msra.mxu0 0.0
    %3465 = vmatprep.subr.mxu0 0.0
    %3466 = vmatpush1.msra.mxu0 0.0
    %3467 = vmatprep.subr.mxu0 0.0
    %3468 = vmatpush1.msra.mxu0 0.0
    %3469 = vmatprep.subr.mxu0 0.0
    %3470 = vmatpush1.msra.mxu0 0.0
    %3471 = vmatprep.subr.mxu0 0.0
    %3472 = vmatpush1.msra.mxu0 0.0
    %3473 = vmatprep.subr.mxu0 0.0
    %3474 = vmatpush1.msra.mxu0 0.0
    %3475 = vmatprep.subr.mxu0 0.0
    %3476 = vmatpush1.msra.mxu0 0.0
    %3477 = vmatprep.subr.mxu0 0.0
    %3478 = vmatpush1.msra.mxu0 0.0
    %3479 = vmatprep.subr.mxu0 0.0
    %3480 = vmatpush1.msra.mxu0 0.0
    %3481 = vmatprep.subr.mxu0 0.0
    %3482 = vmatpush1.msra.mxu0 0.0
    %3483 = vmatprep.subr.mxu0 0.0
    %3484 = vmatpush1.msra.mxu0 0.0
    %3485 = vmatprep.subr.mxu0 0.0
    %3486 = vmatpush1.msra.mxu0 0.0
    %3487 = vmatprep.subr.mxu0 0.0
    %3488 = vmatpush1.msra.mxu0 0.0
    %3489 = vmatprep.subr.mxu0 0.0
    %3490 = vmatpush1.msra.mxu0 0.0
    %3491 = vmatprep.subr.mxu0 0.0
    %3492 = vmatpush1.msra.mxu0 0.0
    %3493 = vmatprep.subr.mxu0 0.0
    %3494 = vmatpush1.msra.mxu0 0.0
    %3495 = vmatprep.subr.mxu0 0.0
    %3496 = vmatpush1.msra.mxu0 0.0
    %3497 = vmatprep.subr.mxu0 0.0
    %3498 = vmatpush1.msra.mxu0 0.0
    %3499 = vmatprep.subr.mxu0 0.0
    %3500 = vmatpush1.msra.mxu0 0.0
    %3501 = vmatprep.subr.mxu0 0.0
    %3502 = vmatpush1.msra.mxu0 0.0
    %3503 = vmatprep.subr.mxu0 0.0
    %3504 = vmatpush1.msra.mxu0 0.0
    %3505 = vmatprep.subr.mxu0 0.0
    %3506 = vmatpush1.msra.mxu0 0.0
    %3507 = vmatprep.subr.mxu0 0.0
    %3508 = vmatpush1.msra.mxu0 0.0
    %3509 = vmatprep.subr.mxu0 0.0
    %3510 = vmatpush1.msra.mxu0 0.0
    %3511 = vmatprep.subr.mxu0 0.0
    %3512 = vmatpush1.msra.mxu0 0.0
    %3513 = vmatprep.subr.mxu0 0.0
    %3514 = vmatpush1.msra.mxu0 0.0
    %3515 = vmatprep.subr.mxu0 0.0
    %3516 = vmatpush1.msra.mxu0 0.0
    %3517 = vmatprep.subr.mxu0 0.0
    %3518 = vmatpush1.msra.mxu0 0.0
    %3519 = vmatprep.mubr.f32.mxu0 0.0
    %3520 = vmatmul.mubr.f32.gmra.mrb[0].mxu0 %v3382
    %v3521 = vpop.f32.mrb[0].mxu0
    %v3522 = vadd.f32 0.0, %v3521
    %v3523 = vpop.f32.mrb[0].mxu0
    %v3524 = vadd.f32 0.0, %v3523
    %3525 = vdwg.mxu0
    %v3527 = vsel %vm3380, %v3363, 0
    %3529 = vmatprep.subr.mxu0 %v3365
    %3530 = vmatpush1.msra.mxu0 %v3364
    %3531 = vmatprep.subr.mxu0 %v3369
    %3532 = vmatpush1.msra.mxu0 %v3368
    %3533 = vmatprep.subr.mxu0 %v3373
    %3534 = vmatpush1.msra.mxu0 %v3372
    %3535 = vmatprep.subr.mxu0 %v3377
    %3536 = vmatpush1.msra.mxu0 %v3376
    %3537 = vmatprep.subr.mxu0 0.0
    %3538 = vmatpush1.msra.mxu0 0.0
    %3539 = vmatprep.subr.mxu0 0.0
    %3540 = vmatpush1.msra.mxu0 0.0
    %3541 = vmatprep.subr.mxu0 0.0
    %3542 = vmatpush1.msra.mxu0 0.0
    %3543 = vmatprep.subr.mxu0 0.0
    %3544 = vmatpush1.msra.mxu0 0.0
    %3545 = vmatprep.subr.mxu0 0.0
    %3546 = vmatpush1.msra.mxu0 0.0
    %3547 = vmatprep.subr.mxu0 0.0
    %3548 = vmatpush1.msra.mxu0 0.0
    %3549 = vmatprep.subr.mxu0 0.0
    %3550 = vmatpush1.msra.mxu0 0.0
    %3551 = vmatprep.subr.mxu0 0.0
    %3552 = vmatpush1.msra.mxu0 0.0
    %3553 = vmatprep.subr.mxu0 0.0
    %3554 = vmatpush1.msra.mxu0 0.0
    %3555 = vmatprep.subr.mxu0 0.0
    %3556 = vmatpush1.msra.mxu0 0.0
    %3557 = vmatprep.subr.mxu0 0.0
    %3558 = vmatpush1.msra.mxu0 0.0
    %3559 = vmatprep.subr.mxu0 0.0
    %3560 = vmatpush1.msra.mxu0 0.0
    %3561 = vmatprep.subr.mxu0 0.0
    %3562 = vmatpush1.msra.mxu0 0.0
    %3563 = vmatprep.subr.mxu0 0.0
    %3564 = vmatpush1.msra.mxu0 0.0
    %3565 = vmatprep.subr.mxu0 0.0
    %3566 = vmatpush1.msra.mxu0 0.0
    %3567 = vmatprep.subr.mxu0 0.0
    %3568 = vmatpush1.msra.mxu0 0.0
    %3569 = vmatprep.subr.mxu0 0.0
    %3570 = vmatpush1.msra.mxu0 0.0
    %3571 = vmatprep.subr.mxu0 0.0
    %3572 = vmatpush1.msra.mxu0 0.0
    %3573 = vmatprep.subr.mxu0 0.0
    %3574 = vmatpush1.msra.mxu0 0.0
    %3575 = vmatprep.subr.mxu0 0.0
    %3576 = vmatpush1.msra.mxu0 0.0
    %3577 = vmatprep.subr.mxu0 0.0
    %3578 = vmatpush1.msra.mxu0 0.0
    %3579 = vmatprep.subr.mxu0 0.0
    %3580 = vmatpush1.msra.mxu0 0.0
    %3581 = vmatprep.subr.mxu0 0.0
    %3582 = vmatpush1.msra.mxu0 0.0
    %3583 = vmatprep.subr.mxu0 0.0
    %3584 = vmatpush1.msra.mxu0 0.0
    %3585 = vmatprep.subr.mxu0 0.0
    %3586 = vmatpush1.msra.mxu0 0.0
    %3587 = vmatprep.subr.mxu0 0.0
    %3588 = vmatpush1.msra.mxu0 0.0
    %3589 = vmatprep.subr.mxu0 0.0
    %3590 = vmatpush1.msra.mxu0 0.0
    %3591 = vmatprep.subr.mxu0 0.0
    %3592 = vmatpush1.msra.mxu0 0.0
    %3593 = vmatprep.mubr.f32.mxu0 0.0
    %3594 = vmatmul.mubr.f32.gmra.mrb[0].mxu0 %v3527
    %v3595 = vpop.f32.mrb[0].mxu0
    %v3596 = vadd.f32 0.0, %v3595
    %v3597 = vpop.f32.mrb[0].mxu0
    %v3598 = vadd.f32 0.0, %v3597
    %3599 = vdwg.mxu0
    %3600 = vmatprep.subr.mxu0 %v3367
    %3601 = vmatpush1.msra.mxu0 %v3366
    %3602 = vmatprep.subr.mxu0 %v3371
    %3603 = vmatpush1.msra.mxu0 %v3370
    %3604 = vmatprep.subr.mxu0 %v3375
    %3605 = vmatpush1.msra.mxu0 %v3374
    %3606 = vmatprep.subr.mxu0 %v3379
    %3607 = vmatpush1.msra.mxu0 %v3378
    %3608 = vmatprep.subr.mxu0 0.0
    %3609 = vmatpush1.msra.mxu0 0.0
    %3610 = vmatprep.subr.mxu0 0.0
    %3611 = vmatpush1.msra.mxu0 0.0
    %3612 = vmatprep.subr.mxu0 0.0
    %3613 = vmatpush1.msra.mxu0 0.0
    %3614 = vmatprep.subr.mxu0 0.0
    %3615 = vmatpush1.msra.mxu0 0.0
    %3616 = vmatprep.subr.mxu0 0.0
    %3617 = vmatpush1.msra.mxu0 0.0
    %3618 = vmatprep.subr.mxu0 0.0
    %3619 = vmatpush1.msra.mxu0 0.0
    %3620 = vmatprep.subr.mxu0 0.0
    %3621 = vmatpush1.msra.mxu0 0.0
    %3622 = vmatprep.subr.mxu0 0.0
    %3623 = vmatpush1.msra.mxu0 0.0
    %3624 = vmatprep.subr.mxu0 0.0
    %3625 = vmatpush1.msra.mxu0 0.0
    %3626 = vmatprep.subr.mxu0 0.0
    %3627 = vmatpush1.msra.mxu0 0.0
    %3628 = vmatprep.subr.mxu0 0.0
    %3629 = vmatpush1.msra.mxu0 0.0
    %3630 = vmatprep.subr.mxu0 0.0
    %3631 = vmatpush1.msra.mxu0 0.0
    %3632 = vmatprep.subr.mxu0 0.0
    %3633 = vmatpush1.msra.mxu0 0.0
    %3634 = vmatprep.subr.mxu0 0.0
    %3635 = vmatpush1.msra.mxu0 0.0
    %3636 = vmatprep.subr.mxu0 0.0
    %3637 = vmatpush1.msra.mxu0 0.0
    %3638 = vmatprep.subr.mxu0 0.0
    %3639 = vmatpush1.msra.mxu0 0.0
    %3640 = vmatprep.subr.mxu0 0.0
    %3641 = vmatpush1.msra.mxu0 0.0
    %3642 = vmatprep.subr.mxu0 0.0
    %3643 = vmatpush1.msra.mxu0 0.0
    %3644 = vmatprep.subr.mxu0 0.0
    %3645 = vmatpush1.msra.mxu0 0.0
    %3646 = vmatprep.subr.mxu0 0.0
    %3647 = vmatpush1.msra.mxu0 0.0
    %3648 = vmatprep.subr.mxu0 0.0
    %3649 = vmatpush1.msra.mxu0 0.0
    %3650 = vmatprep.subr.mxu0 0.0
    %3651 = vmatpush1.msra.mxu0 0.0
    %3652 = vmatprep.subr.mxu0 0.0
    %3653 = vmatpush1.msra.mxu0 0.0
    %3654 = vmatprep.subr.mxu0 0.0
    %3655 = vmatpush1.msra.mxu0 0.0
    %3656 = vmatprep.subr.mxu0 0.0
    %3657 = vmatpush1.msra.mxu0 0.0
    %3658 = vmatprep.subr.mxu0 0.0
    %3659 = vmatpush1.msra.mxu0 0.0
    %3660 = vmatprep.subr.mxu0 0.0
    %3661 = vmatpush1.msra.mxu0 0.0
    %3662 = vmatprep.subr.mxu0 0.0
    %3663 = vmatpush1.msra.mxu0 0.0
    %3664 = vmatprep.mubr.f32.mxu0 0.0
    %3665 = vmatmul.mubr.f32.gmra.mrb[0].mxu0 %v3527
    %v3666 = vpop.f32.mrb[0].mxu0
    %v3667 = vadd.f32 0.0, %v3666
    %v3668 = vpop.f32.mrb[0].mxu0
    %v3669 = vadd.f32 0.0, %v3668
    %3670 = vdwg.mxu0
    %v3671 = vlaneseq
    %v3672 = vshrl.u32 %v3671, 7
    %v3673 = vsub.s32 0, %v3672
    %v3674 = vrot.slane %v3451, %v3673
    %v3675 = vlaneseq
    %v3676 = vshrl.u32 %v3675, 7
    %v3677 = vsub.s32 0, %v3676
    %v3678 = vrot.slane %v3453, %v3677
    %v3679 = vlaneseq
    %v3680 = vshrl.u32 %v3679, 7
    %v3681 = vsub.s32 0, %v3680
    %v3682 = vrot.slane %v3522, %v3681
    %v3683 = vlaneseq
    %v3684 = vshrl.u32 %v3683, 7
    %v3685 = vsub.s32 0, %v3684
    %v3686 = vrot.slane %v3524, %v3685
    %v3687 = vmul.f32 %v2777, %v3674
    %v3688 = vmul.f32 %v2779, %v3678
    %v3689 = vmul.f32 %v2941, %v3682
    %v3690 = vmul.f32 %v2943, %v3686
    %v3691 = vlaneseq
    %v3692 = vshrl.u32 %v3691, 7
    %v3693 = vsub.s32 0, %v3692
    %v3694 = vrot.slane %v3596, %v3693
    %v3695 = vlaneseq
    %v3696 = vshrl.u32 %v3695, 7
    %v3697 = vsub.s32 0, %v3696
    %v3698 = vrot.slane %v3598, %v3697
    %v3699 = vlaneseq
    %v3700 = vshrl.u32 %v3699, 7
    %v3701 = vsub.s32 0, %v3700
    %v3702 = vrot.slane %v3667, %v3701
    %v3703 = vlaneseq
    %v3704 = vshrl.u32 %v3703, 7
    %v3705 = vsub.s32 0, %v3704
    %v3706 = vrot.slane %v3669, %v3705
    %v3707 = vadd.f32 %v3687, %v3694
    %v3708 = vadd.f32 %v3688, %v3698
    %v3709 = vadd.f32 %v3689, %v3702
    %v3710 = vadd.f32 %v3690, %v3706
    %vm3711 = vcmp.ge.f32.partialorder %v3707, 0.0
    %vm3712 = vcmp.ge.f32.partialorder %v3708, 0.0
    %vm3713 = vcmp.ge.f32.partialorder %v3709, 0.0
    %vm3714 = vcmp.ge.f32.partialorder %v3710, 0.0
    %v3715 = vmul.f32 %v3707, 0.2
    %v3716 = vmul.f32 %v3708, 0.2
    %v3717 = vmul.f32 %v3709, 0.2
    %v3718 = vmul.f32 %v3710, 0.2
    %v3719 = vsel %vm3711, %v3707, %v3715
    %v3720 = vsel %vm3712, %v3708, %v3716
    %v3721 = vsel %vm3713, %v3709, %v3717
    %v3722 = vsel %vm3714, %v3710, %v3718
    %v3723 = vld [vmem:[%s8] sm:$0xff]
    %v3724 = vld [vmem:[%s8 + $0x8] sm:$0xff]
    %v3725 = vld [vmem:[%s8 + $0x10] sm:$0xff]
    %v3726 = vld [vmem:[%s8 + $0x18] sm:$0xff]
    %v3727 = vld [vmem:[%s8 + $0x20] sm:$0xff]
    %v3728 = vld [vmem:[%s8 + $0x28] sm:$0xff]
    %v3729 = vld [vmem:[%s8 + $0x30] sm:$0xff]
    %v3730 = vld [vmem:[%s8 + $0x38] sm:$0xff]
    %v3731 = vld [vmem:[%s8 + $0x40] sm:$0xff]
    %v3732 = vld [vmem:[%s8 + $0x48] sm:$0xff]
    %v3733 = vld [vmem:[%s8 + $0x50] sm:$0xff]
    %v3734 = vld [vmem:[%s8 + $0x58] sm:$0xff]
    %v3735 = vld [vmem:[%s8 + $0x60] sm:$0xff]
    %v3736 = vld [vmem:[%s8 + $0x68] sm:$0xff]
    %v3737 = vld [vmem:[%s8 + $0x70] sm:$0xff]
    %v3738 = vld [vmem:[%s8 + $0x78] sm:$0xff]
    %v3739 = vld [vmem:[%s8 + $0x80] sm:$0xff]
    %v3740 = vld [vmem:[%s8 + $0x88] sm:$0xff]
    %v3741 = vld [vmem:[%s8 + $0x90] sm:$0xff]
    %v3742 = vld [vmem:[%s8 + $0x98] sm:$0xff]
    %v3743 = vld [vmem:[%s8 + $0xa0] sm:$0xff]
    %v3744 = vld [vmem:[%s8 + $0xa8] sm:$0xff]
    %v3745 = vld [vmem:[%s8 + $0xb0] sm:$0xff]
    %v3746 = vld [vmem:[%s8 + $0xb8] sm:$0xff]
    %v3747 = vld [vmem:[%s8 + $0xc0] sm:$0xff]
    %v3748 = vld [vmem:[%s8 + $0xc8] sm:$0xff]
    %v3749 = vld [vmem:[%s8 + $0xd0] sm:$0xff]
    %v3750 = vld [vmem:[%s8 + $0xd8] sm:$0xff]
    %v3751 = vld [vmem:[%s8 + $0xe0] sm:$0xff]
    %v3752 = vld [vmem:[%s8 + $0xe8] sm:$0xff]
    %v3753 = vld [vmem:[%s8 + $0xf0] sm:$0xff]
    %v3754 = vld [vmem:[%s8 + $0xf8] sm:$0xff]
    %v3755 = vld [vmem:[%s8 + $0x100] sm:$0xff]
    %v3756 = vld [vmem:[%s8 + $0x108] sm:$0xff]
    %v3757 = vld [vmem:[%s8 + $0x110] sm:$0xff]
    %v3758 = vld [vmem:[%s8 + $0x118] sm:$0xff]
    %v3759 = vld [vmem:[%s8 + $0x120] sm:$0xff]
    %v3760 = vld [vmem:[%s8 + $0x128] sm:$0xff]
    %v3761 = vld [vmem:[%s8 + $0x130] sm:$0xff]
    %v3762 = vld [vmem:[%s8 + $0x138] sm:$0xff]
    %v3763 = vld [vmem:[%s8 + $0x140] sm:$0xff]
    %v3764 = vld [vmem:[%s8 + $0x148] sm:$0xff]
    %v3765 = vld [vmem:[%s8 + $0x150] sm:$0xff]
    %v3766 = vld [vmem:[%s8 + $0x158] sm:$0xff]
    %v3767 = vld [vmem:[%s8 + $0x160] sm:$0xff]
    %v3768 = vld [vmem:[%s8 + $0x168] sm:$0xff]
    %v3769 = vld [vmem:[%s8 + $0x170] sm:$0xff]
    %v3770 = vld [vmem:[%s8 + $0x178] sm:$0xff]
    %v3771 = vld [vmem:[%s8 + $0x180] sm:$0xff]
    %v3772 = vld [vmem:[%s8 + $0x188] sm:$0xff]
    %v3773 = vld [vmem:[%s8 + $0x190] sm:$0xff]
    %v3774 = vld [vmem:[%s8 + $0x198] sm:$0xff]
    %v3775 = vld [vmem:[%s8 + $0x1a0] sm:$0xff]
    %v3776 = vld [vmem:[%s8 + $0x1a8] sm:$0xff]
    %v3777 = vld [vmem:[%s8 + $0x1b0] sm:$0xff]
    %v3778 = vld [vmem:[%s8 + $0x1b8] sm:$0xff]
    %v3779 = vld [vmem:[%s8 + $0x1c0] sm:$0xff]
    %v3780 = vld [vmem:[%s8 + $0x1c8] sm:$0xff]
    %v3781 = vld [vmem:[%s8 + $0x1d0] sm:$0xff]
    %v3782 = vld [vmem:[%s8 + $0x1d8] sm:$0xff]
    %v3783 = vld [vmem:[%s8 + $0x1e0] sm:$0xff]
    %v3784 = vld [vmem:[%s8 + $0x1e8] sm:$0xff]
    %v3785 = vld [vmem:[%s8 + $0x1f0] sm:$0xff]
    %v3786 = vld [vmem:[%s8 + $0x1f8] sm:$0xff]
    %v3787 = vld [vmem:[#allocation2] sm:$0x1]
    %v3789 = vlaneseq
    %v3790 = vshrl.u32 %v3789, 7
    %v3791 = vsub.s32 0, %v3790
    %v3792 = vrot.slane %v3787, %v3791
    %3794 = vmatprep.subr.mxu0 0.0
    %3795 = vmatpush1.msra.mxu0 %v3723
    %3796 = vmatprep.subr.mxu0 0.0
    %3797 = vmatpush1.msra.mxu0 %v3724
    %3798 = vmatprep.subr.mxu0 0.0
    %3799 = vmatpush1.msra.mxu0 %v3725
    %3800 = vmatprep.subr.mxu0 0.0
    %3801 = vmatpush1.msra.mxu0 %v3726
    %3802 = vmatprep.subr.mxu0 0.0
    %3803 = vmatpush1.msra.mxu0 %v3727
    %3804 = vmatprep.subr.mxu0 0.0
    %3805 = vmatpush1.msra.mxu0 %v3728
    %3806 = vmatprep.subr.mxu0 0.0
    %3807 = vmatpush1.msra.mxu0 %v3729
    %3808 = vmatprep.subr.mxu0 0.0
    %3809 = vmatpush1.msra.mxu0 %v3730
    %3810 = vmatprep.subr.mxu0 0.0
    %3811 = vmatpush1.msra.mxu0 %v3731
    %3812 = vmatprep.subr.mxu0 0.0
    %3813 = vmatpush1.msra.mxu0 %v3732
    %3814 = vmatprep.subr.mxu0 0.0
    %3815 = vmatpush1.msra.mxu0 %v3733
    %3816 = vmatprep.subr.mxu0 0.0
    %3817 = vmatpush1.msra.mxu0 %v3734
    %3818 = vmatprep.subr.mxu0 0.0
    %3819 = vmatpush1.msra.mxu0 %v3735
    %3820 = vmatprep.subr.mxu0 0.0
    %3821 = vmatpush1.msra.mxu0 %v3736
    %3822 = vmatprep.subr.mxu0 0.0
    %3823 = vmatpush1.msra.mxu0 %v3737
    %3824 = vmatprep.subr.mxu0 0.0
    %3825 = vmatpush1.msra.mxu0 %v3738
    %3826 = vmatprep.subr.mxu0 0.0
    %3827 = vmatpush1.msra.mxu0 %v3739
    %3828 = vmatprep.subr.mxu0 0.0
    %3829 = vmatpush1.msra.mxu0 %v3740
    %3830 = vmatprep.subr.mxu0 0.0
    %3831 = vmatpush1.msra.mxu0 %v3741
    %3832 = vmatprep.subr.mxu0 0.0
    %3833 = vmatpush1.msra.mxu0 %v3742
    %3834 = vmatprep.subr.mxu0 0.0
    %3835 = vmatpush1.msra.mxu0 %v3743
    %3836 = vmatprep.subr.mxu0 0.0
    %3837 = vmatpush1.msra.mxu0 %v3744
    %3838 = vmatprep.subr.mxu0 0.0
    %3839 = vmatpush1.msra.mxu0 %v3745
    %3840 = vmatprep.subr.mxu0 0.0
    %3841 = vmatpush1.msra.mxu0 %v3746
    %3842 = vmatprep.subr.mxu0 0.0
    %3843 = vmatpush1.msra.mxu0 %v3747
    %3844 = vmatprep.subr.mxu0 0.0
    %3845 = vmatpush1.msra.mxu0 %v3748
    %3846 = vmatprep.subr.mxu0 0.0
    %3847 = vmatpush1.msra.mxu0 %v3749
    %3848 = vmatprep.subr.mxu0 0.0
    %3849 = vmatpush1.msra.mxu0 %v3750
    %3850 = vmatprep.subr.mxu0 0.0
    %3851 = vmatpush1.msra.mxu0 %v3751
    %3852 = vmatprep.subr.mxu0 0.0
    %3853 = vmatpush1.msra.mxu0 %v3752
    %3854 = vmatprep.subr.mxu0 0.0
    %3855 = vmatpush1.msra.mxu0 %v3753
    %3856 = vmatprep.subr.mxu0 0.0
    %3857 = vmatpush1.msra.mxu0 %v3754
    %3858 = vmatprep.mubr.f32.mxu0 %v3720
    %3859 = vmatmul.mubr.f32.gmra.mrb[0].mxu0 %v3719
    %v3860 = vpop.f32.mrb[0].mxu0
    %v3861 = vadd.f32 %v3792, %v3860
    %v3862 = vpop.f32.mrb[0].mxu0
    %3863 = vdwg.mxu0
    %3864 = vmatprep.subr.mxu0 0.0
    %3865 = vmatpush1.msra.mxu0 %v3755
    %3866 = vmatprep.subr.mxu0 0.0
    %3867 = vmatpush1.msra.mxu0 %v3756
    %3868 = vmatprep.subr.mxu0 0.0
    %3869 = vmatpush1.msra.mxu0 %v3757
    %3870 = vmatprep.subr.mxu0 0.0
    %3871 = vmatpush1.msra.mxu0 %v3758
    %3872 = vmatprep.subr.mxu0 0.0
    %3873 = vmatpush1.msra.mxu0 %v3759
    %3874 = vmatprep.subr.mxu0 0.0
    %3875 = vmatpush1.msra.mxu0 %v3760
    %3876 = vmatprep.subr.mxu0 0.0
    %3877 = vmatpush1.msra.mxu0 %v3761
    %3878 = vmatprep.subr.mxu0 0.0
    %3879 = vmatpush1.msra.mxu0 %v3762
    %3880 = vmatprep.subr.mxu0 0.0
    %3881 = vmatpush1.msra.mxu0 %v3763
    %3882 = vmatprep.subr.mxu0 0.0
    %3883 = vmatpush1.msra.mxu0 %v3764
    %3884 = vmatprep.subr.mxu0 0.0
    %3885 = vmatpush1.msra.mxu0 %v3765
    %3886 = vmatprep.subr.mxu0 0.0
    %3887 = vmatpush1.msra.mxu0 %v3766
    %3888 = vmatprep.subr.mxu0 0.0
    %3889 = vmatpush1.msra.mxu0 %v3767
    %3890 = vmatprep.subr.mxu0 0.0
    %3891 = vmatpush1.msra.mxu0 %v3768
    %3892 = vmatprep.subr.mxu0 0.0
    %3893 = vmatpush1.msra.mxu0 %v3769
    %3894 = vmatprep.subr.mxu0 0.0
    %3895 = vmatpush1.msra.mxu0 %v3770
    %3896 = vmatprep.subr.mxu0 0.0
    %3897 = vmatpush1.msra.mxu0 %v3771
    %3898 = vmatprep.subr.mxu0 0.0
    %3899 = vmatpush1.msra.mxu0 %v3772
    %3900 = vmatprep.subr.mxu0 0.0
    %3901 = vmatpush1.msra.mxu0 %v3773
    %3902 = vmatprep.subr.mxu0 0.0
    %3903 = vmatpush1.msra.mxu0 %v3774
    %3904 = vmatprep.subr.mxu0 0.0
    %3905 = vmatpush1.msra.mxu0 %v3775
    %3906 = vmatprep.subr.mxu0 0.0
    %3907 = vmatpush1.msra.mxu0 %v3776
    %3908 = vmatprep.subr.mxu0 0.0
    %3909 = vmatpush1.msra.mxu0 %v3777
    %3910 = vmatprep.subr.mxu0 0.0
    %3911 = vmatpush1.msra.mxu0 %v3778
    %3912 = vmatprep.subr.mxu0 0.0
    %3913 = vmatpush1.msra.mxu0 %v3779
    %3914 = vmatprep.subr.mxu0 0.0
    %3915 = vmatpush1.msra.mxu0 %v3780
    %3916 = vmatprep.subr.mxu0 0.0
    %3917 = vmatpush1.msra.mxu0 %v3781
    %3918 = vmatprep.subr.mxu0 0.0
    %3919 = vmatpush1.msra.mxu0 %v3782
    %3920 = vmatprep.subr.mxu0 0.0
    %3921 = vmatpush1.msra.mxu0 %v3783
    %3922 = vmatprep.subr.mxu0 0.0
    %3923 = vmatpush1.msra.mxu0 %v3784
    %3924 = vmatprep.subr.mxu0 0.0
    %3925 = vmatpush1.msra.mxu0 %v3785
    %3926 = vmatprep.subr.mxu0 0.0
    %3927 = vmatpush1.msra.mxu0 %v3786
    %3928 = vmatprep.mubr.f32.mxu0 %v3722
    %3929 = vmatmul.mubr.f32.gmra.mrb[0].mxu0 %v3721
    %v3930 = vpop.f32.mrb[0].mxu0
    %v3931 = vadd.f32 %v3861, %v3930
    %v3932 = vpop.f32.mrb[0].mxu0
    %3933 = vdwg.mxu0
    %vm3934 = vcmask 1024
    %3935 = vst.msk [vmem:[%s10] sm:$0x3] %vm3934, %v3931
    // Predicated region
    $region50: #{tpu_custom_call.1} parent=1 // pred_check
      _
    $region51: #{tpu_custom_call.1} parent=1 // pred_check_branch
      %3937 = sbr.rel (0) target = $region53
    $region52: #{tpu_custom_call.1} parent=1 // pred_region
      _
    $region53: #{tpu_custom_call.1} parent=1 // pred_fallthru
      _
    // Predicated region
    $region54: #{tpu_custom_call.1} parent=1 // pred_check
      _
    $region55: #{tpu_custom_call.1} parent=1 // pred_check_branch
      %3939 = sbr.rel (0) target = $region57
    $region56: #{tpu_custom_call.1} parent=1 // pred_region
      _
    $region57: #{tpu_custom_call.1} parent=1 // pred_fallthru
      _
    %3940 = vsyncpa [#allocation4], 1
    %3941 = vsyncpa [#allocation6], 1

</llo_original>
